<compile_context>
chip_gen: v7x
topology: tpu7x:2x2x1
jax: 0.10.0
libtpu: 0.0.40
codegen_flags: <defaults>
</compile_context>

<pallas_src>
import math
from functools import partial

import jax
import jax.numpy as jnp
from jax.experimental import pallas as pl
from jax.experimental.pallas import tpu as pltpu

_VMEM_LIMIT = 32 * 1024 * 1024
_LANE_CAP = 512          # multiple of 128; per-tile lane width for tiled kernels


def _lane_tile(n, cap=_LANE_CAP):
    """Full extent if it fits in one block, otherwise a fixed 128-multiple cap
    with a pl.cdiv grid and a masked tail (never collapse to one giant block)."""
    return n if n <= cap else cap


# ----------------------------------------------------------------------------
# Attention: L2-normalize channels, Gram, suppression mask, softmax product
# ----------------------------------------------------------------------------

def _attention_kernel(x_ref, mask_ref, o_ref):
    # x: (C, N) channels-first; mask already includes * alpha.
    # s = G * mask is symmetric (isotropic mask, symmetric Gram), so
    # A = softmax(dim=-1)*softmax(dim=-2) = e^2 / (rowsum * colsum), one exp.
    # |s| <= alpha, so no max-shift is needed.
    x = x_ref[0]                                                    # (C, N) f32
    ssq = jnp.sum(x * x, axis=0, keepdims=True)                     # (1, N)
    fn = x * jax.lax.rsqrt(jnp.maximum(ssq, 1e-24))                 # F.normalize eps=1e-12
    fnb = fn.astype(jnp.bfloat16)
    g = jax.lax.dot_general(fnb, fnb, (((0,), (0,)), ((), ())),
                            preferred_element_type=jnp.float32)     # (N, N)
    e = jnp.exp(g * mask_ref[...])                                  # single N^2 exp
    rs = jnp.sum(e, axis=1, keepdims=True)                          # (N, 1)
    cs = jnp.sum(e, axis=0, keepdims=True)                          # (1, N)
    a = (e * e) * pl.reciprocal(rs, approx=True) * pl.reciprocal(cs, approx=True)
    o_ref[0] = a.astype(o_ref.dtype)                                # bf16 store


def global_attention_call(x_cf, mask_a):
    B, C, N = x_cf.shape
    # TODO(synk): for N >~ 1k (v7x 64 MiB VMEM) switch to a two-pass Nq-tiled
    # variant: symmetry means colsum == rowsum, so pass 1 = row-tiled rowsums,
    # pass 2 = row-tiled e^2/(rs_i*rs_j) normalization.
    return pl.pallas_call(
        _attention_kernel,
        out_shape=jax.ShapeDtypeStruct((B, N, N), jnp.bfloat16),
        grid=(B,),
        in_specs=[pl.BlockSpec((1, C, N), lambda b: (b, 0, 0)),
                  pl.BlockSpec((N, N), lambda b: (0, 0))],     # resident across batch
        out_specs=pl.BlockSpec((1, N, N), lambda b: (b, 0, 0)),
        compiler_params=pltpu.CompilerParams(
            dimension_semantics=("parallel",), vmem_limit_bytes=_VMEM_LIMIT),
    )(x_cf, mask_a)


# ----------------------------------------------------------------------------
# K-folded conv as one matmul: out = relu(W @ x_col + shift), lane-dense
# ----------------------------------------------------------------------------

def _make_conv_kernel(relu):
    def kernel(x_ref, w_ref, b_ref, o_ref):
        y = jnp.dot(w_ref[...], x_ref[0], preferred_element_type=jnp.float32)
        y = y + b_ref[...]                                          # (Cout, tn)
        if relu:
            y = jnp.maximum(y, 0.0)
        o_ref[0] = y.astype(o_ref.dtype)
    return kernel


def conv_call(xcol, w, shift, *, relu=True, out_dtype=jnp.float32):
    """xcol: (B, K, N) bf16 channels-first; w: (Cout, K) bf16 (BN scale folded);
    shift: (Cout, 1) f32.  Output (B, Cout, N), lane-dense."""
    B, K, N = xcol.shape
    Cout = w.shape[0]
    tn = _lane_tile(N)
    return pl.pallas_call(
        _make_conv_kernel(relu),
        out_shape=jax.ShapeDtypeStruct((B, Cout, N), out_dtype),
        grid=(B, pl.cdiv(N, tn)),
        in_specs=[pl.BlockSpec((1, K, tn), lambda b, t: (b, 0, t)),
                  pl.BlockSpec((Cout, K), lambda b, t: (0, 0)),
                  pl.BlockSpec((Cout, 1), lambda b, t: (0, 0))],
        out_specs=pl.BlockSpec((1, Cout, tn), lambda b, t: (b, 0, t)),
        compiler_params=pltpu.CompilerParams(
            dimension_semantics=("parallel", "parallel"),
            vmem_limit_bytes=_VMEM_LIMIT),
    )(xcol, w, shift)


# ----------------------------------------------------------------------------
# FineGrainedModule: conv_pre(1x1)+BN+ReLU -> GAP -> Conv1d band -> sigmoid
# channel gate -> conv_next(1x1)+BN+ReLU, fused per batch (channels-first).
# ----------------------------------------------------------------------------

def _fgm_kernel(x_ref, wpre_ref, bpre_ref, band_ref, wnext_ref, bnext_ref, o_ref):
    x = x_ref[0]                                                    # (K, N) f32
    y = jnp.dot(wpre_ref[...], x, preferred_element_type=jnp.float32)
    y = jnp.maximum(y + bpre_ref[...], 0.0)                         # (K, N)
    pooled = jnp.mean(y, axis=1, keepdims=True)                     # (K, 1)
    z = jnp.dot(band_ref[...], pooled, preferred_element_type=jnp.float32)
    gate = 0.5 * (jnp.tanh(0.5 * z) + 1.0)                          # sigmoid (K, 1)
    o = jnp.dot(wnext_ref[...], y * gate, preferred_element_type=jnp.float32)
    o_ref[0] = jnp.maximum(o + bnext_ref[...], 0.0)                 # (K, N) lane-dense


def fine_grained_call(f1, p):
    # TODO(synk): for very large N split into two row-tiled passes (partial
    # channel sums, then gate + conv_next); at topk=8 the (K, N) block is tiny.
    B, K, N = f1.shape
    return pl.pallas_call(
        _fgm_kernel,
        out_shape=jax.ShapeDtypeStruct((B, K, N), jnp.float32),
        grid=(B,),
        in_specs=[pl.BlockSpec((1, K, N), lambda b: (b, 0, 0)),
                  pl.BlockSpec((K, K), lambda b: (0, 0)),
                  pl.BlockSpec((K, 1), lambda b: (0, 0)),
                  pl.BlockSpec((K, K), lambda b: (0, 0)),
                  pl.BlockSpec((K, K), lambda b: (0, 0)),
                  pl.BlockSpec((K, 1), lambda b: (0, 0))],
        out_specs=pl.BlockSpec((1, K, N), lambda b: (b, 0, 0)),
        compiler_params=pltpu.CompilerParams(
            dimension_semantics=("parallel",), vmem_limit_bytes=_VMEM_LIMIT),
    )(f1, p['fgm_wpre'], p['fgm_bpre'], p['fgm_band'],
      p['fgm_wnext'], p['fgm_bnext'])


# ----------------------------------------------------------------------------
# Fused ASPP branches + projection + conv_select gate (cs3+cs4+sigmoid) + mul
# ----------------------------------------------------------------------------

def _make_aspp_gate_kernel(branch_center):
    n_dil = sum(1 for c in branch_center if not c)

    def kernel(*refs):
        idx = 0
        x0_ref = refs[idx]; idx += 1
        dil_refs = list(refs[idx:idx + n_dil]); idx += n_dil
        g2_ref = refs[idx]; idx += 1
        w_refs = list(refs[idx:idx + 4]); idx += 4
        b_ref = refs[idx]; idx += 1          # (4, cm, 1) branch BN shifts
        wproj_ref = refs[idx]; idx += 1      # (cm, 4cm) projection (scale folded)
        pshift_ref = refs[idx]; idx += 1     # (1, cm, 1) per-batch pooling shift
        wg_ref = refs[idx]; idx += 1         # (1, Kg) folded cs3+cs4 gate weight
        bg_ref = refs[idx]; idx += 1         # (1, 1)
        o_ref = refs[idx]

        x0 = x0_ref[0]                                              # (Cin, tn) bf16
        dil_iter = iter(dil_refs)
        xin = [x0]
        for center in branch_center:
            xin.append(x0 if center else next(dil_iter)[0])

        ys = []
        for i in range(4):
            y = jnp.dot(w_refs[i][...], xin[i], preferred_element_type=jnp.float32)
            ys.append(jnp.maximum(y + b_ref[i], 0.0))               # (cm, tn)
        # single K = 4*cm projection matmul (feedback item 2)
        ycat = jnp.concatenate(ys, axis=0).astype(jnp.bfloat16)     # (4cm, tn)
        proj = jnp.dot(wproj_ref[...], ycat, preferred_element_type=jnp.float32)
        proj = jnp.maximum(proj + pshift_ref[0], 0.0)               # (cm, tn)

        z = jnp.dot(wg_ref[...], g2_ref[0],
                    preferred_element_type=jnp.float32) + bg_ref[...]   # (1, tn)
        gate = 0.5 * (jnp.tanh(0.5 * z) + 1.0)                      # sigmoid
        o_ref[0] = proj * gate                                      # lane-dense
    return kernel


def aspp_gate_call(x0, dil_inputs, g2, branch_ws, b_all, wproj, pshift,
                   wg, bg, branch_center):
    B, Cin, N = x0.shape
    cm = wproj.shape[0]
    tn = _lane_tile(N)
    bmap = lambda b, t: (b, 0, t)
    wmap = lambda b, t: (0, 0)

    in_specs = [pl.BlockSpec((1, Cin, tn), bmap)]
    args = [x0]
    for xd in dil_inputs:
        in_specs.append(pl.BlockSpec((1, xd.shape[1], tn), bmap))
        args.append(xd)
    in_specs.append(pl.BlockSpec((1, g2.shape[1], tn), bmap)); args.append(g2)
    for wb in branch_ws:
        in_specs.append(pl.BlockSpec(wb.shape, wmap)); args.append(wb)
    in_specs += [pl.BlockSpec(b_all.shape, lambda b, t: (0, 0, 0)),
                 pl.BlockSpec(wproj.shape, wmap),
                 pl.BlockSpec((1, cm, 1), lambda b, t: (b, 0, 0)),
                 pl.BlockSpec(wg.shape, wmap),
                 pl.BlockSpec(bg.shape, wmap)]
    args += [b_all, wproj, pshift, wg, bg]

    # TODO(synk): if the xprof trace shows exposed DMA on the streamed im2col
    # inputs, raise their specs to pipeline_mode=pl.Buffered(3).
    return pl.pallas_call(
        _make_aspp_gate_kernel(branch_center),
        out_shape=jax.ShapeDtypeStruct((B, cm, N), jnp.float32),
        grid=(B, pl.cdiv(N, tn)),
        in_specs=in_specs,
        out_specs=pl.BlockSpec((1, cm, tn), bmap),
        compiler_params=pltpu.CompilerParams(
            dimension_semantics=("parallel", "parallel"),
            vmem_limit_bytes=_VMEM_LIMIT),
    )(*args)


# ----------------------------------------------------------------------------
# get_global_grained_info: normalize attention over the query dim, then bmm
# ----------------------------------------------------------------------------

def _global_grained_kernel(f_ref, a_ref, o_ref):
    a = a_ref[0].astype(jnp.float32)                                # (Nq, Nk)
    colsum = jnp.sum(a, axis=0, keepdims=True) + 1e-8
    an = (a * pl.reciprocal(colsum, approx=True)).astype(jnp.bfloat16)
    f = f_ref[0].astype(jnp.bfloat16)                               # (C, Nq)
    o_ref[0] = jnp.dot(f, an, preferred_element_type=jnp.float32)   # (C, Nk)


def global_grained_call(f3, a):
    B, C, N = f3.shape
    return pl.pallas_call(
        _global_grained_kernel,
        out_shape=jax.ShapeDtypeStruct((B, C, N), jnp.float32),
        grid=(B,),
        in_specs=[pl.BlockSpec((1, C, N), lambda b: (b, 0, 0)),
                  pl.BlockSpec((1, N, N), lambda b: (b, 0, 0))],
        out_specs=pl.BlockSpec((1, C, N), lambda b: (b, 0, 0)),
        compiler_params=pltpu.CompilerParams(
            dimension_semantics=("parallel",), vmem_limit_bytes=_VMEM_LIMIT),
    )(f3, a)


# ----------------------------------------------------------------------------
# Plain-JAX glue: layout helpers, parameter construction
# ----------------------------------------------------------------------------

def im2col3x3_cf(x_bchw, dilation, dtype=jnp.bfloat16):
    """3x3 conv taps (padding=dilation), channels-first: (B, 9*C, H*W)."""
    # TODO(synk): build the 9 taps in-kernel from a halo'd VMEM tile to avoid
    # the 9x im2col blow-up in HBM (remaining v5e HBM-bandwidth item).
    B, C, H, W = x_bchw.shape
    d = dilation
    xp = jnp.pad(x_bchw, ((0, 0), (0, 0), (d, d), (d, d)))
    taps = [xp[:, :, ky * d:ky * d + H, kx * d:kx * d + W]
            for ky in range(3) for kx in range(3)]
    return jnp.concatenate(taps, axis=1).reshape(B, 9 * C, H * W).astype(dtype)


def conv3x3_to_rowmat(w):   # (Cout, Cin, 3, 3) -> (Cout, 9*Cin), tap-major cols
    return jnp.concatenate([w[:, :, ky, kx] for ky in range(3) for kx in range(3)],
                           axis=1)


def conv1d_band_rows(w1d, K, pad):
    """Conv1d(1,1,ks,pad,bias=False) over a length-K vector as (K_out, K_in)."""
    ksz = w1d.shape[0]
    o = jnp.arange(K)[:, None]
    i = jnp.arange(K)[None, :]
    j = i - o + pad
    valid = (j >= 0) & (j < ksz)
    return jnp.where(valid, w1d[jnp.clip(j, 0, ksz - 1)], 0.0).astype(jnp.float32)


def build_suppression_mask(h, w, rat_s, alpha):
    n = h * w
    q = jnp.arange(n, dtype=jnp.float32)
    r = jnp.floor(q / w)
    c = q - r * w
    dr = r[:, None] - r[None, :]
    dc = c[:, None] - c[None, :]
    g = jnp.exp(-(dr * dr / (2.0 * (h * rat_s) ** 2)
                  + dc * dc / (2.0 * (w * rat_s) ** 2)))
    return (float(alpha) * (1.0 - g)).astype(jnp.float32)


def init_params(key, cin, cm, topk, h, w, rates=(12, 24, 36),
                rat_s=0.05, alpha=5.0):
    keys = jax.random.split(key, 40)
    ki = iter(keys)

    def w_(shape, scale=0.2):
        return (scale * jax.random.normal(next(ki), shape)).astype(jnp.float32)

    eps = 1e-5
    bn_s = lambda c: jnp.full((c,), 1.0 / math.sqrt(1.0 + eps), jnp.float32)
    bn_b = lambda c: jnp.zeros((c,), jnp.float32)
    bf = lambda a: a.astype(jnp.bfloat16)
    col = lambda v: v[:, None]

    p = {}

    # --- FineGrainedModule(channel=topk): conv_pre/conv_next are bias=False+BN+ReLU
    ksz = int(abs((math.log(topk, 2) + 1) / 2))
    ksz = ksz if ksz % 2 else ksz + 1
    pad1d = (ksz - 1) // 2
    s = bn_s(topk)
    p['fgm_wpre'] = col(s) * w_((topk, topk))          # BN scale folded, f32 (tiny)
    p['fgm_bpre'] = col(bn_b(topk))
    p['fgm_band'] = conv1d_band_rows(w_((ksz,)), topk, pad1d)
    s = bn_s(topk)
    p['fgm_wnext'] = col(s) * w_((topk, topk))
    p['fgm_bnext'] = col(bn_b(topk))

    # --- conv_select: cs1/cs2 (conv+bias+BN+ReLU); cs3 (conv+bias, no BN/ReLU)
    #     and cs4 (1x1 conv+bias) + sigmoid folded into one (1, 144) gate matmul.
    wc1 = w_((16, topk, 3, 3)); bc1 = w_((16,), 0.05)
    s = bn_s(16)
    p['cs1_w'] = bf(col(s) * conv3x3_to_rowmat(wc1))
    p['cs1_b'] = col(s * bc1 + bn_b(16))
    wc2 = w_((16, 16, 3, 3)); bc2 = w_((16,), 0.05)
    s = bn_s(16)
    p['cs2_w'] = bf(col(s) * conv3x3_to_rowmat(wc2))
    p['cs2_b'] = col(s * bc2 + bn_b(16))
    wc3 = w_((16, 16, 3, 3)); bc3 = w_((16,), 0.05)
    wc4 = w_((1, 16)); bc4 = w_((1,), 0.05)
    p['gate_w'] = bf(wc4 @ conv3x3_to_rowmat(wc3))               # (1, 144)
    p['gate_b'] = wc4 @ bc3[:, None] + bc4[:, None]              # (1, 1)

    # --- ASPP(in=cin, out=cm, rates): all convs bias=False + BN(+ReLU)
    s = bn_s(cm)
    p['a0_w'] = bf(col(s) * w_((cm, cin)))
    b_list = [bn_b(cm)]
    for i, _ in enumerate(rates):
        wk = w_((cm, cin, 3, 3))
        s = bn_s(cm)
        p[f'a{i + 1}_w'] = bf(col(s) * conv3x3_to_rowmat(wk))    # (cm, 9cin)
        p[f'a{i + 1}_wc'] = bf(col(s) * wk[:, :, 1, 1])          # exact center tap
        b_list.append(bn_b(cm))
    p['aspp_b'] = jnp.stack(b_list, 0)[:, :, None]               # (4, cm, 1)
    s = bn_s(cm)
    p['a4_w'] = col(s) * w_((cm, cin))                           # pooling branch (XLA)
    p['a4_b'] = bn_b(cm)
    wp = col(bn_s(cm)) * w_((cm, 5 * cm))                        # projection, scale folded
    p['ap_w'] = bf(wp[:, :4 * cm])                               # (cm, 4cm) in-kernel
    p['ap_w4'] = wp[:, 4 * cm:]                                  # pooling slice (XLA)
    p['ap_b'] = bn_b(cm)

    # --- auto-correlation suppression mask with alpha folded
    p['mask_a'] = build_suppression_mask(h, w, rat_s, alpha)     # (N, N) f32
    return p


# ----------------------------------------------------------------------------
# Forward pass (MultiGranularityConsistencyModule.forward, eval mode)
# ----------------------------------------------------------------------------

def forward(x, p, *, topk, cm, rates=(12, 24, 36)):
    B, C, H, W = x.shape
    N = H * W
    x_cf = x.reshape(B, C, N)                                    # channels-first

    # global self-correlation attention (Pallas; A is symmetric, bf16)
    A = global_attention_call(x_cf, p['mask_a'])                 # (B, N, N) bf16

    # f1: torch.topk over the query dim; A symmetric -> top_k over the key dim.
    # TODO(synk): no clean Pallas top_k primitive; jax.lax.top_k (XLA) used.
    f1_nk = jax.lax.top_k(A, topk)[0]                            # (B, N, topk)
    f1 = jnp.transpose(f1_nk, (0, 2, 1)).astype(jnp.float32)     # (B, topk, N)

    # f2: FineGrainedModule (fused Pallas kernel)
    f2 = fine_grained_call(f1, p)                                # (B, topk, N)

    # conv_select front (cs1, cs2): K-folded im2col matmuls, bf16 intermediates
    # TODO(synk): fuse cs1->cs2->g2 with in-kernel halo taps to drop the im2col
    # HBM round-trips entirely.
    y1 = conv_call(im2col3x3_cf(f2.reshape(B, topk, H, W), 1),
                   p['cs1_w'], p['cs1_b'], relu=True, out_dtype=jnp.bfloat16)
    y2 = conv_call(im2col3x3_cf(y1.reshape(B, 16, H, W), 1),
                   p['cs2_w'], p['cs2_b'], relu=True, out_dtype=jnp.bfloat16)
    g2 = im2col3x3_cf(y2.reshape(B, 16, H, W), 1)                # (B, 144, N) bf16

    # ASPP pooling branch -> per-batch projection shift (tiny, plain JAX)
    pooled = jnp.mean(x_cf, axis=2)                              # (B, Cin)
    y4 = jnp.maximum(pooled @ p['a4_w'].T + p['a4_b'][None], 0.0)
    pshift = (y4 @ p['ap_w4'].T + p['ap_b'][None])[:, :, None]   # (B, cm, 1)

    # dilated 3x3 branch reduces exactly to its center tap when d >= max(H, W)
    branch_center = tuple(d >= H and d >= W for d in rates)
    x0 = x_cf.astype(jnp.bfloat16)
    dil_inputs, branch_ws = [], [p['a0_w']]
    for i, d in enumerate(rates):
        if branch_center[i]:
            branch_ws.append(p[f'a{i + 1}_wc'])
        else:
            dil_inputs.append(im2col3x3_cf(x, d))
            branch_ws.append(p[f'a{i + 1}_w'])

    # fused ASPP + projection + conv_select gate (cs3/cs4/sigmoid) + multiply
    f3 = aspp_gate_call(x0, dil_inputs, g2, branch_ws, p['aspp_b'],
                        p['ap_w'], pshift, p['gate_w'], p['gate_b'],
                        branch_center)                           # (B, cm, N)

    # f4: column-normalized attention bmm (Pallas)
    f4 = global_grained_call(f3, A)                              # (B, cm, N)

    feat = jnp.concatenate([f3, f4, f1, f2], axis=1)
    return feat.reshape(B, 2 * cm + 2 * topk, H, W)


if __name__ == "__main__":
    # Small shapes consistent with the module: in_channels=16, inner_channels=8,
    # topk=8, spatial 16x16 (N=256 >= topk), batch=2.  Rate 12 < 16 exercises
    # the general dilated-branch path; rates 24/36 exercise the center-tap path.
    B, Cin, H, W = 2, 16, 16, 16
    Cm, TOPK = 8, 8

    key = jax.random.PRNGKey(0)
    kx, kp = jax.random.split(key)
    x = jax.random.normal(kx, (B, Cin, H, W), jnp.float32)
    params = init_params(kp, Cin, Cm, TOPK, H, W)

    fwd = jax.jit(partial(forward, topk=TOPK, cm=Cm))
    out = fwd(x, params)
    jax.block_until_ready(out)

    assert out.shape == (B, 2 * Cm + 2 * TOPK, H, W), out.shape
    assert bool(jnp.all(jnp.isfinite(out)))
    print("KERNEL_OK")
</pallas_src>

<mosaic_0001>
module attributes {stable_mosaic.version = 11 : i64} {
  func.func @_attention_kernel(%arg0: i32, %arg1: memref<1x16x256xf32, #tpu.memory_space<vmem>>, %arg2: memref<256x256xf32, #tpu.memory_space<vmem>>, %arg3: memref<1x256x256xbf16, #tpu.memory_space<vmem>>) attributes {dimension_semantics = [#tpu.dimension_semantics<parallel>], iteration_bounds = array<i64: 2>, scalar_prefetch = 0 : i64, scratch_operands = 0 : i64, tpu.core_type = #tpu.core_type<tc>, window_params = [{transform_indices = @transform_0, window_bounds = array<i64: 1, 16, 256>}, {pipeline_mode = #tpu.pipeline_mode<synchronous>, transform_indices = @transform_1, window_bounds = array<i64: 256, 256>}, {transform_indices = @transform_2, window_bounds = array<i64: 1, 256, 256>}]} {
    %c0 = arith.constant 0 : index
    %c0_0 = arith.constant 0 : index
    %c0_1 = arith.constant 0 : index
    %0 = vector.load %arg1[%c0, %c0_0, %c0_1] : memref<1x16x256xf32, #tpu.memory_space<vmem>>, vector<1x16x256xf32>
    %1 = vector.shape_cast %0 : vector<1x16x256xf32> to vector<16x256xf32>
    %2 = arith.mulf %1, %1 : vector<16x256xf32>
    %cst = arith.constant dense<0.000000e+00> : vector<256xf32>
    %3 = vector.multi_reduction <add>, %2, %cst [0] : vector<16x256xf32> to vector<256xf32>
    %4 = vector.shape_cast %3 : vector<256xf32> to vector<1x256xf32>
    %cst_2 = arith.constant 1.000000e-24 : f32
    %5 = vector.broadcast %cst_2 : f32 to vector<1x256xf32>
    %6 = arith.maximumf %4, %5 : vector<1x256xf32>
    %7 = math.rsqrt %6 : vector<1x256xf32>
    %8 = vector.broadcast %7 : vector<1x256xf32> to vector<16x256xf32>
    %9 = arith.mulf %1, %8 : vector<16x256xf32>
    %10 = arith.truncf %9 : vector<16x256xf32> to vector<16x256xbf16>
    %cst_3 = arith.constant dense<0.000000e+00> : vector<256x256xf32>
    %11 = tpu.matmul %10, %10, %cst_3 {dimension_numbers = #tpu.dot_dimension_numbers<[0], [0], [1], [1], [0, 1, 1, 1], [], []>} : vector<16x256xbf16>, vector<16x256xbf16>, vector<256x256xf32> -> vector<256x256xf32>
    %c0_4 = arith.constant 0 : index
    %c0_5 = arith.constant 0 : index
    %12 = vector.load %arg2[%c0_4, %c0_5] : memref<256x256xf32, #tpu.memory_space<vmem>>, vector<256x256xf32>
    %13 = arith.mulf %11, %12 : vector<256x256xf32>
    %14 = math.exp %13 : vector<256x256xf32>
    %cst_6 = arith.constant dense<0.000000e+00> : vector<256xf32>
    %15 = vector.multi_reduction <add>, %14, %cst_6 [1] : vector<256x256xf32> to vector<256xf32>
    %16 = vector.shape_cast %15 : vector<256xf32> to vector<256x1xf32>
    %cst_7 = arith.constant dense<0.000000e+00> : vector<256xf32>
    %17 = vector.multi_reduction <add>, %14, %cst_7 [0] : vector<256x256xf32> to vector<256xf32>
    %18 = vector.shape_cast %17 : vector<256xf32> to vector<1x256xf32>
    %19 = arith.mulf %14, %14 : vector<256x256xf32>
    %20 = tpu.reciprocal %16 {approx = true} : vector<256x1xf32> -> vector<256x1xf32>
    %21 = vector.broadcast %20 : vector<256x1xf32> to vector<256x256xf32>
    %22 = arith.mulf %19, %21 : vector<256x256xf32>
    %23 = tpu.reciprocal %18 {approx = true} : vector<1x256xf32> -> vector<1x256xf32>
    %24 = vector.broadcast %23 : vector<1x256xf32> to vector<256x256xf32>
    %25 = arith.mulf %22, %24 : vector<256x256xf32>
    %26 = arith.truncf %25 : vector<256x256xf32> to vector<256x256xbf16>
    %c0_8 = arith.constant 0 : index
    %c0_9 = arith.constant 0 : index
    %c0_10 = arith.constant 0 : index
    %27 = vector.load %arg3[%c0_8, %c0_9, %c0_10] : memref<1x256x256xbf16, #tpu.memory_space<vmem>>, vector<1x256x256xbf16>
    %28 = vector.shape_cast %27 : vector<1x256x256xbf16> to vector<256x256xbf16>
    %29 = vector.shape_cast %26 : vector<256x256xbf16> to vector<1x256x256xbf16>
    tpu.vector_store %arg3[%c0_8, %c0_9, %c0_10], %29 {strides = array<i32>} : memref<1x256x256xbf16, #tpu.memory_space<vmem>>, vector<1x256x256xbf16>,
    return
  }
  func.func @transform_0(%arg0: i32) -> (i32, i32, i32) {
    %c0_i32 = arith.constant 0 : i32
    %c0_i32_0 = arith.constant 0 : i32
    %c0_i32_1 = arith.constant 0 : i32
    return %arg0, %c0_i32, %c0_i32_0 : i32, i32, i32
  }
  func.func @transform_1(%arg0: i32) -> (i32, i32) {
    %c0_i32 = arith.constant 0 : i32
    %c0_i32_0 = arith.constant 0 : i32
    %c0_i32_1 = arith.constant 0 : i32
    return %c0_i32, %c0_i32_0 : i32, i32
  }
  func.func @transform_2(%arg0: i32) -> (i32, i32, i32) {
    %c0_i32 = arith.constant 0 : i32
    %c0_i32_0 = arith.constant 0 : i32
    %c0_i32_1 = arith.constant 0 : i32
    return %arg0, %c0_i32, %c0_i32_0 : i32, i32, i32
  }
}

module attributes {stable_mosaic.version = 11 : i64} {
  func.func @_fgm_kernel(%arg0: i32, %arg1: memref<1x8x256xf32, #tpu.memory_space<vmem>>, %arg2: memref<8x8xf32, #tpu.memory_space<vmem>>, %arg3: memref<8x1xf32, #tpu.memory_space<vmem>>, %arg4: memref<8x8xf32, #tpu.memory_space<vmem>>, %arg5: memref<8x8xf32, #tpu.memory_space<vmem>>, %arg6: memref<8x1xf32, #tpu.memory_space<vmem>>, %arg7: memref<1x8x256xf32, #tpu.memory_space<vmem>>) attributes {dimension_semantics = [#tpu.dimension_semantics<parallel>], iteration_bounds = array<i64: 2>, scalar_prefetch = 0 : i64, scratch_operands = 0 : i64, tpu.core_type = #tpu.core_type<tc>, window_params = [{transform_indices = @transform_0, window_bounds = array<i64: 1, 8, 256>}, {pipeline_mode = #tpu.pipeline_mode<synchronous>, transform_indices = @transform_1, window_bounds = array<i64: 8, 8>}, {pipeline_mode = #tpu.pipeline_mode<synchronous>, transform_indices = @transform_2, window_bounds = array<i64: 8, 1>}, {pipeline_mode = #tpu.pipeline_mode<synchronous>, transform_indices = @transform_3, window_bounds = array<i64: 8, 8>}, {pipeline_mode = #tpu.pipeline_mode<synchronous>, transform_indices = @transform_4, window_bounds = array<i64: 8, 8>}, {pipeline_mode = #tpu.pipeline_mode<synchronous>, transform_indices = @transform_5, window_bounds = array<i64: 8, 1>}, {transform_indices = @transform_6, window_bounds = array<i64: 1, 8, 256>}]} {
    %c0 = arith.constant 0 : index
    %c0_0 = arith.constant 0 : index
    %c0_1 = arith.constant 0 : index
    %0 = vector.load %arg1[%c0, %c0_0, %c0_1] : memref<1x8x256xf32, #tpu.memory_space<vmem>>, vector<1x8x256xf32>
    %1 = vector.shape_cast %0 : vector<1x8x256xf32> to vector<8x256xf32>
    %c0_2 = arith.constant 0 : index
    %c0_3 = arith.constant 0 : index
    %2 = vector.load %arg2[%c0_2, %c0_3] : memref<8x8xf32, #tpu.memory_space<vmem>>, vector<8x8xf32>
    %cst = arith.constant dense<0.000000e+00> : vector<8x256xf32>
    %3 = tpu.matmul %2, %1, %cst {dimension_numbers = #tpu.dot_dimension_numbers<[1], [0], [0], [1], [0, 0, 1, 1], [], []>} : vector<8x8xf32>, vector<8x256xf32>, vector<8x256xf32> -> vector<8x256xf32>
    %c0_4 = arith.constant 0 : index
    %c0_5 = arith.constant 0 : index
    %4 = vector.load %arg3[%c0_4, %c0_5] : memref<8x1xf32, #tpu.memory_space<vmem>>, vector<8x1xf32>
    %5 = vector.broadcast %4 : vector<8x1xf32> to vector<8x256xf32>
    %6 = arith.addf %3, %5 : vector<8x256xf32>
    %cst_6 = arith.constant 0.000000e+00 : f32
    %7 = vector.broadcast %cst_6 : f32 to vector<8x256xf32>
    %8 = arith.maximumf %6, %7 : vector<8x256xf32>
    %cst_7 = arith.constant dense<0.000000e+00> : vector<8xf32>
    %9 = vector.multi_reduction <add>, %8, %cst_7 [1] : vector<8x256xf32> to vector<8xf32>
    %10 = vector.shape_cast %9 : vector<8xf32> to vector<8x1xf32>
    %cst_8 = arith.constant 2.560000e+02 : f32
    %11 = vector.broadcast %cst_8 : f32 to vector<8x1xf32>
    %12 = arith.divf %10, %11 : vector<8x1xf32>
    %c0_9 = arith.constant 0 : index
    %c0_10 = arith.constant 0 : index
    %13 = vector.load %arg4[%c0_9, %c0_10] : memref<8x8xf32, #tpu.memory_space<vmem>>, vector<8x8xf32>
    %cst_11 = arith.constant dense<0.000000e+00> : vector<8x1xf32>
    %14 = tpu.matmul %13, %12, %cst_11 {dimension_numbers = #tpu.dot_dimension_numbers<[1], [0], [0], [1], [0, 0, 1, 1], [], []>} : vector<8x8xf32>, vector<8x1xf32>, vector<8x1xf32> -> vector<8x1xf32>
    %cst_12 = arith.constant 5.000000e-01 : f32
    %15 = vector.broadcast %cst_12 : f32 to vector<8x1xf32>
    %16 = arith.mulf %15, %14 : vector<8x1xf32>
    %17 = math.tanh %16 : vector<8x1xf32>
    %cst_13 = arith.constant 1.000000e+00 : f32
    %18 = vector.broadcast %cst_13 : f32 to vector<8x1xf32>
    %19 = arith.addf %17, %18 : vector<8x1xf32>
    %cst_14 = arith.constant 5.000000e-01 : f32
    %20 = vector.broadcast %cst_14 : f32 to vector<8x1xf32>
    %21 = arith.mulf %20, %19 : vector<8x1xf32>
    %c0_15 = arith.constant 0 : index
    %c0_16 = arith.constant 0 : index
    %22 = vector.load %arg5[%c0_15, %c0_16] : memref<8x8xf32, #tpu.memory_space<vmem>>, vector<8x8xf32>
    %23 = vector.broadcast %21 : vector<8x1xf32> to vector<8x256xf32>
    %24 = arith.mulf %8, %23 : vector<8x256xf32>
    %cst_17 = arith.constant dense<0.000000e+00> : vector<8x256xf32>
    %25 = tpu.matmul %22, %24, %cst_17 {dimension_numbers = #tpu.dot_dimension_numbers<[1], [0], [0], [1], [0, 0, 1, 1], [], []>} : vector<8x8xf32>, vector<8x256xf32>, vector<8x256xf32> -> vector<8x256xf32>
    %c0_18 = arith.constant 0 : index
    %c0_19 = arith.constant 0 : index
    %26 = vector.load %arg6[%c0_18, %c0_19] : memref<8x1xf32, #tpu.memory_space<vmem>>, vector<8x1xf32>
    %27 = vector.broadcast %26 : vector<8x1xf32> to vector<8x256xf32>
    %28 = arith.addf %25, %27 : vector<8x256xf32>
    %cst_20 = arith.constant 0.000000e+00 : f32
    %29 = vector.broadcast %cst_20 : f32 to vector<8x256xf32>
    %30 = arith.maximumf %28, %29 : vector<8x256xf32>
    %c0_21 = arith.constant 0 : index
    %c0_22 = arith.constant 0 : index
    %c0_23 = arith.constant 0 : index
    %31 = vector.load %arg7[%c0_21, %c0_22, %c0_23] : memref<1x8x256xf32, #tpu.memory_space<vmem>>, vector<1x8x256xf32>
    %32 = vector.shape_cast %31 : vector<1x8x256xf32> to vector<8x256xf32>
    %33 = vector.shape_cast %30 : vector<8x256xf32> to vector<1x8x256xf32>
    tpu.vector_store %arg7[%c0_21, %c0_22, %c0_23], %33 {strides = array<i32>} : memref<1x8x256xf32, #tpu.memory_space<vmem>>, vector<1x8x256xf32>,
    return
  }
  func.func @transform_0(%arg0: i32) -> (i32, i32, i32) {
    %c0_i32 = arith.constant 0 : i32
    %c0_i32_0 = arith.constant 0 : i32
    %c0_i32_1 = arith.constant 0 : i32
    return %arg0, %c0_i32, %c0_i32_0 : i32, i32, i32
  }
  func.func @transform_1(%arg0: i32) -> (i32, i32) {
    %c0_i32 = arith.constant 0 : i32
    %c0_i32_0 = arith.constant 0 : i32
    %c0_i32_1 = arith.constant 0 : i32
    return %c0_i32, %c0_i32_0 : i32, i32
  }
  func.func @transform_2(%arg0: i32) -> (i32, i32) {
    %c0_i32 = arith.constant 0 : i32
    %c0_i32_0 = arith.constant 0 : i32
    %c0_i32_1 = arith.constant 0 : i32
    return %c0_i32, %c0_i32_0 : i32, i32
  }
  func.func @transform_3(%arg0: i32) -> (i32, i32) {
    %c0_i32 = arith.constant 0 : i32
    %c0_i32_0 = arith.constant 0 : i32
    %c0_i32_1 = arith.constant 0 : i32
    return %c0_i32, %c0_i32_0 : i32, i32
  }
  func.func @transform_4(%arg0: i32) -> (i32, i32) {
    %c0_i32 = arith.constant 0 : i32
    %c0_i32_0 = arith.constant 0 : i32
    %c0_i32_1 = arith.constant 0 : i32
    return %c0_i32, %c0_i32_0 : i32, i32
  }
  func.func @transform_5(%arg0: i32) -> (i32, i32) {
    %c0_i32 = arith.constant 0 : i32
    %c0_i32_0 = arith.constant 0 : i32
    %c0_i32_1 = arith.constant 0 : i32
    return %c0_i32, %c0_i32_0 : i32, i32
  }
  func.func @transform_6(%arg0: i32) -> (i32, i32, i32) {
    %c0_i32 = arith.constant 0 : i32
    %c0_i32_0 = arith.constant 0 : i32
    %c0_i32_1 = arith.constant 0 : i32
    return %arg0, %c0_i32, %c0_i32_0 : i32, i32, i32
  }
}

module attributes {stable_mosaic.version = 11 : i64} {
  func.func @kernel(%arg0: i32, %arg1: i32, %arg2: memref<1x72x256xbf16, #tpu.memory_space<vmem>>, %arg3: memref<16x72xbf16, #tpu.memory_space<vmem>>, %arg4: memref<16x1xf32, #tpu.memory_space<vmem>>, %arg5: memref<1x16x256xbf16, #tpu.memory_space<vmem>>) attributes {dimension_semantics = [#tpu.dimension_semantics<parallel>, #tpu.dimension_semantics<parallel>], iteration_bounds = array<i64: 2, 1>, scalar_prefetch = 0 : i64, scratch_operands = 0 : i64, tpu.core_type = #tpu.core_type<tc>, window_params = [{transform_indices = @transform_0, window_bounds = array<i64: 1, 72, 256>}, {pipeline_mode = #tpu.pipeline_mode<synchronous>, transform_indices = @transform_1, window_bounds = array<i64: 16, 72>}, {pipeline_mode = #tpu.pipeline_mode<synchronous>, transform_indices = @transform_2, window_bounds = array<i64: 16, 1>}, {transform_indices = @transform_3, window_bounds = array<i64: 1, 16, 256>}]} {
    %c0 = arith.constant 0 : index
    %c0_0 = arith.constant 0 : index
    %0 = vector.load %arg3[%c0, %c0_0] : memref<16x72xbf16, #tpu.memory_space<vmem>>, vector<16x72xbf16>
    %c0_1 = arith.constant 0 : index
    %c0_2 = arith.constant 0 : index
    %c0_3 = arith.constant 0 : index
    %1 = vector.load %arg2[%c0_1, %c0_2, %c0_3] : memref<1x72x256xbf16, #tpu.memory_space<vmem>>, vector<1x72x256xbf16>
    %2 = vector.shape_cast %1 : vector<1x72x256xbf16> to vector<72x256xbf16>
    %cst = arith.constant dense<0.000000e+00> : vector<16x256xf32>
    %3 = tpu.matmul %0, %2, %cst {dimension_numbers = #tpu.dot_dimension_numbers<[1], [0], [0], [1], [0, 0, 1, 1], [], []>} : vector<16x72xbf16>, vector<72x256xbf16>, vector<16x256xf32> -> vector<16x256xf32>
    %c0_4 = arith.constant 0 : index
    %c0_5 = arith.constant 0 : index
    %4 = vector.load %arg4[%c0_4, %c0_5] : memref<16x1xf32, #tpu.memory_space<vmem>>, vector<16x1xf32>
    %5 = vector.broadcast %4 : vector<16x1xf32> to vector<16x256xf32>
    %6 = arith.addf %3, %5 : vector<16x256xf32>
    %cst_6 = arith.constant 0.000000e+00 : f32
    %7 = vector.broadcast %cst_6 : f32 to vector<16x256xf32>
    %8 = arith.maximumf %6, %7 : vector<16x256xf32>
    %9 = arith.truncf %8 : vector<16x256xf32> to vector<16x256xbf16>
    %c0_7 = arith.constant 0 : index
    %c0_8 = arith.constant 0 : index
    %c0_9 = arith.constant 0 : index
    %10 = vector.load %arg5[%c0_7, %c0_8, %c0_9] : memref<1x16x256xbf16, #tpu.memory_space<vmem>>, vector<1x16x256xbf16>
    %11 = vector.shape_cast %10 : vector<1x16x256xbf16> to vector<16x256xbf16>
    %12 = vector.shape_cast %9 : vector<16x256xbf16> to vector<1x16x256xbf16>
    tpu.vector_store %arg5[%c0_7, %c0_8, %c0_9], %12 {strides = array<i32>} : memref<1x16x256xbf16, #tpu.memory_space<vmem>>, vector<1x16x256xbf16>,
    return
  }
  func.func @transform_0(%arg0: i32, %arg1: i32) -> (i32, i32, i32) {
    %c0_i32 = arith.constant 0 : i32
    %c0_i32_0 = arith.constant 0 : i32
    return %arg0, %c0_i32, %arg1 : i32, i32, i32
  }
  func.func @transform_1(%arg0: i32, %arg1: i32) -> (i32, i32) {
    %c0_i32 = arith.constant 0 : i32
    %c0_i32_0 = arith.constant 0 : i32
    %c0_i32_1 = arith.constant 0 : i32
    return %c0_i32, %c0_i32_0 : i32, i32
  }
  func.func @transform_2(%arg0: i32, %arg1: i32) -> (i32, i32) {
    %c0_i32 = arith.constant 0 : i32
    %c0_i32_0 = arith.constant 0 : i32
    %c0_i32_1 = arith.constant 0 : i32
    return %c0_i32, %c0_i32_0 : i32, i32
  }
  func.func @transform_3(%arg0: i32, %arg1: i32) -> (i32, i32, i32) {
    %c0_i32 = arith.constant 0 : i32
    %c0_i32_0 = arith.constant 0 : i32
    return %arg0, %c0_i32, %arg1 : i32, i32, i32
  }
}

module attributes {stable_mosaic.version = 11 : i64} {
  func.func @kernel(%arg0: i32, %arg1: i32, %arg2: memref<1x144x256xbf16, #tpu.memory_space<vmem>>, %arg3: memref<16x144xbf16, #tpu.memory_space<vmem>>, %arg4: memref<16x1xf32, #tpu.memory_space<vmem>>, %arg5: memref<1x16x256xbf16, #tpu.memory_space<vmem>>) attributes {dimension_semantics = [#tpu.dimension_semantics<parallel>, #tpu.dimension_semantics<parallel>], iteration_bounds = array<i64: 2, 1>, scalar_prefetch = 0 : i64, scratch_operands = 0 : i64, tpu.core_type = #tpu.core_type<tc>, window_params = [{transform_indices = @transform_0, window_bounds = array<i64: 1, 144, 256>}, {pipeline_mode = #tpu.pipeline_mode<synchronous>, transform_indices = @transform_1, window_bounds = array<i64: 16, 144>}, {pipeline_mode = #tpu.pipeline_mode<synchronous>, transform_indices = @transform_2, window_bounds = array<i64: 16, 1>}, {transform_indices = @transform_3, window_bounds = array<i64: 1, 16, 256>}]} {
    %c0 = arith.constant 0 : index
    %c0_0 = arith.constant 0 : index
    %0 = vector.load %arg3[%c0, %c0_0] : memref<16x144xbf16, #tpu.memory_space<vmem>>, vector<16x144xbf16>
    %c0_1 = arith.constant 0 : index
    %c0_2 = arith.constant 0 : index
    %c0_3 = arith.constant 0 : index
    %1 = vector.load %arg2[%c0_1, %c0_2, %c0_3] : memref<1x144x256xbf16, #tpu.memory_space<vmem>>, vector<1x144x256xbf16>
    %2 = vector.shape_cast %1 : vector<1x144x256xbf16> to vector<144x256xbf16>
    %cst = arith.constant dense<0.000000e+00> : vector<16x256xf32>
    %3 = tpu.matmul %0, %2, %cst {dimension_numbers = #tpu.dot_dimension_numbers<[1], [0], [0], [1], [0, 0, 1, 1], [], []>} : vector<16x144xbf16>, vector<144x256xbf16>, vector<16x256xf32> -> vector<16x256xf32>
    %c0_4 = arith.constant 0 : index
    %c0_5 = arith.constant 0 : index
    %4 = vector.load %arg4[%c0_4, %c0_5] : memref<16x1xf32, #tpu.memory_space<vmem>>, vector<16x1xf32>
    %5 = vector.broadcast %4 : vector<16x1xf32> to vector<16x256xf32>
    %6 = arith.addf %3, %5 : vector<16x256xf32>
    %cst_6 = arith.constant 0.000000e+00 : f32
    %7 = vector.broadcast %cst_6 : f32 to vector<16x256xf32>
    %8 = arith.maximumf %6, %7 : vector<16x256xf32>
    %9 = arith.truncf %8 : vector<16x256xf32> to vector<16x256xbf16>
    %c0_7 = arith.constant 0 : index
    %c0_8 = arith.constant 0 : index
    %c0_9 = arith.constant 0 : index
    %10 = vector.load %arg5[%c0_7, %c0_8, %c0_9] : memref<1x16x256xbf16, #tpu.memory_space<vmem>>, vector<1x16x256xbf16>
    %11 = vector.shape_cast %10 : vector<1x16x256xbf16> to vector<16x256xbf16>
    %12 = vector.shape_cast %9 : vector<16x256xbf16> to vector<1x16x256xbf16>
    tpu.vector_store %arg5[%c0_7, %c0_8, %c0_9], %12 {strides = array<i32>} : memref<1x16x256xbf16, #tpu.memory_space<vmem>>, vector<1x16x256xbf16>,
    return
  }
  func.func @transform_0(%arg0: i32, %arg1: i32) -> (i32, i32, i32) {
    %c0_i32 = arith.constant 0 : i32
    %c0_i32_0 = arith.constant 0 : i32
    return %arg0, %c0_i32, %arg1 : i32, i32, i32
  }
  func.func @transform_1(%arg0: i32, %arg1: i32) -> (i32, i32) {
    %c0_i32 = arith.constant 0 : i32
    %c0_i32_0 = arith.constant 0 : i32
    %c0_i32_1 = arith.constant 0 : i32
    return %c0_i32, %c0_i32_0 : i32, i32
  }
  func.func @transform_2(%arg0: i32, %arg1: i32) -> (i32, i32) {
    %c0_i32 = arith.constant 0 : i32
    %c0_i32_0 = arith.constant 0 : i32
    %c0_i32_1 = arith.constant 0 : i32
    return %c0_i32, %c0_i32_0 : i32, i32
  }
  func.func @transform_3(%arg0: i32, %arg1: i32) -> (i32, i32, i32) {
    %c0_i32 = arith.constant 0 : i32
    %c0_i32_0 = arith.constant 0 : i32
    return %arg0, %c0_i32, %arg1 : i32, i32, i32
  }
}

module attributes {stable_mosaic.version = 11 : i64} {
  func.func @kernel(%arg0: i32, %arg1: i32, %arg2: memref<1x16x256xbf16, #tpu.memory_space<vmem>>, %arg3: memref<1x144x256xbf16, #tpu.memory_space<vmem>>, %arg4: memref<1x144x256xbf16, #tpu.memory_space<vmem>>, %arg5: memref<8x16xbf16, #tpu.memory_space<vmem>>, %arg6: memref<8x144xbf16, #tpu.memory_space<vmem>>, %arg7: memref<8x16xbf16, #tpu.memory_space<vmem>>, %arg8: memref<8x16xbf16, #tpu.memory_space<vmem>>, %arg9: memref<4x8x1xf32, #tpu.memory_space<vmem>>, %arg10: memref<8x32xbf16, #tpu.memory_space<vmem>>, %arg11: memref<1x8x1xf32, #tpu.memory_space<vmem>>, %arg12: memref<1x144xbf16, #tpu.memory_space<vmem>>, %arg13: memref<1x1xf32, #tpu.memory_space<vmem>>, %arg14: memref<1x8x256xf32, #tpu.memory_space<vmem>>) attributes {dimension_semantics = [#tpu.dimension_semantics<parallel>, #tpu.dimension_semantics<parallel>], iteration_bounds = array<i64: 2, 1>, scalar_prefetch = 0 : i64, scratch_operands = 0 : i64, tpu.core_type = #tpu.core_type<tc>, window_params = [{transform_indices = @transform_0, window_bounds = array<i64: 1, 16, 256>}, {transform_indices = @transform_1, window_bounds = array<i64: 1, 144, 256>}, {transform_indices = @transform_2, window_bounds = array<i64: 1, 144, 256>}, {pipeline_mode = #tpu.pipeline_mode<synchronous>, transform_indices = @transform_3, window_bounds = array<i64: 8, 16>}, {pipeline_mode = #tpu.pipeline_mode<synchronous>, transform_indices = @transform_4, window_bounds = array<i64: 8, 144>}, {pipeline_mode = #tpu.pipeline_mode<synchronous>, transform_indices = @transform_5, window_bounds = array<i64: 8, 16>}, {pipeline_mode = #tpu.pipeline_mode<synchronous>, transform_indices = @transform_6, window_bounds = array<i64: 8, 16>}, {pipeline_mode = #tpu.pipeline_mode<synchronous>, transform_indices = @transform_7, window_bounds = array<i64: 4, 8, 1>}, {pipeline_mode = #tpu.pipeline_mode<synchronous>, transform_indices = @transform_8, window_bounds = array<i64: 8, 32>}, {transform_indices = @transform_9, window_bounds = array<i64: 1, 8, 1>}, {pipeline_mode = #tpu.pipeline_mode<synchronous>, transform_indices = @transform_10, window_bounds = array<i64: 1, 144>}, {pipeline_mode = #tpu.pipeline_mode<synchronous>, transform_indices = @transform_11, window_bounds = array<i64: 1, 1>}, {transform_indices = @transform_12, window_bounds = array<i64: 1, 8, 256>}]} {
    %c0 = arith.constant 0 : index
    %c0_0 = arith.constant 0 : index
    %c0_1 = arith.constant 0 : index
    %0 = vector.load %arg2[%c0, %c0_0, %c0_1] : memref<1x16x256xbf16, #tpu.memory_space<vmem>>, vector<1x16x256xbf16>
    %1 = vector.shape_cast %0 : vector<1x16x256xbf16> to vector<16x256xbf16>
    %c0_2 = arith.constant 0 : index
    %c0_3 = arith.constant 0 : index
    %c0_4 = arith.constant 0 : index
    %2 = vector.load %arg3[%c0_2, %c0_3, %c0_4] : memref<1x144x256xbf16, #tpu.memory_space<vmem>>, vector<1x144x256xbf16>
    %3 = vector.shape_cast %2 : vector<1x144x256xbf16> to vector<144x256xbf16>
    %c0_5 = arith.constant 0 : index
    %c0_6 = arith.constant 0 : index
    %4 = vector.load %arg5[%c0_5, %c0_6] : memref<8x16xbf16, #tpu.memory_space<vmem>>, vector<8x16xbf16>
    %cst = arith.constant dense<0.000000e+00> : vector<8x256xf32>
    %5 = tpu.matmul %4, %1, %cst {dimension_numbers = #tpu.dot_dimension_numbers<[1], [0], [0], [1], [0, 0, 1, 1], [], []>} : vector<8x16xbf16>, vector<16x256xbf16>, vector<8x256xf32> -> vector<8x256xf32>
    %c0_7 = arith.constant 0 : index
    %c0_8 = arith.constant 0 : index
    %c0_9 = arith.constant 0 : index
    %6 = vector.load %arg9[%c0_7, %c0_8, %c0_9] : memref<4x8x1xf32, #tpu.memory_space<vmem>>, vector<1x8x1xf32>
    %7 = vector.shape_cast %6 : vector<1x8x1xf32> to vector<8x1xf32>
    %8 = vector.broadcast %7 : vector<8x1xf32> to vector<8x256xf32>
    %9 = arith.addf %5, %8 : vector<8x256xf32>
    %cst_10 = arith.constant 0.000000e+00 : f32
    %10 = vector.broadcast %cst_10 : f32 to vector<8x256xf32>
    %11 = arith.maximumf %9, %10 : vector<8x256xf32>
    %c0_11 = arith.constant 0 : index
    %c0_12 = arith.constant 0 : index
    %12 = vector.load %arg6[%c0_11, %c0_12] : memref<8x144xbf16, #tpu.memory_space<vmem>>, vector<8x144xbf16>
    %cst_13 = arith.constant dense<0.000000e+00> : vector<8x256xf32>
    %13 = tpu.matmul %12, %3, %cst_13 {dimension_numbers = #tpu.dot_dimension_numbers<[1], [0], [0], [1], [0, 0, 1, 1], [], []>} : vector<8x144xbf16>, vector<144x256xbf16>, vector<8x256xf32> -> vector<8x256xf32>
    %c1 = arith.constant 1 : index
    %c0_14 = arith.constant 0 : index
    %c0_15 = arith.constant 0 : index
    %14 = vector.load %arg9[%c1, %c0_14, %c0_15] : memref<4x8x1xf32, #tpu.memory_space<vmem>>, vector<1x8x1xf32>
    %15 = vector.shape_cast %14 : vector<1x8x1xf32> to vector<8x1xf32>
    %16 = vector.broadcast %15 : vector<8x1xf32> to vector<8x256xf32>
    %17 = arith.addf %13, %16 : vector<8x256xf32>
    %cst_16 = arith.constant 0.000000e+00 : f32
    %18 = vector.broadcast %cst_16 : f32 to vector<8x256xf32>
    %19 = arith.maximumf %17, %18 : vector<8x256xf32>
    %c0_17 = arith.constant 0 : index
    %c0_18 = arith.constant 0 : index
    %20 = vector.load %arg7[%c0_17, %c0_18] : memref<8x16xbf16, #tpu.memory_space<vmem>>, vector<8x16xbf16>
    %cst_19 = arith.constant dense<0.000000e+00> : vector<8x256xf32>
    %21 = tpu.matmul %20, %1, %cst_19 {dimension_numbers = #tpu.dot_dimension_numbers<[1], [0], [0], [1], [0, 0, 1, 1], [], []>} : vector<8x16xbf16>, vector<16x256xbf16>, vector<8x256xf32> -> vector<8x256xf32>
    %c2 = arith.constant 2 : index
    %c0_20 = arith.constant 0 : index
    %c0_21 = arith.constant 0 : index
    %22 = vector.load %arg9[%c2, %c0_20, %c0_21] : memref<4x8x1xf32, #tpu.memory_space<vmem>>, vector<1x8x1xf32>
    %23 = vector.shape_cast %22 : vector<1x8x1xf32> to vector<8x1xf32>
    %24 = vector.broadcast %23 : vector<8x1xf32> to vector<8x256xf32>
    %25 = arith.addf %21, %24 : vector<8x256xf32>
    %cst_22 = arith.constant 0.000000e+00 : f32
    %26 = vector.broadcast %cst_22 : f32 to vector<8x256xf32>
    %27 = arith.maximumf %25, %26 : vector<8x256xf32>
    %c0_23 = arith.constant 0 : index
    %c0_24 = arith.constant 0 : index
    %28 = vector.load %arg8[%c0_23, %c0_24] : memref<8x16xbf16, #tpu.memory_space<vmem>>, vector<8x16xbf16>
    %cst_25 = arith.constant dense<0.000000e+00> : vector<8x256xf32>
    %29 = tpu.matmul %28, %1, %cst_25 {dimension_numbers = #tpu.dot_dimension_numbers<[1], [0], [0], [1], [0, 0, 1, 1], [], []>} : vector<8x16xbf16>, vector<16x256xbf16>, vector<8x256xf32> -> vector<8x256xf32>
    %c3 = arith.constant 3 : index
    %c0_26 = arith.constant 0 : index
    %c0_27 = arith.constant 0 : index
    %30 = vector.load %arg9[%c3, %c0_26, %c0_27] : memref<4x8x1xf32, #tpu.memory_space<vmem>>, vector<1x8x1xf32>
    %31 = vector.shape_cast %30 : vector<1x8x1xf32> to vector<8x1xf32>
    %32 = vector.broadcast %31 : vector<8x1xf32> to vector<8x256xf32>
    %33 = arith.addf %29, %32 : vector<8x256xf32>
    %cst_28 = arith.constant 0.000000e+00 : f32
    %34 = vector.broadcast %cst_28 : f32 to vector<8x256xf32>
    %35 = arith.maximumf %33, %34 : vector<8x256xf32>
    %36 = tpu.concatenate %11, %19, %27, %35 in 0 : vector<8x256xf32>, vector<8x256xf32>, vector<8x256xf32>, vector<8x256xf32> -> vector<32x256xf32>
    %37 = arith.truncf %36 : vector<32x256xf32> to vector<32x256xbf16>
    %c0_29 = arith.constant 0 : index
    %c0_30 = arith.constant 0 : index
    %38 = vector.load %arg10[%c0_29, %c0_30] : memref<8x32xbf16, #tpu.memory_space<vmem>>, vector<8x32xbf16>
    %cst_31 = arith.constant dense<0.000000e+00> : vector<8x256xf32>
    %39 = tpu.matmul %38, %37, %cst_31 {dimension_numbers = #tpu.dot_dimension_numbers<[1], [0], [0], [1], [0, 0, 1, 1], [], []>} : vector<8x32xbf16>, vector<32x256xbf16>, vector<8x256xf32> -> vector<8x256xf32>
    %c0_32 = arith.constant 0 : index
    %c0_33 = arith.constant 0 : index
    %c0_34 = arith.constant 0 : index
    %40 = vector.load %arg11[%c0_32, %c0_33, %c0_34] : memref<1x8x1xf32, #tpu.memory_space<vmem>>, vector<1x8x1xf32>
    %41 = vector.shape_cast %40 : vector<1x8x1xf32> to vector<8x1xf32>
    %42 = vector.broadcast %41 : vector<8x1xf32> to vector<8x256xf32>
    %43 = arith.addf %39, %42 : vector<8x256xf32>
    %cst_35 = arith.constant 0.000000e+00 : f32
    %44 = vector.broadcast %cst_35 : f32 to vector<8x256xf32>
    %45 = arith.maximumf %43, %44 : vector<8x256xf32>
    %c0_36 = arith.constant 0 : index
    %c0_37 = arith.constant 0 : index
    %46 = vector.load %arg12[%c0_36, %c0_37] : memref<1x144xbf16, #tpu.memory_space<vmem>>, vector<1x144xbf16>
    %c0_38 = arith.constant 0 : index
    %c0_39 = arith.constant 0 : index
    %c0_40 = arith.constant 0 : index
    %47 = vector.load %arg4[%c0_38, %c0_39, %c0_40] : memref<1x144x256xbf16, #tpu.memory_space<vmem>>, vector<1x144x256xbf16>
    %48 = vector.shape_cast %47 : vector<1x144x256xbf16> to vector<144x256xbf16>
    %cst_41 = arith.constant dense<0.000000e+00> : vector<1x256xf32>
    %49 = tpu.matmul %46, %48, %cst_41 {dimension_numbers = #tpu.dot_dimension_numbers<[1], [0], [0], [1], [0, 0, 1, 1], [], []>} : vector<1x144xbf16>, vector<144x256xbf16>, vector<1x256xf32> -> vector<1x256xf32>
    %c0_42 = arith.constant 0 : index
    %c0_43 = arith.constant 0 : index
    %50 = vector.load %arg13[%c0_42, %c0_43] : memref<1x1xf32, #tpu.memory_space<vmem>>, vector<1x1xf32>
    %51 = vector.broadcast %50 : vector<1x1xf32> to vector<1x256xf32>
    %52 = arith.addf %49, %51 : vector<1x256xf32>
    %cst_44 = arith.constant 5.000000e-01 : f32
    %53 = vector.broadcast %cst_44 : f32 to vector<1x256xf32>
    %54 = arith.mulf %53, %52 : vector<1x256xf32>
    %55 = math.tanh %54 : vector<1x256xf32>
    %cst_45 = arith.constant 1.000000e+00 : f32
    %56 = vector.broadcast %cst_45 : f32 to vector<1x256xf32>
    %57 = arith.addf %55, %56 : vector<1x256xf32>
    %cst_46 = arith.constant 5.000000e-01 : f32
    %58 = vector.broadcast %cst_46 : f32 to vector<1x256xf32>
    %59 = arith.mulf %58, %57 : vector<1x256xf32>
    %60 = vector.broadcast %59 : vector<1x256xf32> to vector<8x256xf32>
    %61 = arith.mulf %45, %60 : vector<8x256xf32>
    %c0_47 = arith.constant 0 : index
    %c0_48 = arith.constant 0 : index
    %c0_49 = arith.constant 0 : index
    %62 = vector.load %arg14[%c0_47, %c0_48, %c0_49] : memref<1x8x256xf32, #tpu.memory_space<vmem>>, vector<1x8x256xf32>
    %63 = vector.shape_cast %62 : vector<1x8x256xf32> to vector<8x256xf32>
    %64 = vector.shape_cast %61 : vector<8x256xf32> to vector<1x8x256xf32>
    tpu.vector_store %arg14[%c0_47, %c0_48, %c0_49], %64 {strides = array<i32>} : memref<1x8x256xf32, #tpu.memory_space<vmem>>, vector<1x8x256xf32>,
    return
  }
  func.func @transform_0(%arg0: i32, %arg1: i32) -> (i32, i32, i32) {
    %c0_i32 = arith.constant 0 : i32
    %c0_i32_0 = arith.constant 0 : i32
    return %arg0, %c0_i32, %arg1 : i32, i32, i32
  }
  func.func @transform_1(%arg0: i32, %arg1: i32) -> (i32, i32, i32) {
    %c0_i32 = arith.constant 0 : i32
    %c0_i32_0 = arith.constant 0 : i32
    return %arg0, %c0_i32, %arg1 : i32, i32, i32
  }
  func.func @transform_2(%arg0: i32, %arg1: i32) -> (i32, i32, i32) {
    %c0_i32 = arith.constant 0 : i32
    %c0_i32_0 = arith.constant 0 : i32
    return %arg0, %c0_i32, %arg1 : i32, i32, i32
  }
  func.func @transform_3(%arg0: i32, %arg1: i32) -> (i32, i32) {
    %c0_i32 = arith.constant 0 : i32
    %c0_i32_0 = arith.constant 0 : i32
    %c0_i32_1 = arith.constant 0 : i32
    return %c0_i32, %c0_i32_0 : i32, i32
  }
  func.func @transform_4(%arg0: i32, %arg1: i32) -> (i32, i32) {
    %c0_i32 = arith.constant 0 : i32
    %c0_i32_0 = arith.constant 0 : i32
    %c0_i32_1 = arith.constant 0 : i32
    return %c0_i32, %c0_i32_0 : i32, i32
  }
  func.func @transform_5(%arg0: i32, %arg1: i32) -> (i32, i32) {
    %c0_i32 = arith.constant 0 : i32
    %c0_i32_0 = arith.constant 0 : i32
    %c0_i32_1 = arith.constant 0 : i32
    return %c0_i32, %c0_i32_0 : i32, i32
  }
  func.func @transform_6(%arg0: i32, %arg1: i32) -> (i32, i32) {
    %c0_i32 = arith.constant 0 : i32
    %c0_i32_0 = arith.constant 0 : i32
    %c0_i32_1 = arith.constant 0 : i32
    return %c0_i32, %c0_i32_0 : i32, i32
  }
  func.func @transform_7(%arg0: i32, %arg1: i32) -> (i32, i32, i32) {
    %c0_i32 = arith.constant 0 : i32
    %c0_i32_0 = arith.constant 0 : i32
    %c0_i32_1 = arith.constant 0 : i32
    %c0_i32_2 = arith.constant 0 : i32
    return %c0_i32, %c0_i32_0, %c0_i32_1 : i32, i32, i32
  }
  func.func @transform_8(%arg0: i32, %arg1: i32) -> (i32, i32) {
    %c0_i32 = arith.constant 0 : i32
    %c0_i32_0 = arith.constant 0 : i32
    %c0_i32_1 = arith.constant 0 : i32
    return %c0_i32, %c0_i32_0 : i32, i32
  }
  func.func @transform_9(%arg0: i32, %arg1: i32) -> (i32, i32, i32) {
    %c0_i32 = arith.constant 0 : i32
    %c0_i32_0 = arith.constant 0 : i32
    %c0_i32_1 = arith.constant 0 : i32
    return %arg0, %c0_i32, %c0_i32_0 : i32, i32, i32
  }
  func.func @transform_10(%arg0: i32, %arg1: i32) -> (i32, i32) {
    %c0_i32 = arith.constant 0 : i32
    %c0_i32_0 = arith.constant 0 : i32
    %c0_i32_1 = arith.constant 0 : i32
    return %c0_i32, %c0_i32_0 : i32, i32
  }
  func.func @transform_11(%arg0: i32, %arg1: i32) -> (i32, i32) {
    %c0_i32 = arith.constant 0 : i32
    %c0_i32_0 = arith.constant 0 : i32
    %c0_i32_1 = arith.constant 0 : i32
    return %c0_i32, %c0_i32_0 : i32, i32
  }
  func.func @transform_12(%arg0: i32, %arg1: i32) -> (i32, i32, i32) {
    %c0_i32 = arith.constant 0 : i32
    %c0_i32_0 = arith.constant 0 : i32
    return %arg0, %c0_i32, %arg1 : i32, i32, i32
  }
}

module attributes {stable_mosaic.version = 11 : i64} {
  func.func @_global_grained_kernel(%arg0: i32, %arg1: memref<1x8x256xf32, #tpu.memory_space<vmem>>, %arg2: memref<1x256x256xbf16, #tpu.memory_space<vmem>>, %arg3: memref<1x8x256xf32, #tpu.memory_space<vmem>>) attributes {dimension_semantics = [#tpu.dimension_semantics<parallel>], iteration_bounds = array<i64: 2>, scalar_prefetch = 0 : i64, scratch_operands = 0 : i64, tpu.core_type = #tpu.core_type<tc>, window_params = [{transform_indices = @transform_0, window_bounds = array<i64: 1, 8, 256>}, {transform_indices = @transform_1, window_bounds = array<i64: 1, 256, 256>}, {transform_indices = @transform_2, window_bounds = array<i64: 1, 8, 256>}]} {
    %c0 = arith.constant 0 : index
    %c0_0 = arith.constant 0 : index
    %c0_1 = arith.constant 0 : index
    %0 = vector.load %arg2[%c0, %c0_0, %c0_1] : memref<1x256x256xbf16, #tpu.memory_space<vmem>>, vector<1x256x256xbf16>
    %1 = vector.shape_cast %0 : vector<1x256x256xbf16> to vector<256x256xbf16>
    %2 = arith.extf %1 : vector<256x256xbf16> to vector<256x256xf32>
    %cst = arith.constant dense<0.000000e+00> : vector<256xf32>
    %3 = vector.multi_reduction <add>, %2, %cst [0] : vector<256x256xf32> to vector<256xf32>
    %4 = vector.shape_cast %3 : vector<256xf32> to vector<1x256xf32>
    %cst_2 = arith.constant 9.99999993E-9 : f32
    %5 = vector.broadcast %cst_2 : f32 to vector<1x256xf32>
    %6 = arith.addf %4, %5 : vector<1x256xf32>
    %7 = tpu.reciprocal %6 {approx = true} : vector<1x256xf32> -> vector<1x256xf32>
    %8 = vector.broadcast %7 : vector<1x256xf32> to vector<256x256xf32>
    %9 = arith.mulf %2, %8 : vector<256x256xf32>
    %10 = arith.truncf %9 : vector<256x256xf32> to vector<256x256xbf16>
    %c0_3 = arith.constant 0 : index
    %c0_4 = arith.constant 0 : index
    %c0_5 = arith.constant 0 : index
    %11 = vector.load %arg1[%c0_3, %c0_4, %c0_5] : memref<1x8x256xf32, #tpu.memory_space<vmem>>, vector<1x8x256xf32>
    %12 = vector.shape_cast %11 : vector<1x8x256xf32> to vector<8x256xf32>
    %13 = arith.truncf %12 : vector<8x256xf32> to vector<8x256xbf16>
    %cst_6 = arith.constant dense<0.000000e+00> : vector<8x256xf32>
    %14 = tpu.matmul %13, %10, %cst_6 {dimension_numbers = #tpu.dot_dimension_numbers<[1], [0], [0], [1], [0, 0, 1, 1], [], []>} : vector<8x256xbf16>, vector<256x256xbf16>, vector<8x256xf32> -> vector<8x256xf32>
    %c0_7 = arith.constant 0 : index
    %c0_8 = arith.constant 0 : index
    %c0_9 = arith.constant 0 : index
    %15 = vector.load %arg3[%c0_7, %c0_8, %c0_9] : memref<1x8x256xf32, #tpu.memory_space<vmem>>, vector<1x8x256xf32>
    %16 = vector.shape_cast %15 : vector<1x8x256xf32> to vector<8x256xf32>
    %17 = vector.shape_cast %14 : vector<8x256xf32> to vector<1x8x256xf32>
    tpu.vector_store %arg3[%c0_7, %c0_8, %c0_9], %17 {strides = array<i32>} : memref<1x8x256xf32, #tpu.memory_space<vmem>>, vector<1x8x256xf32>,
    return
  }
  func.func @transform_0(%arg0: i32) -> (i32, i32, i32) {
    %c0_i32 = arith.constant 0 : i32
    %c0_i32_0 = arith.constant 0 : i32
    %c0_i32_1 = arith.constant 0 : i32
    return %arg0, %c0_i32, %c0_i32_0 : i32, i32, i32
  }
  func.func @transform_1(%arg0: i32) -> (i32, i32, i32) {
    %c0_i32 = arith.constant 0 : i32
    %c0_i32_0 = arith.constant 0 : i32
    %c0_i32_1 = arith.constant 0 : i32
    return %arg0, %c0_i32, %c0_i32_0 : i32, i32, i32
  }
  func.func @transform_2(%arg0: i32) -> (i32, i32, i32) {
    %c0_i32 = arith.constant 0 : i32
    %c0_i32_0 = arith.constant 0 : i32
    %c0_i32_1 = arith.constant 0 : i32
    return %arg0, %c0_i32, %c0_i32_0 : i32, i32, i32
  }
}

</mosaic_0001>

<llo_original>
// kernel: forward.6
$region0: #{forward.6}
  #allocation0 [shape = 'u32[]', space=smem, size = 0x4, offset = 0x4, fixed_abs, tag = 'smem constant byte address 0x4 - core index']
  #allocation1 [shape = 'u32[144,128]{1,0:T(1,128)}', space=vmem, size = 0x12000, scoped, tag = 'internal scratch']
  %s0 = inlined_call_operand.vmem [shape: f32[2,16,256], index: 0, kind: input, shape index: {}]
  %s1 = inlined_call_operand.vmem [shape: f32[256,256], index: 1, kind: input, shape index: {}]
  %s2 = inlined_call_operand.vmem [shape: bf16[2,256,256], index: 2, kind: output, shape index: {}]
  %s3 = sld [smem:[#allocation0]]
  $region41: #{forward.6} parent=0
    _
  %s5 = ssub.s32 1, %s3
  %s6 = scalar_select 0, %s5, %s3
  loop: start=0, step=1, limit=4
  $region2: #{forward.6} parent=0 // loop_pre_header
    _
  $region3: #{forward.6} parent=0 // loop_header
    %s8 = sphi 0, %s12
    %p9 = scmp.ge.s32.totalorder %s8, 4
    %s18 = sphi 0, %s20
    %s21 = sphi 0, %s18
    %s22 = sphi 0, %s21
    %s38 = sphi 0, %s22
    %s42 = sphi 0, %s42
    %s44 = sphi 0, %s42
    %s45 = sphi 0, %s44
    %s59 = sphi 0, %s45
    %s65 = sphi 0, %s67
    %s68 = sphi 0, %s65
    %s69 = sphi 0, %s68
    %s85 = sphi 0, %s69
  $region4: #{forward.6} parent=0 // loop_header_branch
    %11 = sbr.rel (%p9) target = $region8
  $region5: #{forward.6} parent=0 // loop_body
    %s13 = ssub.s32 %s8, 1
    %s14 = ssub.s32 %s8, 2
    %s15 = sadd.s32 %s8, 1
    %s16 = ssub.s32 %s8, %s15
    %p17 = scmp.eq.s32.totalorder %s16, 0
    %s19 = sadd.s32 %s18, 1
    %s20 = scalar_select %p17, %s18, %s19
    %p23 = pneg %p17
    %p24 = scmp.eq.s32.totalorder %s8, 1
    %p25 = por %p23, %p24
    %p26 = scmp.ne.s32.totalorder %s18, %s21
    %p27 = scmp.eq.s32.totalorder %s8, 0
    %p28 = por %p26, %p27
    %p29 = scmp.ne.s32.totalorder %s18, %s21
    %p30 = scmp.eq.s32.totalorder %s13, 1
    %p31 = por %p29, %p30
    %p32 = scmp.ne.s32.totalorder %s21, %s22
    %p33 = scmp.eq.s32.totalorder %s13, 0
    %p34 = por %p32, %p33
    %p35 = scmp.ne.s32.totalorder %s21, %s22
    %p36 = scmp.eq.s32.totalorder %s14, 1
    %p37 = por %p35, %p36
    %p39 = scmp.ne.s32.totalorder %s22, %s38
    %p40 = scmp.eq.s32.totalorder %s14, 0
    %p41 = por %p39, %p40
    %s43 = sadd.s32 %s42, 1
    %p46 = scmp.eq.s32.totalorder %s8, 1
    %p47 = scmp.ne.s32.totalorder %s42, %s44
    %p48 = scmp.eq.s32.totalorder %s8, 0
    %p49 = por %p47, %p48
    %p50 = scmp.ne.s32.totalorder %s42, %s44
    %p51 = scmp.eq.s32.totalorder %s13, 1
    %p52 = por %p50, %p51
    %p53 = scmp.ne.s32.totalorder %s44, %s45
    %p54 = scmp.eq.s32.totalorder %s13, 0
    %p55 = por %p53, %p54
    %p56 = scmp.ne.s32.totalorder %s44, %s45
    %p57 = scmp.eq.s32.totalorder %s14, 1
    %p58 = por %p56, %p57
    %p60 = scmp.ne.s32.totalorder %s45, %s59
    %p61 = scmp.eq.s32.totalorder %s14, 0
    %p62 = por %p60, %p61
    %s63 = ssub.s32 %s8, %s15
    %p64 = scmp.eq.s32.totalorder %s63, 0
    %s66 = sadd.s32 %s65, 1
    %s67 = scalar_select %p64, %s65, %s66
    %p70 = pneg %p64
    %p71 = scmp.eq.s32.totalorder %s8, 1
    %p72 = por %p70, %p71
    %p73 = scmp.ne.s32.totalorder %s65, %s68
    %p74 = scmp.eq.s32.totalorder %s8, 0
    %p75 = por %p73, %p74
    %p76 = scmp.ne.s32.totalorder %s65, %s68
    %p77 = scmp.eq.s32.totalorder %s13, 1
    %p78 = por %p76, %p77
    %p79 = scmp.ne.s32.totalorder %s68, %s69
    %p80 = scmp.eq.s32.totalorder %s13, 0
    %p81 = por %p79, %p80
    %p82 = scmp.ne.s32.totalorder %s68, %s69
    %p83 = scmp.eq.s32.totalorder %s14, 1
    %p84 = por %p82, %p83
    %p86 = scmp.ne.s32.totalorder %s69, %s85
    %p87 = scmp.eq.s32.totalorder %s14, 0
    %p88 = por %p86, %p87
    %p89 = scmp.le.s32.totalorder 1, %s8
    %p90 = scmp.lt.s32.totalorder %s8, 3
    %p91 = pnand %p89, %p90
    %p92 = pneg %p91
    // Predicated region
    $region9: #{forward.6} parent=5 // pred_check
      _
    $region10: #{forward.6} parent=5 // pred_check_branch
      %94 = sbr.rel (%p91) target = $region12
    $region11: #{forward.6} parent=5 // pred_region
      %s95 = ssub.s32 %s8, 1
      // Predicated region
      $region13: #{forward.6} parent=11 // pred_check
        %p96 = pneg %p55
      $region14: #{forward.6} parent=11 // pred_check_branch
        %98 = sbr.rel (%p96) target = $region16
      $region15: #{forward.6} parent=11 // pred_region
        _
      $region16: #{forward.6} parent=11 // pred_fallthru
        _
    $region12: #{forward.6} parent=5 // pred_fallthru
      _
    %p99 = scmp.lt.s32.totalorder %s8, 2
    // Predicated region
    $region17: #{forward.6} parent=5 // pred_check
      %p100 = pneg %p99
    $region18: #{forward.6} parent=5 // pred_check_branch
      %102 = sbr.rel (%p100) target = $region20
    $region19: #{forward.6} parent=5 // pred_region
      // Predicated region
      $region21: #{forward.6} parent=19 // pred_check
        %p103 = pneg %p28
      $region22: #{forward.6} parent=19 // pred_check_branch
        %105 = sbr.rel (%p103) target = $region24
      $region23: #{forward.6} parent=19 // pred_region
        %p106 = scmp.lt.s32.totalorder %s8, 1
        %s107 = scalar_select %p106, %s8, 1
        %s108 = smul.addr %s107, 4
        %s109 = smul.addr %s108, 8
        %s110 = scalar_lea.vmem %s0, %s109
      $region24: #{forward.6} parent=19 // pred_fallthru
        _
    $region20: #{forward.6} parent=5 // pred_fallthru
      _
    %p111 = scmp.le.s32.totalorder 1, %s8
    %p112 = scmp.lt.s32.totalorder %s8, 3
    %p113 = pnand %p111, %p112
    %p114 = pneg %p113
    // Predicated region
    $region25: #{forward.6} parent=5 // pred_check
      _
    $region26: #{forward.6} parent=5 // pred_check_branch
      %116 = sbr.rel (%p113) target = $region28
    $region27: #{forward.6} parent=5 // pred_region
      %s117 = ssub.s32 %s8, 1
      %p118 = scmp.lt.s32.totalorder %s13, 1
      %s119 = scalar_select %p118, %s13, 1
      %s120 = smul.addr %s119, 4
      %s121 = smul.addr %s120, 8
      %s122 = scalar_lea.vmem %s0, %s121
      %p123 = pneg %p34
      %p124 = pneg %p31
      %p125 = pneg %p55
      %p126 = pneg %p52
      %p127 = pneg %p81
      %p128 = pneg %p78
      %p129 = scmp.lt.s32.totalorder %s13, 1
      %s130 = scalar_select %p129, %s13, 1
      %s131 = smul.addr %s130, 64
      %s132 = smul.addr %s131, 4
      %s133 = scalar_lea.vmem %s2, %s132
      %p134 = scmp.lt.s32.totalorder %s13, 1
      %s135 = scalar_select %p134, %s13, 1
      %s136 = smul.addr %s135, 4
      %s137 = smul.addr %s136, 8
      %s138 = scalar_lea.vmem %s0, %s137
      %p139 = scmp.lt.s32.totalorder %s13, 1
      %s140 = scalar_select %p139, %s13, 1
      %s141 = smul.addr %s140, 64
      %s142 = smul.addr %s141, 4
      %s143 = scalar_lea.vmem %s2, %s142
      %v145 = vld [vmem:[%s138] sm:$0xff]
      %v146 = vld [vmem:[%s138 + $0x8] sm:$0xff]
      %v147 = vld [vmem:[%s138 + $0x10] sm:$0xff]
      %v148 = vld [vmem:[%s138 + $0x18] sm:$0xff]
      %v149 = vmul.f32 %v145, %v145
      %v150 = vmul.f32 %v146, %v146
      %v151 = vmul.f32 %v147, %v147
      %v152 = vmul.f32 %v148, %v148
      %v153 = vadd.f32 %v149, %v151
      %v154 = vrot.slane %v153, 4
      %v155 = vadd.f32 %v153, %v154
      %v156 = vrot.slane %v155, 2
      %v157 = vadd.f32 %v155, %v156
      %v158 = vrot.slane %v157, 1
      %v159 = vadd.f32 %v157, %v158
      %v160 = vadd.f32 %v150, %v152
      %v161 = vrot.slane %v160, 4
      %v162 = vadd.f32 %v160, %v161
      %v163 = vrot.slane %v162, 2
      %v164 = vadd.f32 %v162, %v163
      %v165 = vrot.slane %v164, 1
      %v166 = vadd.f32 %v164, %v165
      %v167 = vmax.f32 %v159, 1e-24
      %v168 = vmax.f32 %v166, 1e-24
      %v169 = vrsqrt.pop %v167
      %v170 = vrsqrt.pop %v168
      %v171 = vmul.f32 %v145, %v169
      %v172 = vmul.f32 %v146, %v170
      %v173 = vmul.f32 %v147, %v169
      %v174 = vmul.f32 %v148, %v170
      %v175 = vpack.c.bf16 %v173, %v171
      %v176 = vpack.c.bf16 %v174, %v172
      %177 = vxpose.xlu0.c.b16.start [1/8] %v175, 128
      %178 = vxpose.xlu0.c.b16.cont [2/8] 0, 128
      %179 = vxpose.xlu0.c.b16.cont [3/8] 0, 128
      %180 = vxpose.xlu0.c.b16.cont [4/8] 0, 128
      %181 = vxpose.xlu0.c.b16.cont [5/8] 0, 128
      %182 = vxpose.xlu0.c.b16.cont [6/8] 0, 128
      %183 = vxpose.xlu0.c.b16.cont [7/8] 0, 128
      %184 = vxpose.xlu0.c.b16.end [8/8] 0, 128
      %v185 = vpop.trf.xlu0
      %v186 = vpop.trf.xlu0
      %v187 = vpop.trf.xlu0
      %v188 = vpop.trf.xlu0
      %v189 = vpop.trf.xlu0
      %v190 = vpop.trf.xlu0
      %v191 = vpop.trf.xlu0
      %v192 = vpop.trf.xlu0
      %193 = vxpose.xlu0.c.b16.start [1/8] %v176, 128
      %194 = vxpose.xlu0.c.b16.cont [2/8] 0, 128
      %195 = vxpose.xlu0.c.b16.cont [3/8] 0, 128
      %196 = vxpose.xlu0.c.b16.cont [4/8] 0, 128
      %197 = vxpose.xlu0.c.b16.cont [5/8] 0, 128
      %198 = vxpose.xlu0.c.b16.cont [6/8] 0, 128
      %199 = vxpose.xlu0.c.b16.cont [7/8] 0, 128
      %200 = vxpose.xlu0.c.b16.end [8/8] 0, 128
      %v201 = vpop.trf.xlu0
      %v202 = vpop.trf.xlu0
      %v203 = vpop.trf.xlu0
      %v204 = vpop.trf.xlu0
      %v205 = vpop.trf.xlu0
      %v206 = vpop.trf.xlu0
      %v207 = vpop.trf.xlu0
      %v208 = vpop.trf.xlu0
      %vm209 = vcmask 130048
      %v211 = vsel %vm209, %v185, 0
      %v214 = vsel %vm209, %v186, 0
      %v217 = vsel %vm209, %v187, 0
      %v220 = vsel %vm209, %v188, 0
      %v223 = vsel %vm209, %v189, 0
      %v226 = vsel %vm209, %v190, 0
      %v229 = vsel %vm209, %v191, 0
      %v232 = vsel %vm209, %v192, 0
      %v235 = vsel %vm209, %v201, 0
      %v238 = vsel %vm209, %v202, 0
      %v241 = vsel %vm209, %v203, 0
      %v244 = vsel %vm209, %v204, 0
      %v247 = vsel %vm209, %v205, 0
      %v250 = vsel %vm209, %v206, 0
      %v253 = vsel %vm209, %v207, 0
      %v256 = vsel %vm209, %v208, 0
      %258 = vmatprep.subr.bf16.mxu0 %v176
      %259 = vmatpush1.bf16.msra.mxu0 %v175
      %260 = vmatprep.subr.bf16.mxu0 0
      %261 = vmatpush1.bf16.msra.mxu0 0
      %262 = vmatprep.subr.bf16.mxu0 0
      %263 = vmatpush1.bf16.msra.mxu0 0
      %264 = vmatprep.subr.bf16.mxu0 0
      %265 = vmatpush1.bf16.msra.mxu0 0
      %266 = vmatprep.subr.bf16.mxu0 0
      %267 = vmatpush1.bf16.msra.mxu0 0
      %268 = vmatprep.subr.bf16.mxu0 0
      %269 = vmatpush1.bf16.msra.mxu0 0
      %270 = vmatprep.subr.bf16.mxu0 0
      %271 = vmatpush1.bf16.msra.mxu0 0
      %272 = vmatprep.subr.bf16.mxu0 0
      %273 = vmatpush1.bf16.msra.mxu0 0
      %274 = vmatprep.subr.bf16.mxu0 0
      %275 = vmatpush1.bf16.msra.mxu0 0
      %276 = vmatprep.subr.bf16.mxu0 0
      %277 = vmatpush1.bf16.msra.mxu0 0
      %278 = vmatprep.subr.bf16.mxu0 0
      %279 = vmatpush1.bf16.msra.mxu0 0
      %280 = vmatprep.subr.bf16.mxu0 0
      %281 = vmatpush1.bf16.msra.mxu0 0
      %282 = vmatprep.subr.bf16.mxu0 0
      %283 = vmatpush1.bf16.msra.mxu0 0
      %284 = vmatprep.subr.bf16.mxu0 0
      %285 = vmatpush1.bf16.msra.mxu0 0
      %286 = vmatprep.subr.bf16.mxu0 0
      %287 = vmatpush1.bf16.msra.mxu0 0
      %288 = vmatprep.subr.bf16.mxu0 0
      %289 = vmatpush1.bf16.msra.mxu0 0
      %290 = vmatprep.mubr.bf16.mxu0 0
      %291 = vmatmul.mubr.bf16.gmra.mrb[0].mxu0 %v211
      %v292 = vpop.f32.mrb[0].mxu0
      %v293 = vadd.f32 0.0, %v292
      %v294 = vpop.f32.mrb[0].mxu0
      %v295 = vadd.f32 0.0, %v294
      %v296 = vpop.f32.mrb[0].mxu0
      %v297 = vadd.f32 0.0, %v296
      %v298 = vpop.f32.mrb[0].mxu0
      %v299 = vadd.f32 0.0, %v298
      %300 = vmatprep.mubr.bf16.mxu0 0
      %301 = vmatmul.mubr.bf16.gmra.mrb[0].mxu0 %v214
      %v302 = vpop.f32.mrb[0].mxu0
      %v303 = vadd.f32 0.0, %v302
      %v304 = vpop.f32.mrb[0].mxu0
      %v305 = vadd.f32 0.0, %v304
      %v306 = vpop.f32.mrb[0].mxu0
      %v307 = vadd.f32 0.0, %v306
      %v308 = vpop.f32.mrb[0].mxu0
      %v309 = vadd.f32 0.0, %v308
      %310 = vmatprep.mubr.bf16.mxu0 0
      %311 = vmatmul.mubr.bf16.gmra.mrb[0].mxu0 %v217
      %v312 = vpop.f32.mrb[0].mxu0
      %v313 = vadd.f32 0.0, %v312
      %v314 = vpop.f32.mrb[0].mxu0
      %v315 = vadd.f32 0.0, %v314
      %v316 = vpop.f32.mrb[0].mxu0
      %v317 = vadd.f32 0.0, %v316
      %v318 = vpop.f32.mrb[0].mxu0
      %v319 = vadd.f32 0.0, %v318
      %320 = vmatprep.mubr.bf16.mxu0 0
      %321 = vmatmul.mubr.bf16.gmra.mrb[0].mxu0 %v220
      %v322 = vpop.f32.mrb[0].mxu0
      %v323 = vadd.f32 0.0, %v322
      %v324 = vpop.f32.mrb[0].mxu0
      %v325 = vadd.f32 0.0, %v324
      %v326 = vpop.f32.mrb[0].mxu0
      %v327 = vadd.f32 0.0, %v326
      %v328 = vpop.f32.mrb[0].mxu0
      %v329 = vadd.f32 0.0, %v328
      %330 = vmatprep.mubr.bf16.mxu0 0
      %331 = vmatmul.mubr.bf16.gmra.mrb[0].mxu0 %v223
      %v332 = vpop.f32.mrb[0].mxu0
      %v333 = vadd.f32 0.0, %v332
      %v334 = vpop.f32.mrb[0].mxu0
      %v335 = vadd.f32 0.0, %v334
      %v336 = vpop.f32.mrb[0].mxu0
      %v337 = vadd.f32 0.0, %v336
      %v338 = vpop.f32.mrb[0].mxu0
      %v339 = vadd.f32 0.0, %v338
      %340 = vmatprep.mubr.bf16.mxu0 0
      %341 = vmatmul.mubr.bf16.gmra.mrb[0].mxu0 %v226
      %v342 = vpop.f32.mrb[0].mxu0
      %v343 = vadd.f32 0.0, %v342
      %v344 = vpop.f32.mrb[0].mxu0
      %v345 = vadd.f32 0.0, %v344
      %v346 = vpop.f32.mrb[0].mxu0
      %v347 = vadd.f32 0.0, %v346
      %v348 = vpop.f32.mrb[0].mxu0
      %v349 = vadd.f32 0.0, %v348
      %350 = vmatprep.mubr.bf16.mxu0 0
      %351 = vmatmul.mubr.bf16.gmra.mrb[0].mxu0 %v229
      %v352 = vpop.f32.mrb[0].mxu0
      %v353 = vadd.f32 0.0, %v352
      %v354 = vpop.f32.mrb[0].mxu0
      %v355 = vadd.f32 0.0, %v354
      %v356 = vpop.f32.mrb[0].mxu0
      %v357 = vadd.f32 0.0, %v356
      %v358 = vpop.f32.mrb[0].mxu0
      %v359 = vadd.f32 0.0, %v358
      %360 = vmatprep.mubr.bf16.mxu0 0
      %361 = vmatmul.mubr.bf16.gmra.mrb[0].mxu0 %v232
      %v362 = vpop.f32.mrb[0].mxu0
      %v363 = vadd.f32 0.0, %v362
      %v364 = vpop.f32.mrb[0].mxu0
      %v365 = vadd.f32 0.0, %v364
      %v366 = vpop.f32.mrb[0].mxu0
      %v367 = vadd.f32 0.0, %v366
      %v368 = vpop.f32.mrb[0].mxu0
      %v369 = vadd.f32 0.0, %v368
      %370 = vmatprep.mubr.bf16.mxu0 0
      %371 = vmatmul.mubr.bf16.gmra.mrb[0].mxu0 %v235
      %v372 = vpop.f32.mrb[0].mxu0
      %v373 = vadd.f32 0.0, %v372
      %v374 = vpop.f32.mrb[0].mxu0
      %v375 = vadd.f32 0.0, %v374
      %v376 = vpop.f32.mrb[0].mxu0
      %v377 = vadd.f32 0.0, %v376
      %v378 = vpop.f32.mrb[0].mxu0
      %v379 = vadd.f32 0.0, %v378
      %380 = vmatprep.mubr.bf16.mxu0 0
      %381 = vmatmul.mubr.bf16.gmra.mrb[0].mxu0 %v238
      %v382 = vpop.f32.mrb[0].mxu0
      %v383 = vadd.f32 0.0, %v382
      %v384 = vpop.f32.mrb[0].mxu0
      %v385 = vadd.f32 0.0, %v384
      %v386 = vpop.f32.mrb[0].mxu0
      %v387 = vadd.f32 0.0, %v386
      %v388 = vpop.f32.mrb[0].mxu0
      %v389 = vadd.f32 0.0, %v388
      %390 = vmatprep.mubr.bf16.mxu0 0
      %391 = vmatmul.mubr.bf16.gmra.mrb[0].mxu0 %v241
      %v392 = vpop.f32.mrb[0].mxu0
      %v393 = vadd.f32 0.0, %v392
      %v394 = vpop.f32.mrb[0].mxu0
      %v395 = vadd.f32 0.0, %v394
      %v396 = vpop.f32.mrb[0].mxu0
      %v397 = vadd.f32 0.0, %v396
      %v398 = vpop.f32.mrb[0].mxu0
      %v399 = vadd.f32 0.0, %v398
      %400 = vmatprep.mubr.bf16.mxu0 0
      %401 = vmatmul.mubr.bf16.gmra.mrb[0].mxu0 %v244
      %v402 = vpop.f32.mrb[0].mxu0
      %v403 = vadd.f32 0.0, %v402
      %v404 = vpop.f32.mrb[0].mxu0
      %v405 = vadd.f32 0.0, %v404
      %v406 = vpop.f32.mrb[0].mxu0
      %v407 = vadd.f32 0.0, %v406
      %v408 = vpop.f32.mrb[0].mxu0
      %v409 = vadd.f32 0.0, %v408
      %410 = vmatprep.mubr.bf16.mxu0 0
      %411 = vmatmul.mubr.bf16.gmra.mrb[0].mxu0 %v247
      %v412 = vpop.f32.mrb[0].mxu0
      %v413 = vadd.f32 0.0, %v412
      %v414 = vpop.f32.mrb[0].mxu0
      %v415 = vadd.f32 0.0, %v414
      %v416 = vpop.f32.mrb[0].mxu0
      %v417 = vadd.f32 0.0, %v416
      %v418 = vpop.f32.mrb[0].mxu0
      %v419 = vadd.f32 0.0, %v418
      %420 = vmatprep.mubr.bf16.mxu0 0
      %421 = vmatmul.mubr.bf16.gmra.mrb[0].mxu0 %v250
      %v422 = vpop.f32.mrb[0].mxu0
      %v423 = vadd.f32 0.0, %v422
      %v424 = vpop.f32.mrb[0].mxu0
      %v425 = vadd.f32 0.0, %v424
      %v426 = vpop.f32.mrb[0].mxu0
      %v427 = vadd.f32 0.0, %v426
      %v428 = vpop.f32.mrb[0].mxu0
      %v429 = vadd.f32 0.0, %v428
      %430 = vmatprep.mubr.bf16.mxu0 0
      %431 = vmatmul.mubr.bf16.gmra.mrb[0].mxu0 %v253
      %v432 = vpop.f32.mrb[0].mxu0
      %v433 = vadd.f32 0.0, %v432
      %v434 = vpop.f32.mrb[0].mxu0
      %v435 = vadd.f32 0.0, %v434
      %v436 = vpop.f32.mrb[0].mxu0
      %v437 = vadd.f32 0.0, %v436
      %v438 = vpop.f32.mrb[0].mxu0
      %v439 = vadd.f32 0.0, %v438
      %440 = vmatprep.mubr.bf16.mxu0 0
      %441 = vmatmul.mubr.bf16.gmra.mrb[0].mxu0 %v256
      %v442 = vpop.f32.mrb[0].mxu0
      %v443 = vadd.f32 0.0, %v442
      %v444 = vpop.f32.mrb[0].mxu0
      %v445 = vadd.f32 0.0, %v444
      %v446 = vpop.f32.mrb[0].mxu0
      %v447 = vadd.f32 0.0, %v446
      %v448 = vpop.f32.mrb[0].mxu0
      %v449 = vadd.f32 0.0, %v448
      %450 = vdwg.mxu0
      %v451 = vld [vmem:[%s1] sm:$0xff]
      %v452 = vld [vmem:[%s1 + $0x8] sm:$0xff]
      %v453 = vld [vmem:[%s1 + $0x10] sm:$0xff]
      %v454 = vld [vmem:[%s1 + $0x18] sm:$0xff]
      %v455 = vld [vmem:[%s1 + $0x20] sm:$0xff]
      %v456 = vld [vmem:[%s1 + $0x28] sm:$0xff]
      %v457 = vld [vmem:[%s1 + $0x30] sm:$0xff]
      %v458 = vld [vmem:[%s1 + $0x38] sm:$0xff]
      %v459 = vld [vmem:[%s1 + $0x40] sm:$0xff]
      %v460 = vld [vmem:[%s1 + $0x48] sm:$0xff]
      %v461 = vld [vmem:[%s1 + $0x50] sm:$0xff]
      %v462 = vld [vmem:[%s1 + $0x58] sm:$0xff]
      %v463 = vld [vmem:[%s1 + $0x60] sm:$0xff]
      %v464 = vld [vmem:[%s1 + $0x68] sm:$0xff]
      %v465 = vld [vmem:[%s1 + $0x70] sm:$0xff]
      %v466 = vld [vmem:[%s1 + $0x78] sm:$0xff]
      %v467 = vld [vmem:[%s1 + $0x80] sm:$0xff]
      %v468 = vld [vmem:[%s1 + $0x88] sm:$0xff]
      %v469 = vld [vmem:[%s1 + $0x90] sm:$0xff]
      %v470 = vld [vmem:[%s1 + $0x98] sm:$0xff]
      %v471 = vld [vmem:[%s1 + $0xa0] sm:$0xff]
      %v472 = vld [vmem:[%s1 + $0xa8] sm:$0xff]
      %v473 = vld [vmem:[%s1 + $0xb0] sm:$0xff]
      %v474 = vld [vmem:[%s1 + $0xb8] sm:$0xff]
      %v475 = vld [vmem:[%s1 + $0xc0] sm:$0xff]
      %v476 = vld [vmem:[%s1 + $0xc8] sm:$0xff]
      %v477 = vld [vmem:[%s1 + $0xd0] sm:$0xff]
      %v478 = vld [vmem:[%s1 + $0xd8] sm:$0xff]
      %v479 = vld [vmem:[%s1 + $0xe0] sm:$0xff]
      %v480 = vld [vmem:[%s1 + $0xe8] sm:$0xff]
      %v481 = vld [vmem:[%s1 + $0xf0] sm:$0xff]
      %v482 = vld [vmem:[%s1 + $0xf8] sm:$0xff]
      %v483 = vld [vmem:[%s1 + $0x100] sm:$0xff]
      %v484 = vld [vmem:[%s1 + $0x108] sm:$0xff]
      %v485 = vld [vmem:[%s1 + $0x110] sm:$0xff]
      %v486 = vld [vmem:[%s1 + $0x118] sm:$0xff]
      %v487 = vld [vmem:[%s1 + $0x120] sm:$0xff]
      %v488 = vld [vmem:[%s1 + $0x128] sm:$0xff]
      %v489 = vld [vmem:[%s1 + $0x130] sm:$0xff]
      %v490 = vld [vmem:[%s1 + $0x138] sm:$0xff]
      %v491 = vld [vmem:[%s1 + $0x140] sm:$0xff]
      %v492 = vld [vmem:[%s1 + $0x148] sm:$0xff]
      %v493 = vld [vmem:[%s1 + $0x150] sm:$0xff]
      %v494 = vld [vmem:[%s1 + $0x158] sm:$0xff]
      %v495 = vld [vmem:[%s1 + $0x160] sm:$0xff]
      %v496 = vld [vmem:[%s1 + $0x168] sm:$0xff]
      %v497 = vld [vmem:[%s1 + $0x170] sm:$0xff]
      %v498 = vld [vmem:[%s1 + $0x178] sm:$0xff]
      %v499 = vld [vmem:[%s1 + $0x180] sm:$0xff]
      %v500 = vld [vmem:[%s1 + $0x188] sm:$0xff]
      %v501 = vld [vmem:[%s1 + $0x190] sm:$0xff]
      %v502 = vld [vmem:[%s1 + $0x198] sm:$0xff]
      %v503 = vld [vmem:[%s1 + $0x1a0] sm:$0xff]
      %v504 = vld [vmem:[%s1 + $0x1a8] sm:$0xff]
      %v505 = vld [vmem:[%s1 + $0x1b0] sm:$0xff]
      %v506 = vld [vmem:[%s1 + $0x1b8] sm:$0xff]
      %v507 = vld [vmem:[%s1 + $0x1c0] sm:$0xff]
      %v508 = vld [vmem:[%s1 + $0x1c8] sm:$0xff]
      %v509 = vld [vmem:[%s1 + $0x1d0] sm:$0xff]
      %v510 = vld [vmem:[%s1 + $0x1d8] sm:$0xff]
      %v511 = vld [vmem:[%s1 + $0x1e0] sm:$0xff]
      %v512 = vld [vmem:[%s1 + $0x1e8] sm:$0xff]
      %v513 = vld [vmem:[%s1 + $0x1f0] sm:$0xff]
      %v514 = vld [vmem:[%s1 + $0x1f8] sm:$0xff]
      %v515 = vmul.f32 %v293, %v451
      %v516 = vmul.f32 %v295, %v452
      %v517 = vmul.f32 %v297, %v453
      %v518 = vmul.f32 %v299, %v454
      %v519 = vmul.f32 %v303, %v455
      %v520 = vmul.f32 %v305, %v456
      %v521 = vmul.f32 %v307, %v457
      %v522 = vmul.f32 %v309, %v458
      %v523 = vmul.f32 %v313, %v459
      %v524 = vmul.f32 %v315, %v460
      %v525 = vmul.f32 %v317, %v461
      %v526 = vmul.f32 %v319, %v462
      %v527 = vmul.f32 %v323, %v463
      %v528 = vmul.f32 %v325, %v464
      %v529 = vmul.f32 %v327, %v465
      %v530 = vmul.f32 %v329, %v466
      %v531 = vmul.f32 %v333, %v467
      %v532 = vmul.f32 %v335, %v468
      %v533 = vmul.f32 %v337, %v469
      %v534 = vmul.f32 %v339, %v470
      %v535 = vmul.f32 %v343, %v471
      %v536 = vmul.f32 %v345, %v472
      %v537 = vmul.f32 %v347, %v473
      %v538 = vmul.f32 %v349, %v474
      %v539 = vmul.f32 %v353, %v475
      %v540 = vmul.f32 %v355, %v476
      %v541 = vmul.f32 %v357, %v477
      %v542 = vmul.f32 %v359, %v478
      %v543 = vmul.f32 %v363, %v479
      %v544 = vmul.f32 %v365, %v480
      %v545 = vmul.f32 %v367, %v481
      %v546 = vmul.f32 %v369, %v482
      %v547 = vmul.f32 %v373, %v483
      %v548 = vmul.f32 %v375, %v484
      %v549 = vmul.f32 %v377, %v485
      %v550 = vmul.f32 %v379, %v486
      %v551 = vmul.f32 %v383, %v487
      %v552 = vmul.f32 %v385, %v488
      %v553 = vmul.f32 %v387, %v489
      %v554 = vmul.f32 %v389, %v490
      %v555 = vmul.f32 %v393, %v491
      %v556 = vmul.f32 %v395, %v492
      %v557 = vmul.f32 %v397, %v493
      %v558 = vmul.f32 %v399, %v494
      %v559 = vmul.f32 %v403, %v495
      %v560 = vmul.f32 %v405, %v496
      %v561 = vmul.f32 %v407, %v497
      %v562 = vmul.f32 %v409, %v498
      %v563 = vmul.f32 %v413, %v499
      %v564 = vmul.f32 %v415, %v500
      %v565 = vmul.f32 %v417, %v501
      %v566 = vmul.f32 %v419, %v502
      %v567 = vmul.f32 %v423, %v503
      %v568 = vmul.f32 %v425, %v504
      %v569 = vmul.f32 %v427, %v505
      %v570 = vmul.f32 %v429, %v506
      %v571 = vmul.f32 %v433, %v507
      %v572 = vmul.f32 %v435, %v508
      %v573 = vmul.f32 %v437, %v509
      %v574 = vmul.f32 %v439, %v510
      %v575 = vmul.f32 %v443, %v511
      %v576 = vmul.f32 %v445, %v512
      %v577 = vmul.f32 %v447, %v513
      %v578 = vmul.f32 %v449, %v514
      %v579 = vmul.f32 %v515, 1.442695
      %v580 = vpow.pop %v579
      %v581 = vmul.f32 %v516, 1.442695
      %v582 = vpow.pop %v581
      %v583 = vmul.f32 %v517, 1.442695
      %v584 = vpow.pop %v583
      %v585 = vmul.f32 %v518, 1.442695
      %v586 = vpow.pop %v585
      %v587 = vmul.f32 %v519, 1.442695
      %v588 = vpow.pop %v587
      %v589 = vmul.f32 %v520, 1.442695
      %v590 = vpow.pop %v589
      %v591 = vmul.f32 %v521, 1.442695
      %v592 = vpow.pop %v591
      %v593 = vmul.f32 %v522, 1.442695
      %v594 = vpow.pop %v593
      %v595 = vmul.f32 %v523, 1.442695
      %v596 = vpow.pop %v595
      %v597 = vmul.f32 %v524, 1.442695
      %v598 = vpow.pop %v597
      %v599 = vmul.f32 %v525, 1.442695
      %v600 = vpow.pop %v599
      %v601 = vmul.f32 %v526, 1.442695
      %v602 = vpow.pop %v601
      %v603 = vmul.f32 %v527, 1.442695
      %v604 = vpow.pop %v603
      %v605 = vmul.f32 %v528, 1.442695
      %v606 = vpow.pop %v605
      %v607 = vmul.f32 %v529, 1.442695
      %v608 = vpow.pop %v607
      %v609 = vmul.f32 %v530, 1.442695
      %v610 = vpow.pop %v609
      %v611 = vmul.f32 %v531, 1.442695
      %v612 = vpow.pop %v611
      %v613 = vmul.f32 %v532, 1.442695
      %v614 = vpow.pop %v613
      %v615 = vmul.f32 %v533, 1.442695
      %v616 = vpow.pop %v615
      %v617 = vmul.f32 %v534, 1.442695
      %v618 = vpow.pop %v617
      %v619 = vmul.f32 %v535, 1.442695
      %v620 = vpow.pop %v619
      %v621 = vmul.f32 %v536, 1.442695
      %v622 = vpow.pop %v621
      %v623 = vmul.f32 %v537, 1.442695
      %v624 = vpow.pop %v623
      %v625 = vmul.f32 %v538, 1.442695
      %v626 = vpow.pop %v625
      %v627 = vmul.f32 %v539, 1.442695
      %v628 = vpow.pop %v627
      %v629 = vmul.f32 %v540, 1.442695
      %v630 = vpow.pop %v629
      %v631 = vmul.f32 %v541, 1.442695
      %v632 = vpow.pop %v631
      %v633 = vmul.f32 %v542, 1.442695
      %v634 = vpow.pop %v633
      %v635 = vmul.f32 %v543, 1.442695
      %v636 = vpow.pop %v635
      %v637 = vmul.f32 %v544, 1.442695
      %v638 = vpow.pop %v637
      %v639 = vmul.f32 %v545, 1.442695
      %v640 = vpow.pop %v639
      %v641 = vmul.f32 %v546, 1.442695
      %v642 = vpow.pop %v641
      %v643 = vmul.f32 %v547, 1.442695
      %v644 = vpow.pop %v643
      %v645 = vmul.f32 %v548, 1.442695
      %v646 = vpow.pop %v645
      %v647 = vmul.f32 %v549, 1.442695
      %v648 = vpow.pop %v647
      %v649 = vmul.f32 %v550, 1.442695
      %v650 = vpow.pop %v649
      %v651 = vmul.f32 %v551, 1.442695
      %v652 = vpow.pop %v651
      %v653 = vmul.f32 %v552, 1.442695
      %v654 = vpow.pop %v653
      %v655 = vmul.f32 %v553, 1.442695
      %v656 = vpow.pop %v655
      %v657 = vmul.f32 %v554, 1.442695
      %v658 = vpow.pop %v657
      %v659 = vmul.f32 %v555, 1.442695
      %v660 = vpow.pop %v659
      %v661 = vmul.f32 %v556, 1.442695
      %v662 = vpow.pop %v661
      %v663 = vmul.f32 %v557, 1.442695
      %v664 = vpow.pop %v663
      %v665 = vmul.f32 %v558, 1.442695
      %v666 = vpow.pop %v665
      %v667 = vmul.f32 %v559, 1.442695
      %v668 = vpow.pop %v667
      %v669 = vmul.f32 %v560, 1.442695
      %v670 = vpow.pop %v669
      %v671 = vmul.f32 %v561, 1.442695
      %v672 = vpow.pop %v671
      %v673 = vmul.f32 %v562, 1.442695
      %v674 = vpow.pop %v673
      %v675 = vmul.f32 %v563, 1.442695
      %v676 = vpow.pop %v675
      %v677 = vmul.f32 %v564, 1.442695
      %v678 = vpow.pop %v677
      %v679 = vmul.f32 %v565, 1.442695
      %v680 = vpow.pop %v679
      %v681 = vmul.f32 %v566, 1.442695
      %v682 = vpow.pop %v681
      %v683 = vmul.f32 %v567, 1.442695
      %v684 = vpow.pop %v683
      %v685 = vmul.f32 %v568, 1.442695
      %v686 = vpow.pop %v685
      %v687 = vmul.f32 %v569, 1.442695
      %v688 = vpow.pop %v687
      %v689 = vmul.f32 %v570, 1.442695
      %v690 = vpow.pop %v689
      %v691 = vmul.f32 %v571, 1.442695
      %v692 = vpow.pop %v691
      %v693 = vmul.f32 %v572, 1.442695
      %v694 = vpow.pop %v693
      %v695 = vmul.f32 %v573, 1.442695
      %v696 = vpow.pop %v695
      %v697 = vmul.f32 %v574, 1.442695
      %v698 = vpow.pop %v697
      %v699 = vmul.f32 %v575, 1.442695
      %v700 = vpow.pop %v699
      %v701 = vmul.f32 %v576, 1.442695
      %v702 = vpow.pop %v701
      %v703 = vmul.f32 %v577, 1.442695
      %v704 = vpow.pop %v703
      %v705 = vmul.f32 %v578, 1.442695
      %v706 = vpow.pop %v705
      %v707 = vadd.f32 %v580, %v582
      %708 = vadd.xlane.f32.xlu0 %v707
      %v709 = vpop.xlane.xlu0 %708
      %v710 = vadd.f32 %v584, %v586
      %711 = vadd.xlane.f32.xlu0 %v710
      %v712 = vpop.xlane.xlu0 %711
      %v713 = vadd.f32 %v588, %v590
      %714 = vadd.xlane.f32.xlu0 %v713
      %v715 = vpop.xlane.xlu0 %714
      %v716 = vadd.f32 %v592, %v594
      %717 = vadd.xlane.f32.xlu0 %v716
      %v718 = vpop.xlane.xlu0 %717
      %v719 = vadd.f32 %v596, %v598
      %720 = vadd.xlane.f32.xlu0 %v719
      %v721 = vpop.xlane.xlu0 %720
      %v722 = vadd.f32 %v600, %v602
      %723 = vadd.xlane.f32.xlu0 %v722
      %v724 = vpop.xlane.xlu0 %723
      %v725 = vadd.f32 %v604, %v606
      %726 = vadd.xlane.f32.xlu0 %v725
      %v727 = vpop.xlane.xlu0 %726
      %v728 = vadd.f32 %v608, %v610
      %729 = vadd.xlane.f32.xlu0 %v728
      %v730 = vpop.xlane.xlu0 %729
      %v731 = vadd.f32 %v612, %v614
      %732 = vadd.xlane.f32.xlu0 %v731
      %v733 = vpop.xlane.xlu0 %732
      %v734 = vadd.f32 %v616, %v618
      %735 = vadd.xlane.f32.xlu0 %v734
      %v736 = vpop.xlane.xlu0 %735
      %v737 = vadd.f32 %v620, %v622
      %738 = vadd.xlane.f32.xlu0 %v737
      %v739 = vpop.xlane.xlu0 %738
      %v740 = vadd.f32 %v624, %v626
      %741 = vadd.xlane.f32.xlu0 %v740
      %v742 = vpop.xlane.xlu0 %741
      %v743 = vadd.f32 %v628, %v630
      %744 = vadd.xlane.f32.xlu0 %v743
      %v745 = vpop.xlane.xlu0 %744
      %v746 = vadd.f32 %v632, %v634
      %747 = vadd.xlane.f32.xlu0 %v746
      %v748 = vpop.xlane.xlu0 %747
      %v749 = vadd.f32 %v636, %v638
      %750 = vadd.xlane.f32.xlu0 %v749
      %v751 = vpop.xlane.xlu0 %750
      %v752 = vadd.f32 %v640, %v642
      %753 = vadd.xlane.f32.xlu0 %v752
      %v754 = vpop.xlane.xlu0 %753
      %v755 = vadd.f32 %v644, %v646
      %756 = vadd.xlane.f32.xlu0 %v755
      %v757 = vpop.xlane.xlu0 %756
      %v758 = vadd.f32 %v648, %v650
      %759 = vadd.xlane.f32.xlu0 %v758
      %v760 = vpop.xlane.xlu0 %759
      %v761 = vadd.f32 %v652, %v654
      %762 = vadd.xlane.f32.xlu0 %v761
      %v763 = vpop.xlane.xlu0 %762
      %v764 = vadd.f32 %v656, %v658
      %765 = vadd.xlane.f32.xlu0 %v764
      %v766 = vpop.xlane.xlu0 %765
      %v767 = vadd.f32 %v660, %v662
      %768 = vadd.xlane.f32.xlu0 %v767
      %v769 = vpop.xlane.xlu0 %768
      %v770 = vadd.f32 %v664, %v666
      %771 = vadd.xlane.f32.xlu0 %v770
      %v772 = vpop.xlane.xlu0 %771
      %v773 = vadd.f32 %v668, %v670
      %774 = vadd.xlane.f32.xlu0 %v773
      %v775 = vpop.xlane.xlu0 %774
      %v776 = vadd.f32 %v672, %v674
      %777 = vadd.xlane.f32.xlu0 %v776
      %v778 = vpop.xlane.xlu0 %777
      %v779 = vadd.f32 %v676, %v678
      %780 = vadd.xlane.f32.xlu0 %v779
      %v781 = vpop.xlane.xlu0 %780
      %v782 = vadd.f32 %v680, %v682
      %783 = vadd.xlane.f32.xlu0 %v782
      %v784 = vpop.xlane.xlu0 %783
      %v785 = vadd.f32 %v684, %v686
      %786 = vadd.xlane.f32.xlu0 %v785
      %v787 = vpop.xlane.xlu0 %786
      %v788 = vadd.f32 %v688, %v690
      %789 = vadd.xlane.f32.xlu0 %v788
      %v790 = vpop.xlane.xlu0 %789
      %v791 = vadd.f32 %v692, %v694
      %792 = vadd.xlane.f32.xlu0 %v791
      %v793 = vpop.xlane.xlu0 %792
      %v794 = vadd.f32 %v696, %v698
      %795 = vadd.xlane.f32.xlu0 %v794
      %v796 = vpop.xlane.xlu0 %795
      %v797 = vadd.f32 %v700, %v702
      %798 = vadd.xlane.f32.xlu0 %v797
      %v799 = vpop.xlane.xlu0 %798
      %v800 = vadd.f32 %v704, %v706
      %801 = vadd.xlane.f32.xlu0 %v800
      %v802 = vpop.xlane.xlu0 %801
      %v803 = vadd.f32 %v580, %v584
      %v804 = vadd.f32 %v803, %v588
      %v805 = vadd.f32 %v804, %v592
      %v806 = vadd.f32 %v805, %v596
      %v807 = vadd.f32 %v806, %v600
      %v808 = vadd.f32 %v807, %v604
      %v809 = vadd.f32 %v808, %v608
      %v810 = vadd.f32 %v809, %v612
      %v811 = vadd.f32 %v810, %v616
      %v812 = vadd.f32 %v811, %v620
      %v813 = vadd.f32 %v812, %v624
      %v814 = vadd.f32 %v813, %v628
      %v815 = vadd.f32 %v814, %v632
      %v816 = vadd.f32 %v815, %v636
      %v817 = vadd.f32 %v816, %v640
      %v818 = vadd.f32 %v817, %v644
      %v819 = vadd.f32 %v818, %v648
      %v820 = vadd.f32 %v819, %v652
      %v821 = vadd.f32 %v820, %v656
      %v822 = vadd.f32 %v821, %v660
      %v823 = vadd.f32 %v822, %v664
      %v824 = vadd.f32 %v823, %v668
      %v825 = vadd.f32 %v824, %v672
      %v826 = vadd.f32 %v825, %v676
      %v827 = vadd.f32 %v826, %v680
      %v828 = vadd.f32 %v827, %v684
      %v829 = vadd.f32 %v828, %v688
      %v830 = vadd.f32 %v829, %v692
      %v831 = vadd.f32 %v830, %v696
      %v832 = vadd.f32 %v831, %v700
      %v833 = vadd.f32 %v832, %v704
      %v834 = vrot.slane %v833, 4
      %v835 = vadd.f32 %v833, %v834
      %v836 = vrot.slane %v835, 2
      %v837 = vadd.f32 %v835, %v836
      %v838 = vrot.slane %v837, 1
      %v839 = vadd.f32 %v837, %v838
      %v840 = vadd.f32 %v582, %v586
      %v841 = vadd.f32 %v840, %v590
      %v842 = vadd.f32 %v841, %v594
      %v843 = vadd.f32 %v842, %v598
      %v844 = vadd.f32 %v843, %v602
      %v845 = vadd.f32 %v844, %v606
      %v846 = vadd.f32 %v845, %v610
      %v847 = vadd.f32 %v846, %v614
      %v848 = vadd.f32 %v847, %v618
      %v849 = vadd.f32 %v848, %v622
      %v850 = vadd.f32 %v849, %v626
      %v851 = vadd.f32 %v850, %v630
      %v852 = vadd.f32 %v851, %v634
      %v853 = vadd.f32 %v852, %v638
      %v854 = vadd.f32 %v853, %v642
      %v855 = vadd.f32 %v854, %v646
      %v856 = vadd.f32 %v855, %v650
      %v857 = vadd.f32 %v856, %v654
      %v858 = vadd.f32 %v857, %v658
      %v859 = vadd.f32 %v858, %v662
      %v860 = vadd.f32 %v859, %v666
      %v861 = vadd.f32 %v860, %v670
      %v862 = vadd.f32 %v861, %v674
      %v863 = vadd.f32 %v862, %v678
      %v864 = vadd.f32 %v863, %v682
      %v865 = vadd.f32 %v864, %v686
      %v866 = vadd.f32 %v865, %v690
      %v867 = vadd.f32 %v866, %v694
      %v868 = vadd.f32 %v867, %v698
      %v869 = vadd.f32 %v868, %v702
      %v870 = vadd.f32 %v869, %v706
      %v871 = vrot.slane %v870, 4
      %v872 = vadd.f32 %v870, %v871
      %v873 = vrot.slane %v872, 2
      %v874 = vadd.f32 %v872, %v873
      %v875 = vrot.slane %v874, 1
      %v876 = vadd.f32 %v874, %v875
      %v877 = vmul.f32 %v580, %v580
      %v878 = vmul.f32 %v582, %v582
      %v879 = vmul.f32 %v584, %v584
      %v880 = vmul.f32 %v586, %v586
      %v881 = vmul.f32 %v588, %v588
      %v882 = vmul.f32 %v590, %v590
      %v883 = vmul.f32 %v592, %v592
      %v884 = vmul.f32 %v594, %v594
      %v885 = vmul.f32 %v596, %v596
      %v886 = vmul.f32 %v598, %v598
      %v887 = vmul.f32 %v600, %v600
      %v888 = vmul.f32 %v602, %v602
      %v889 = vmul.f32 %v604, %v604
      %v890 = vmul.f32 %v606, %v606
      %v891 = vmul.f32 %v608, %v608
      %v892 = vmul.f32 %v610, %v610
      %v893 = vmul.f32 %v612, %v612
      %v894 = vmul.f32 %v614, %v614
      %v895 = vmul.f32 %v616, %v616
      %v896 = vmul.f32 %v618, %v618
      %v897 = vmul.f32 %v620, %v620
      %v898 = vmul.f32 %v622, %v622
      %v899 = vmul.f32 %v624, %v624
      %v900 = vmul.f32 %v626, %v626
      %v901 = vmul.f32 %v628, %v628
      %v902 = vmul.f32 %v630, %v630
      %v903 = vmul.f32 %v632, %v632
      %v904 = vmul.f32 %v634, %v634
      %v905 = vmul.f32 %v636, %v636
      %v906 = vmul.f32 %v638, %v638
      %v907 = vmul.f32 %v640, %v640
      %v908 = vmul.f32 %v642, %v642
      %v909 = vmul.f32 %v644, %v644
      %v910 = vmul.f32 %v646, %v646
      %v911 = vmul.f32 %v648, %v648
      %v912 = vmul.f32 %v650, %v650
      %v913 = vmul.f32 %v652, %v652
      %v914 = vmul.f32 %v654, %v654
      %v915 = vmul.f32 %v656, %v656
      %v916 = vmul.f32 %v658, %v658
      %v917 = vmul.f32 %v660, %v660
      %v918 = vmul.f32 %v662, %v662
      %v919 = vmul.f32 %v664, %v664
      %v920 = vmul.f32 %v666, %v666
      %v921 = vmul.f32 %v668, %v668
      %v922 = vmul.f32 %v670, %v670
      %v923 = vmul.f32 %v672, %v672
      %v924 = vmul.f32 %v674, %v674
      %v925 = vmul.f32 %v676, %v676
      %v926 = vmul.f32 %v678, %v678
      %v927 = vmul.f32 %v680, %v680
      %v928 = vmul.f32 %v682, %v682
      %v929 = vmul.f32 %v684, %v684
      %v930 = vmul.f32 %v686, %v686
      %v931 = vmul.f32 %v688, %v688
      %v932 = vmul.f32 %v690, %v690
      %v933 = vmul.f32 %v692, %v692
      %v934 = vmul.f32 %v694, %v694
      %v935 = vmul.f32 %v696, %v696
      %v936 = vmul.f32 %v698, %v698
      %v937 = vmul.f32 %v700, %v700
      %v938 = vmul.f32 %v702, %v702
      %v939 = vmul.f32 %v704, %v704
      %v940 = vmul.f32 %v706, %v706
      %v941 = vrcp.pop %v709
      %v942 = vrcp.pop %v712
      %v943 = vrcp.pop %v715
      %v944 = vrcp.pop %v718
      %v945 = vrcp.pop %v721
      %v946 = vrcp.pop %v724
      %v947 = vrcp.pop %v727
      %v948 = vrcp.pop %v730
      %v949 = vrcp.pop %v733
      %v950 = vrcp.pop %v736
      %v951 = vrcp.pop %v739
      %v952 = vrcp.pop %v742
      %v953 = vrcp.pop %v745
      %v954 = vrcp.pop %v748
      %v955 = vrcp.pop %v751
      %v956 = vrcp.pop %v754
      %v957 = vrcp.pop %v757
      %v958 = vrcp.pop %v760
      %v959 = vrcp.pop %v763
      %v960 = vrcp.pop %v766
      %v961 = vrcp.pop %v769
      %v962 = vrcp.pop %v772
      %v963 = vrcp.pop %v775
      %v964 = vrcp.pop %v778
      %v965 = vrcp.pop %v781
      %v966 = vrcp.pop %v784
      %v967 = vrcp.pop %v787
      %v968 = vrcp.pop %v790
      %v969 = vrcp.pop %v793
      %v970 = vrcp.pop %v796
      %v971 = vrcp.pop %v799
      %v972 = vrcp.pop %v802
      %v973 = vmul.f32 %v877, %v941
      %v974 = vmul.f32 %v878, %v941
      %v975 = vmul.f32 %v879, %v942
      %v976 = vmul.f32 %v880, %v942
      %v977 = vmul.f32 %v881, %v943
      %v978 = vmul.f32 %v882, %v943
      %v979 = vmul.f32 %v883, %v944
      %v980 = vmul.f32 %v884, %v944
      %v981 = vmul.f32 %v885, %v945
      %v982 = vmul.f32 %v886, %v945
      %v983 = vmul.f32 %v887, %v946
      %v984 = vmul.f32 %v888, %v946
      %v985 = vmul.f32 %v889, %v947
      %v986 = vmul.f32 %v890, %v947
      %v987 = vmul.f32 %v891, %v948
      %v988 = vmul.f32 %v892, %v948
      %v989 = vmul.f32 %v893, %v949
      %v990 = vmul.f32 %v894, %v949
      %v991 = vmul.f32 %v895, %v950
      %v992 = vmul.f32 %v896, %v950
      %v993 = vmul.f32 %v897, %v951
      %v994 = vmul.f32 %v898, %v951
      %v995 = vmul.f32 %v899, %v952
      %v996 = vmul.f32 %v900, %v952
      %v997 = vmul.f32 %v901, %v953
      %v998 = vmul.f32 %v902, %v953
      %v999 = vmul.f32 %v903, %v954
      %v1000 = vmul.f32 %v904, %v954
      %v1001 = vmul.f32 %v905, %v955
      %v1002 = vmul.f32 %v906, %v955
      %v1003 = vmul.f32 %v907, %v956
      %v1004 = vmul.f32 %v908, %v956
      %v1005 = vmul.f32 %v909, %v957
      %v1006 = vmul.f32 %v910, %v957
      %v1007 = vmul.f32 %v911, %v958
      %v1008 = vmul.f32 %v912, %v958
      %v1009 = vmul.f32 %v913, %v959
      %v1010 = vmul.f32 %v914, %v959
      %v1011 = vmul.f32 %v915, %v960
      %v1012 = vmul.f32 %v916, %v960
      %v1013 = vmul.f32 %v917, %v961
      %v1014 = vmul.f32 %v918, %v961
      %v1015 = vmul.f32 %v919, %v962
      %v1016 = vmul.f32 %v920, %v962
      %v1017 = vmul.f32 %v921, %v963
      %v1018 = vmul.f32 %v922, %v963
      %v1019 = vmul.f32 %v923, %v964
      %v1020 = vmul.f32 %v924, %v964
      %v1021 = vmul.f32 %v925, %v965
      %v1022 = vmul.f32 %v926, %v965
      %v1023 = vmul.f32 %v927, %v966
      %v1024 = vmul.f32 %v928, %v966
      %v1025 = vmul.f32 %v929, %v967
      %v1026 = vmul.f32 %v930, %v967
      %v1027 = vmul.f32 %v931, %v968
      %v1028 = vmul.f32 %v932, %v968
      %v1029 = vmul.f32 %v933, %v969
      %v1030 = vmul.f32 %v934, %v969
      %v1031 = vmul.f32 %v935, %v970
      %v1032 = vmul.f32 %v936, %v970
      %v1033 = vmul.f32 %v937, %v971
      %v1034 = vmul.f32 %v938, %v971
      %v1035 = vmul.f32 %v939, %v972
      %v1036 = vmul.f32 %v940, %v972
      %v1037 = vrcp.pop %v839
      %v1038 = vrcp.pop %v876
      %v1039 = vmul.f32 %v973, %v1037
      %v1040 = vmul.f32 %v974, %v1038
      %v1041 = vmul.f32 %v975, %v1037
      %v1042 = vmul.f32 %v976, %v1038
      %v1043 = vmul.f32 %v977, %v1037
      %v1044 = vmul.f32 %v978, %v1038
      %v1045 = vmul.f32 %v979, %v1037
      %v1046 = vmul.f32 %v980, %v1038
      %v1047 = vmul.f32 %v981, %v1037
      %v1048 = vmul.f32 %v982, %v1038
      %v1049 = vmul.f32 %v983, %v1037
      %v1050 = vmul.f32 %v984, %v1038
      %v1051 = vmul.f32 %v985, %v1037
      %v1052 = vmul.f32 %v986, %v1038
      %v1053 = vmul.f32 %v987, %v1037
      %v1054 = vmul.f32 %v988, %v1038
      %v1055 = vmul.f32 %v989, %v1037
      %v1056 = vmul.f32 %v990, %v1038
      %v1057 = vmul.f32 %v991, %v1037
      %v1058 = vmul.f32 %v992, %v1038
      %v1059 = vmul.f32 %v993, %v1037
      %v1060 = vmul.f32 %v994, %v1038
      %v1061 = vmul.f32 %v995, %v1037
      %v1062 = vmul.f32 %v996, %v1038
      %v1063 = vmul.f32 %v997, %v1037
      %v1064 = vmul.f32 %v998, %v1038
      %v1065 = vmul.f32 %v999, %v1037
      %v1066 = vmul.f32 %v1000, %v1038
      %v1067 = vmul.f32 %v1001, %v1037
      %v1068 = vmul.f32 %v1002, %v1038
      %v1069 = vmul.f32 %v1003, %v1037
      %v1070 = vmul.f32 %v1004, %v1038
      %v1071 = vmul.f32 %v1005, %v1037
      %v1072 = vmul.f32 %v1006, %v1038
      %v1073 = vmul.f32 %v1007, %v1037
      %v1074 = vmul.f32 %v1008, %v1038
      %v1075 = vmul.f32 %v1009, %v1037
      %v1076 = vmul.f32 %v1010, %v1038
      %v1077 = vmul.f32 %v1011, %v1037
      %v1078 = vmul.f32 %v1012, %v1038
      %v1079 = vmul.f32 %v1013, %v1037
      %v1080 = vmul.f32 %v1014, %v1038
      %v1081 = vmul.f32 %v1015, %v1037
      %v1082 = vmul.f32 %v1016, %v1038
      %v1083 = vmul.f32 %v1017, %v1037
      %v1084 = vmul.f32 %v1018, %v1038
      %v1085 = vmul.f32 %v1019, %v1037
      %v1086 = vmul.f32 %v1020, %v1038
      %v1087 = vmul.f32 %v1021, %v1037
      %v1088 = vmul.f32 %v1022, %v1038
      %v1089 = vmul.f32 %v1023, %v1037
      %v1090 = vmul.f32 %v1024, %v1038
      %v1091 = vmul.f32 %v1025, %v1037
      %v1092 = vmul.f32 %v1026, %v1038
      %v1093 = vmul.f32 %v1027, %v1037
      %v1094 = vmul.f32 %v1028, %v1038
      %v1095 = vmul.f32 %v1029, %v1037
      %v1096 = vmul.f32 %v1030, %v1038
      %v1097 = vmul.f32 %v1031, %v1037
      %v1098 = vmul.f32 %v1032, %v1038
      %v1099 = vmul.f32 %v1033, %v1037
      %v1100 = vmul.f32 %v1034, %v1038
      %v1101 = vmul.f32 %v1035, %v1037
      %v1102 = vmul.f32 %v1036, %v1038
      %v1103 = vpack.c.bf16 %v1041, %v1039
      %v1104 = vpack.c.bf16 %v1042, %v1040
      %v1105 = vpack.c.bf16 %v1045, %v1043
      %v1106 = vpack.c.bf16 %v1046, %v1044
      %v1107 = vpack.c.bf16 %v1049, %v1047
      %v1108 = vpack.c.bf16 %v1050, %v1048
      %v1109 = vpack.c.bf16 %v1053, %v1051
      %v1110 = vpack.c.bf16 %v1054, %v1052
      %v1111 = vpack.c.bf16 %v1057, %v1055
      %v1112 = vpack.c.bf16 %v1058, %v1056
      %v1113 = vpack.c.bf16 %v1061, %v1059
      %v1114 = vpack.c.bf16 %v1062, %v1060
      %v1115 = vpack.c.bf16 %v1065, %v1063
      %v1116 = vpack.c.bf16 %v1066, %v1064
      %v1117 = vpack.c.bf16 %v1069, %v1067
      %v1118 = vpack.c.bf16 %v1070, %v1068
      %v1119 = vpack.c.bf16 %v1073, %v1071
      %v1120 = vpack.c.bf16 %v1074, %v1072
      %v1121 = vpack.c.bf16 %v1077, %v1075
      %v1122 = vpack.c.bf16 %v1078, %v1076
      %v1123 = vpack.c.bf16 %v1081, %v1079
      %v1124 = vpack.c.bf16 %v1082, %v1080
      %v1125 = vpack.c.bf16 %v1085, %v1083
      %v1126 = vpack.c.bf16 %v1086, %v1084
      %v1127 = vpack.c.bf16 %v1089, %v1087
      %v1128 = vpack.c.bf16 %v1090, %v1088
      %v1129 = vpack.c.bf16 %v1093, %v1091
      %v1130 = vpack.c.bf16 %v1094, %v1092
      %v1131 = vpack.c.bf16 %v1097, %v1095
      %v1132 = vpack.c.bf16 %v1098, %v1096
      %v1133 = vpack.c.bf16 %v1101, %v1099
      %v1134 = vpack.c.bf16 %v1102, %v1100
      %v1167 = vunpack.c.l.b16 %v1103
      %v1168 = vunpack.c.l.b16 %v1104
      %v1169 = vunpack.c.h.b16 %v1103
      %v1170 = vunpack.c.h.b16 %v1104
      %v1171 = vunpack.c.l.b16 %v1105
      %v1172 = vunpack.c.l.b16 %v1106
      %v1173 = vunpack.c.h.b16 %v1105
      %v1174 = vunpack.c.h.b16 %v1106
      %v1175 = vunpack.c.l.b16 %v1107
      %v1176 = vunpack.c.l.b16 %v1108
      %v1177 = vunpack.c.h.b16 %v1107
      %v1178 = vunpack.c.h.b16 %v1108
      %v1179 = vunpack.c.l.b16 %v1109
      %v1180 = vunpack.c.l.b16 %v1110
      %v1181 = vunpack.c.h.b16 %v1109
      %v1182 = vunpack.c.h.b16 %v1110
      %v1183 = vunpack.c.l.b16 %v1111
      %v1184 = vunpack.c.l.b16 %v1112
      %v1185 = vunpack.c.h.b16 %v1111
      %v1186 = vunpack.c.h.b16 %v1112
      %v1187 = vunpack.c.l.b16 %v1113
      %v1188 = vunpack.c.l.b16 %v1114
      %v1189 = vunpack.c.h.b16 %v1113
      %v1190 = vunpack.c.h.b16 %v1114
      %v1191 = vunpack.c.l.b16 %v1115
      %v1192 = vunpack.c.l.b16 %v1116
      %v1193 = vunpack.c.h.b16 %v1115
      %v1194 = vunpack.c.h.b16 %v1116
      %v1195 = vunpack.c.l.b16 %v1117
      %v1196 = vunpack.c.l.b16 %v1118
      %v1197 = vunpack.c.h.b16 %v1117
      %v1198 = vunpack.c.h.b16 %v1118
      %v1199 = vunpack.c.l.b16 %v1119
      %v1200 = vunpack.c.l.b16 %v1120
      %v1201 = vunpack.c.h.b16 %v1119
      %v1202 = vunpack.c.h.b16 %v1120
      %v1203 = vunpack.c.l.b16 %v1121
      %v1204 = vunpack.c.l.b16 %v1122
      %v1205 = vunpack.c.h.b16 %v1121
      %v1206 = vunpack.c.h.b16 %v1122
      %v1207 = vunpack.c.l.b16 %v1123
      %v1208 = vunpack.c.l.b16 %v1124
      %v1209 = vunpack.c.h.b16 %v1123
      %v1210 = vunpack.c.h.b16 %v1124
      %v1211 = vunpack.c.l.b16 %v1125
      %v1212 = vunpack.c.l.b16 %v1126
      %v1213 = vunpack.c.h.b16 %v1125
      %v1214 = vunpack.c.h.b16 %v1126
      %v1215 = vunpack.c.l.b16 %v1127
      %v1216 = vunpack.c.l.b16 %v1128
      %v1217 = vunpack.c.h.b16 %v1127
      %v1218 = vunpack.c.h.b16 %v1128
      %v1219 = vunpack.c.l.b16 %v1129
      %v1220 = vunpack.c.l.b16 %v1130
      %v1221 = vunpack.c.h.b16 %v1129
      %v1222 = vunpack.c.h.b16 %v1130
      %v1223 = vunpack.c.l.b16 %v1131
      %v1224 = vunpack.c.l.b16 %v1132
      %v1225 = vunpack.c.h.b16 %v1131
      %v1226 = vunpack.c.h.b16 %v1132
      %v1227 = vunpack.c.l.b16 %v1133
      %v1228 = vunpack.c.l.b16 %v1134
      %v1229 = vunpack.c.h.b16 %v1133
      %v1230 = vunpack.c.h.b16 %v1134
      %v1231 = vpack.c.b16 %v1168, %v1167
      %v1232 = vpack.c.b16 %v1170, %v1169
      %v1233 = vpack.c.b16 %v1172, %v1171
      %v1234 = vpack.c.b16 %v1174, %v1173
      %v1235 = vpack.c.b16 %v1176, %v1175
      %v1236 = vpack.c.b16 %v1178, %v1177
      %v1237 = vpack.c.b16 %v1180, %v1179
      %v1238 = vpack.c.b16 %v1182, %v1181
      %v1239 = vpack.c.b16 %v1184, %v1183
      %v1240 = vpack.c.b16 %v1186, %v1185
      %v1241 = vpack.c.b16 %v1188, %v1187
      %v1242 = vpack.c.b16 %v1190, %v1189
      %v1243 = vpack.c.b16 %v1192, %v1191
      %v1244 = vpack.c.b16 %v1194, %v1193
      %v1245 = vpack.c.b16 %v1196, %v1195
      %v1246 = vpack.c.b16 %v1198, %v1197
      %v1247 = vpack.c.b16 %v1200, %v1199
      %v1248 = vpack.c.b16 %v1202, %v1201
      %v1249 = vpack.c.b16 %v1204, %v1203
      %v1250 = vpack.c.b16 %v1206, %v1205
      %v1251 = vpack.c.b16 %v1208, %v1207
      %v1252 = vpack.c.b16 %v1210, %v1209
      %v1253 = vpack.c.b16 %v1212, %v1211
      %v1254 = vpack.c.b16 %v1214, %v1213
      %v1255 = vpack.c.b16 %v1216, %v1215
      %v1256 = vpack.c.b16 %v1218, %v1217
      %v1257 = vpack.c.b16 %v1220, %v1219
      %v1258 = vpack.c.b16 %v1222, %v1221
      %v1259 = vpack.c.b16 %v1224, %v1223
      %v1260 = vpack.c.b16 %v1226, %v1225
      %v1261 = vpack.c.b16 %v1228, %v1227
      %v1262 = vpack.c.b16 %v1230, %v1229
      %1295 = vst [vmem:[%s143] sm:$0xff] %v1231
      %1296 = vst [vmem:[%s143 + $0x8] sm:$0xff] %v1232
      %1297 = vst [vmem:[%s143 + $0x10] sm:$0xff] %v1233
      %1298 = vst [vmem:[%s143 + $0x18] sm:$0xff] %v1234
      %1299 = vst [vmem:[%s143 + $0x20] sm:$0xff] %v1235
      %1300 = vst [vmem:[%s143 + $0x28] sm:$0xff] %v1236
      %1301 = vst [vmem:[%s143 + $0x30] sm:$0xff] %v1237
      %1302 = vst [vmem:[%s143 + $0x38] sm:$0xff] %v1238
      %1303 = vst [vmem:[%s143 + $0x40] sm:$0xff] %v1239
      %1304 = vst [vmem:[%s143 + $0x48] sm:$0xff] %v1240
      %1305 = vst [vmem:[%s143 + $0x50] sm:$0xff] %v1241
      %1306 = vst [vmem:[%s143 + $0x58] sm:$0xff] %v1242
      %1307 = vst [vmem:[%s143 + $0x60] sm:$0xff] %v1243
      %1308 = vst [vmem:[%s143 + $0x68] sm:$0xff] %v1244
      %1309 = vst [vmem:[%s143 + $0x70] sm:$0xff] %v1245
      %1310 = vst [vmem:[%s143 + $0x78] sm:$0xff] %v1246
      %1311 = vst [vmem:[%s143 + $0x80] sm:$0xff] %v1247
      %1312 = vst [vmem:[%s143 + $0x88] sm:$0xff] %v1248
      %1313 = vst [vmem:[%s143 + $0x90] sm:$0xff] %v1249
      %1314 = vst [vmem:[%s143 + $0x98] sm:$0xff] %v1250
      %1315 = vst [vmem:[%s143 + $0xa0] sm:$0xff] %v1251
      %1316 = vst [vmem:[%s143 + $0xa8] sm:$0xff] %v1252
      %1317 = vst [vmem:[%s143 + $0xb0] sm:$0xff] %v1253
      %1318 = vst [vmem:[%s143 + $0xb8] sm:$0xff] %v1254
      %1319 = vst [vmem:[%s143 + $0xc0] sm:$0xff] %v1255
      %1320 = vst [vmem:[%s143 + $0xc8] sm:$0xff] %v1256
      %1321 = vst [vmem:[%s143 + $0xd0] sm:$0xff] %v1257
      %1322 = vst [vmem:[%s143 + $0xd8] sm:$0xff] %v1258
      %1323 = vst [vmem:[%s143 + $0xe0] sm:$0xff] %v1259
      %1324 = vst [vmem:[%s143 + $0xe8] sm:$0xff] %v1260
      %1325 = vst [vmem:[%s143 + $0xf0] sm:$0xff] %v1261
      %1326 = vst [vmem:[%s143 + $0xf8] sm:$0xff] %v1262
      %p1327 = scmp.lt.s32.totalorder %s13, 1
      %s1328 = scalar_select %p1327, %s13, 1
      %s1329 = smul.addr %s1328, 64
      %s1330 = smul.addr %s1329, 4
      %s1331 = scalar_lea.vmem %s2, %s1330
      // Predicated region
      $region29: #{forward.6} parent=27 // pred_check
        %p1332 = pneg %p78
      $region30: #{forward.6} parent=27 // pred_check_branch
        %1334 = sbr.rel (%p1332) target = $region32
      $region31: #{forward.6} parent=27 // pred_region
        _
      $region32: #{forward.6} parent=27 // pred_fallthru
        _
    $region28: #{forward.6} parent=5 // pred_fallthru
      _
    %p1335 = scmp.le.s32.totalorder 2, %s8
    // Predicated region
    $region33: #{forward.6} parent=5 // pred_check
      %p1336 = pneg %p1335
    $region34: #{forward.6} parent=5 // pred_check_branch
      %1338 = sbr.rel (%p1336) target = $region36
    $region35: #{forward.6} parent=5 // pred_region
      %s1339 = ssub.s32 %s8, 2
      // Predicated region
      $region37: #{forward.6} parent=35 // pred_check
        %p1340 = pneg %p84
      $region38: #{forward.6} parent=35 // pred_check_branch
        %1342 = sbr.rel (%p1340) target = $region40
      $region39: #{forward.6} parent=35 // pred_region
        %p1343 = scmp.lt.s32.totalorder %s14, 1
        %s1344 = scalar_select %p1343, %s14, 1
        %s1345 = smul.addr %s1344, 64
        %s1346 = smul.addr %s1345, 4
        %s1347 = scalar_lea.vmem %s2, %s1346
      $region40: #{forward.6} parent=35 // pred_fallthru
        _
    $region36: #{forward.6} parent=5 // pred_fallthru
      _
  $region6: #{forward.6} parent=0 // loop_footer
    %s12 = sadd.s32 1, %s8
  $region7: #{forward.6} parent=0 // loop_footer_branch
    %7 = sbr.rel target = $region3
  $region8: #{forward.6} parent=0 // loop_exit
    _

// kernel: forward.7
$region0: #{forward.7}
  #allocation0 [shape = 'u32[]', space=smem, size = 0x4, offset = 0x4, fixed_abs, tag = 'smem constant byte address 0x4 - core index']
  #allocation1 [shape = 'u32[144,128]{1,0:T(1,128)}', space=vmem, size = 0x12000, scoped, tag = 'internal scratch']
  %s0 = inlined_call_operand.vmem [shape: f32[2,8,256], index: 0, kind: input, shape index: {}]
  %s1 = inlined_call_operand.vmem [shape: f32[8,8], index: 1, kind: input, shape index: {}]
  %s2 = inlined_call_operand.vmem [shape: f32[8,1], index: 2, kind: input, shape index: {}]
  %s3 = inlined_call_operand.vmem [shape: f32[8,8], index: 3, kind: input, shape index: {}]
  %s4 = inlined_call_operand.vmem [shape: f32[8,8], index: 4, kind: input, shape index: {}]
  %s5 = inlined_call_operand.vmem [shape: f32[8,1], index: 5, kind: input, shape index: {}]
  %s6 = inlined_call_operand.vmem [shape: f32[2,8,256], index: 6, kind: output, shape index: {}]
  %s7 = sld [smem:[#allocation0]]
  $region57: #{forward.7} parent=0
    _
  %s9 = ssub.s32 1, %s7
  %s10 = scalar_select 0, %s9, %s7
  loop: start=0, step=1, limit=4
  $region2: #{forward.7} parent=0 // loop_pre_header
    _
  $region3: #{forward.7} parent=0 // loop_header
    %s12 = sphi 0, %s16
    %p13 = scmp.ge.s32.totalorder %s12, 4
    %s22 = sphi 0, %s24
    %s25 = sphi 0, %s22
    %s26 = sphi 0, %s25
    %s42 = sphi 0, %s26
    %s46 = sphi 0, %s46
    %s48 = sphi 0, %s46
    %s49 = sphi 0, %s48
    %s63 = sphi 0, %s49
    %s67 = sphi 0, %s67
    %s69 = sphi 0, %s67
    %s70 = sphi 0, %s69
    %s84 = sphi 0, %s70
    %s88 = sphi 0, %s88
    %s90 = sphi 0, %s88
    %s91 = sphi 0, %s90
    %s105 = sphi 0, %s91
    %s109 = sphi 0, %s109
    %s111 = sphi 0, %s109
    %s112 = sphi 0, %s111
    %s126 = sphi 0, %s112
    %s130 = sphi 0, %s130
    %s132 = sphi 0, %s130
    %s133 = sphi 0, %s132
    %s147 = sphi 0, %s133
    %s153 = sphi 0, %s155
    %s156 = sphi 0, %s153
    %s157 = sphi 0, %s156
    %s173 = sphi 0, %s157
  $region4: #{forward.7} parent=0 // loop_header_branch
    %15 = sbr.rel (%p13) target = $region8
  $region5: #{forward.7} parent=0 // loop_body
    %s17 = ssub.s32 %s12, 1
    %s18 = ssub.s32 %s12, 2
    %s19 = sadd.s32 %s12, 1
    %s20 = ssub.s32 %s12, %s19
    %p21 = scmp.eq.s32.totalorder %s20, 0
    %s23 = sadd.s32 %s22, 1
    %s24 = scalar_select %p21, %s22, %s23
    %p27 = pneg %p21
    %p28 = scmp.eq.s32.totalorder %s12, 1
    %p29 = por %p27, %p28
    %p30 = scmp.ne.s32.totalorder %s22, %s25
    %p31 = scmp.eq.s32.totalorder %s12, 0
    %p32 = por %p30, %p31
    %p33 = scmp.ne.s32.totalorder %s22, %s25
    %p34 = scmp.eq.s32.totalorder %s17, 1
    %p35 = por %p33, %p34
    %p36 = scmp.ne.s32.totalorder %s25, %s26
    %p37 = scmp.eq.s32.totalorder %s17, 0
    %p38 = por %p36, %p37
    %p39 = scmp.ne.s32.totalorder %s25, %s26
    %p40 = scmp.eq.s32.totalorder %s18, 1
    %p41 = por %p39, %p40
    %p43 = scmp.ne.s32.totalorder %s26, %s42
    %p44 = scmp.eq.s32.totalorder %s18, 0
    %p45 = por %p43, %p44
    %s47 = sadd.s32 %s46, 1
    %p50 = scmp.eq.s32.totalorder %s12, 1
    %p51 = scmp.ne.s32.totalorder %s46, %s48
    %p52 = scmp.eq.s32.totalorder %s12, 0
    %p53 = por %p51, %p52
    %p54 = scmp.ne.s32.totalorder %s46, %s48
    %p55 = scmp.eq.s32.totalorder %s17, 1
    %p56 = por %p54, %p55
    %p57 = scmp.ne.s32.totalorder %s48, %s49
    %p58 = scmp.eq.s32.totalorder %s17, 0
    %p59 = por %p57, %p58
    %p60 = scmp.ne.s32.totalorder %s48, %s49
    %p61 = scmp.eq.s32.totalorder %s18, 1
    %p62 = por %p60, %p61
    %p64 = scmp.ne.s32.totalorder %s49, %s63
    %p65 = scmp.eq.s32.totalorder %s18, 0
    %p66 = por %p64, %p65
    %s68 = sadd.s32 %s67, 1
    %p71 = scmp.eq.s32.totalorder %s12, 1
    %p72 = scmp.ne.s32.totalorder %s67, %s69
    %p73 = scmp.eq.s32.totalorder %s12, 0
    %p74 = por %p72, %p73
    %p75 = scmp.ne.s32.totalorder %s67, %s69
    %p76 = scmp.eq.s32.totalorder %s17, 1
    %p77 = por %p75, %p76
    %p78 = scmp.ne.s32.totalorder %s69, %s70
    %p79 = scmp.eq.s32.totalorder %s17, 0
    %p80 = por %p78, %p79
    %p81 = scmp.ne.s32.totalorder %s69, %s70
    %p82 = scmp.eq.s32.totalorder %s18, 1
    %p83 = por %p81, %p82
    %p85 = scmp.ne.s32.totalorder %s70, %s84
    %p86 = scmp.eq.s32.totalorder %s18, 0
    %p87 = por %p85, %p86
    %s89 = sadd.s32 %s88, 1
    %p92 = scmp.eq.s32.totalorder %s12, 1
    %p93 = scmp.ne.s32.totalorder %s88, %s90
    %p94 = scmp.eq.s32.totalorder %s12, 0
    %p95 = por %p93, %p94
    %p96 = scmp.ne.s32.totalorder %s88, %s90
    %p97 = scmp.eq.s32.totalorder %s17, 1
    %p98 = por %p96, %p97
    %p99 = scmp.ne.s32.totalorder %s90, %s91
    %p100 = scmp.eq.s32.totalorder %s17, 0
    %p101 = por %p99, %p100
    %p102 = scmp.ne.s32.totalorder %s90, %s91
    %p103 = scmp.eq.s32.totalorder %s18, 1
    %p104 = por %p102, %p103
    %p106 = scmp.ne.s32.totalorder %s91, %s105
    %p107 = scmp.eq.s32.totalorder %s18, 0
    %p108 = por %p106, %p107
    %s110 = sadd.s32 %s109, 1
    %p113 = scmp.eq.s32.totalorder %s12, 1
    %p114 = scmp.ne.s32.totalorder %s109, %s111
    %p115 = scmp.eq.s32.totalorder %s12, 0
    %p116 = por %p114, %p115
    %p117 = scmp.ne.s32.totalorder %s109, %s111
    %p118 = scmp.eq.s32.totalorder %s17, 1
    %p119 = por %p117, %p118
    %p120 = scmp.ne.s32.totalorder %s111, %s112
    %p121 = scmp.eq.s32.totalorder %s17, 0
    %p122 = por %p120, %p121
    %p123 = scmp.ne.s32.totalorder %s111, %s112
    %p124 = scmp.eq.s32.totalorder %s18, 1
    %p125 = por %p123, %p124
    %p127 = scmp.ne.s32.totalorder %s112, %s126
    %p128 = scmp.eq.s32.totalorder %s18, 0
    %p129 = por %p127, %p128
    %s131 = sadd.s32 %s130, 1
    %p134 = scmp.eq.s32.totalorder %s12, 1
    %p135 = scmp.ne.s32.totalorder %s130, %s132
    %p136 = scmp.eq.s32.totalorder %s12, 0
    %p137 = por %p135, %p136
    %p138 = scmp.ne.s32.totalorder %s130, %s132
    %p139 = scmp.eq.s32.totalorder %s17, 1
    %p140 = por %p138, %p139
    %p141 = scmp.ne.s32.totalorder %s132, %s133
    %p142 = scmp.eq.s32.totalorder %s17, 0
    %p143 = por %p141, %p142
    %p144 = scmp.ne.s32.totalorder %s132, %s133
    %p145 = scmp.eq.s32.totalorder %s18, 1
    %p146 = por %p144, %p145
    %p148 = scmp.ne.s32.totalorder %s133, %s147
    %p149 = scmp.eq.s32.totalorder %s18, 0
    %p150 = por %p148, %p149
    %s151 = ssub.s32 %s12, %s19
    %p152 = scmp.eq.s32.totalorder %s151, 0
    %s154 = sadd.s32 %s153, 1
    %s155 = scalar_select %p152, %s153, %s154
    %p158 = pneg %p152
    %p159 = scmp.eq.s32.totalorder %s12, 1
    %p160 = por %p158, %p159
    %p161 = scmp.ne.s32.totalorder %s153, %s156
    %p162 = scmp.eq.s32.totalorder %s12, 0
    %p163 = por %p161, %p162
    %p164 = scmp.ne.s32.totalorder %s153, %s156
    %p165 = scmp.eq.s32.totalorder %s17, 1
    %p166 = por %p164, %p165
    %p167 = scmp.ne.s32.totalorder %s156, %s157
    %p168 = scmp.eq.s32.totalorder %s17, 0
    %p169 = por %p167, %p168
    %p170 = scmp.ne.s32.totalorder %s156, %s157
    %p171 = scmp.eq.s32.totalorder %s18, 1
    %p172 = por %p170, %p171
    %p174 = scmp.ne.s32.totalorder %s157, %s173
    %p175 = scmp.eq.s32.totalorder %s18, 0
    %p176 = por %p174, %p175
    %p177 = scmp.le.s32.totalorder 1, %s12
    %p178 = scmp.lt.s32.totalorder %s12, 3
    %p179 = pnand %p177, %p178
    %p180 = pneg %p179
    // Predicated region
    $region9: #{forward.7} parent=5 // pred_check
      _
    $region10: #{forward.7} parent=5 // pred_check_branch
      %182 = sbr.rel (%p179) target = $region12
    $region11: #{forward.7} parent=5 // pred_region
      %s183 = ssub.s32 %s12, 1
      // Predicated region
      $region13: #{forward.7} parent=11 // pred_check
        %p184 = pneg %p59
      $region14: #{forward.7} parent=11 // pred_check_branch
        %186 = sbr.rel (%p184) target = $region16
      $region15: #{forward.7} parent=11 // pred_region
        _
      $region16: #{forward.7} parent=11 // pred_fallthru
        _
      // Predicated region
      $region17: #{forward.7} parent=11 // pred_check
        %p187 = pneg %p80
      $region18: #{forward.7} parent=11 // pred_check_branch
        %189 = sbr.rel (%p187) target = $region20
      $region19: #{forward.7} parent=11 // pred_region
        _
      $region20: #{forward.7} parent=11 // pred_fallthru
        _
      // Predicated region
      $region21: #{forward.7} parent=11 // pred_check
        %p190 = pneg %p101
      $region22: #{forward.7} parent=11 // pred_check_branch
        %192 = sbr.rel (%p190) target = $region24
      $region23: #{forward.7} parent=11 // pred_region
        _
      $region24: #{forward.7} parent=11 // pred_fallthru
        _
      // Predicated region
      $region25: #{forward.7} parent=11 // pred_check
        %p193 = pneg %p122
      $region26: #{forward.7} parent=11 // pred_check_branch
        %195 = sbr.rel (%p193) target = $region28
      $region27: #{forward.7} parent=11 // pred_region
        _
      $region28: #{forward.7} parent=11 // pred_fallthru
        _
      // Predicated region
      $region29: #{forward.7} parent=11 // pred_check
        %p196 = pneg %p143
      $region30: #{forward.7} parent=11 // pred_check_branch
        %198 = sbr.rel (%p196) target = $region32
      $region31: #{forward.7} parent=11 // pred_region
        _
      $region32: #{forward.7} parent=11 // pred_fallthru
        _
    $region12: #{forward.7} parent=5 // pred_fallthru
      _
    %p199 = scmp.lt.s32.totalorder %s12, 2
    // Predicated region
    $region33: #{forward.7} parent=5 // pred_check
      %p200 = pneg %p199
    $region34: #{forward.7} parent=5 // pred_check_branch
      %202 = sbr.rel (%p200) target = $region36
    $region35: #{forward.7} parent=5 // pred_region
      // Predicated region
      $region37: #{forward.7} parent=35 // pred_check
        %p203 = pneg %p32
      $region38: #{forward.7} parent=35 // pred_check_branch
        %205 = sbr.rel (%p203) target = $region40
      $region39: #{forward.7} parent=35 // pred_region
        %p206 = scmp.lt.s32.totalorder %s12, 1
        %s207 = scalar_select %p206, %s12, 1
        %s208 = smul.addr %s207, 2
        %s209 = smul.addr %s208, 8
        %s210 = scalar_lea.vmem %s0, %s209
      $region40: #{forward.7} parent=35 // pred_fallthru
        _
    $region36: #{forward.7} parent=5 // pred_fallthru
      _
    %p211 = scmp.le.s32.totalorder 1, %s12
    %p212 = scmp.lt.s32.totalorder %s12, 3
    %p213 = pnand %p211, %p212
    %p214 = pneg %p213
    // Predicated region
    $region41: #{forward.7} parent=5 // pred_check
      _
    $region42: #{forward.7} parent=5 // pred_check_branch
      %216 = sbr.rel (%p213) target = $region44
    $region43: #{forward.7} parent=5 // pred_region
      %s217 = ssub.s32 %s12, 1
      %p218 = scmp.lt.s32.totalorder %s17, 1
      %s219 = scalar_select %p218, %s17, 1
      %s220 = smul.addr %s219, 2
      %s221 = smul.addr %s220, 8
      %s222 = scalar_lea.vmem %s0, %s221
      %p223 = pneg %p38
      %p224 = pneg %p35
      %p225 = pneg %p59
      %p226 = pneg %p56
      %p227 = pneg %p80
      %p228 = pneg %p77
      %p229 = pneg %p101
      %p230 = pneg %p98
      %p231 = pneg %p122
      %p232 = pneg %p119
      %p233 = pneg %p143
      %p234 = pneg %p140
      %p235 = pneg %p169
      %p236 = pneg %p166
      %p237 = scmp.lt.s32.totalorder %s17, 1
      %s238 = scalar_select %p237, %s17, 1
      %s239 = smul.addr %s238, 2
      %s240 = smul.addr %s239, 8
      %s241 = scalar_lea.vmem %s6, %s240
      %p242 = scmp.lt.s32.totalorder %s17, 1
      %s243 = scalar_select %p242, %s17, 1
      %s244 = smul.addr %s243, 2
      %s245 = smul.addr %s244, 8
      %s246 = scalar_lea.vmem %s0, %s245
      %p247 = scmp.lt.s32.totalorder %s17, 1
      %s248 = scalar_select %p247, %s17, 1
      %s249 = smul.addr %s248, 2
      %s250 = smul.addr %s249, 8
      %s251 = scalar_lea.vmem %s6, %s250
      %v252 = vld [vmem:[%s246] sm:$0xff]
      %v253 = vld [vmem:[%s246 + $0x8] sm:$0xff]
      %v254 = vld [vmem:[%s1] sm:$0xff]
      %v255 = vld [vmem:[%s2] sm:$0xff]
      %257 = vset.pattern.permute.xlu0 0
      %258 = vperm.xlu0 %257, %v255
      %v259 = vpop.permute.xlu0 %258
      %vm261 = vcmask 64512
      %v263 = vsel %vm261, %v254, 0
      %265 = vmatprep.subr.mxu0 %v253
      %266 = vmatpush1.msra.mxu0 %v252
      %267 = vmatprep.subr.mxu0 0.0
      %268 = vmatpush1.msra.mxu0 0.0
      %269 = vmatprep.subr.mxu0 0.0
      %270 = vmatpush1.msra.mxu0 0.0
      %271 = vmatprep.subr.mxu0 0.0
      %272 = vmatpush1.msra.mxu0 0.0
      %273 = vmatprep.subr.mxu0 0.0
      %274 = vmatpush1.msra.mxu0 0.0
      %275 = vmatprep.subr.mxu0 0.0
      %276 = vmatpush1.msra.mxu0 0.0
      %277 = vmatprep.subr.mxu0 0.0
      %278 = vmatpush1.msra.mxu0 0.0
      %279 = vmatprep.subr.mxu0 0.0
      %280 = vmatpush1.msra.mxu0 0.0
      %281 = vmatprep.subr.mxu0 0.0
      %282 = vmatpush1.msra.mxu0 0.0
      %283 = vmatprep.subr.mxu0 0.0
      %284 = vmatpush1.msra.mxu0 0.0
      %285 = vmatprep.subr.mxu0 0.0
      %286 = vmatpush1.msra.mxu0 0.0
      %287 = vmatprep.subr.mxu0 0.0
      %288 = vmatpush1.msra.mxu0 0.0
      %289 = vmatprep.subr.mxu0 0.0
      %290 = vmatpush1.msra.mxu0 0.0
      %291 = vmatprep.subr.mxu0 0.0
      %292 = vmatpush1.msra.mxu0 0.0
      %293 = vmatprep.subr.mxu0 0.0
      %294 = vmatpush1.msra.mxu0 0.0
      %295 = vmatprep.subr.mxu0 0.0
      %296 = vmatpush1.msra.mxu0 0.0
      %297 = vmatprep.subr.mxu0 0.0
      %298 = vmatpush1.msra.mxu0 0.0
      %299 = vmatprep.subr.mxu0 0.0
      %300 = vmatpush1.msra.mxu0 0.0
      %301 = vmatprep.subr.mxu0 0.0
      %302 = vmatpush1.msra.mxu0 0.0
      %303 = vmatprep.subr.mxu0 0.0
      %304 = vmatpush1.msra.mxu0 0.0
      %305 = vmatprep.subr.mxu0 0.0
      %306 = vmatpush1.msra.mxu0 0.0
      %307 = vmatprep.subr.mxu0 0.0
      %308 = vmatpush1.msra.mxu0 0.0
      %309 = vmatprep.subr.mxu0 0.0
      %310 = vmatpush1.msra.mxu0 0.0
      %311 = vmatprep.subr.mxu0 0.0
      %312 = vmatpush1.msra.mxu0 0.0
      %313 = vmatprep.subr.mxu0 0.0
      %314 = vmatpush1.msra.mxu0 0.0
      %315 = vmatprep.subr.mxu0 0.0
      %316 = vmatpush1.msra.mxu0 0.0
      %317 = vmatprep.subr.mxu0 0.0
      %318 = vmatpush1.msra.mxu0 0.0
      %319 = vmatprep.subr.mxu0 0.0
      %320 = vmatpush1.msra.mxu0 0.0
      %321 = vmatprep.subr.mxu0 0.0
      %322 = vmatpush1.msra.mxu0 0.0
      %323 = vmatprep.subr.mxu0 0.0
      %324 = vmatpush1.msra.mxu0 0.0
      %325 = vmatprep.subr.mxu0 0.0
      %326 = vmatpush1.msra.mxu0 0.0
      %327 = vmatprep.subr.mxu0 0.0
      %328 = vmatpush1.msra.mxu0 0.0
      %329 = vmatprep.mubr.f32.mxu0 0.0
      %330 = vmatmul.mubr.f32.gmra.mrb[0].mxu0 %v263
      %v331 = vpop.f32.mrb[0].mxu0
      %v332 = vadd.f32 %v259, %v331
      %v333 = vpop.f32.mrb[0].mxu0
      %v334 = vadd.f32 %v259, %v333
      %335 = vdwg.mxu0
      %v336 = vmax.f32 %v332, 0.0
      %v337 = vmax.f32 %v334, 0.0
      %v338 = vadd.f32 %v336, %v337
      %339 = vadd.xlane.f32.xlu0 %v338
      %v340 = vpop.xlane.xlu0 %339
      %v341 = vrcp.pop 256.0
      %v342 = vmul.f32 %v340, %v341
      %v343 = vld [vmem:[%s3] sm:$0xff]
      %v345 = vsel %vm261, %v343, 0
      %347 = vmatprep.subr.mxu0 0.0
      %348 = vmatpush1.msra.mxu0 %v342
      %349 = vmatprep.subr.mxu0 0.0
      %350 = vmatpush1.msra.mxu0 0.0
      %351 = vmatprep.subr.mxu0 0.0
      %352 = vmatpush1.msra.mxu0 0.0
      %353 = vmatprep.subr.mxu0 0.0
      %354 = vmatpush1.msra.mxu0 0.0
      %355 = vmatprep.subr.mxu0 0.0
      %356 = vmatpush1.msra.mxu0 0.0
      %357 = vmatprep.subr.mxu0 0.0
      %358 = vmatpush1.msra.mxu0 0.0
      %359 = vmatprep.subr.mxu0 0.0
      %360 = vmatpush1.msra.mxu0 0.0
      %361 = vmatprep.subr.mxu0 0.0
      %362 = vmatpush1.msra.mxu0 0.0
      %363 = vmatprep.subr.mxu0 0.0
      %364 = vmatpush1.msra.mxu0 0.0
      %365 = vmatprep.subr.mxu0 0.0
      %366 = vmatpush1.msra.mxu0 0.0
      %367 = vmatprep.subr.mxu0 0.0
      %368 = vmatpush1.msra.mxu0 0.0
      %369 = vmatprep.subr.mxu0 0.0
      %370 = vmatpush1.msra.mxu0 0.0
      %371 = vmatprep.subr.mxu0 0.0
      %372 = vmatpush1.msra.mxu0 0.0
      %373 = vmatprep.subr.mxu0 0.0
      %374 = vmatpush1.msra.mxu0 0.0
      %375 = vmatprep.subr.mxu0 0.0
      %376 = vmatpush1.msra.mxu0 0.0
      %377 = vmatprep.subr.mxu0 0.0
      %378 = vmatpush1.msra.mxu0 0.0
      %379 = vmatprep.subr.mxu0 0.0
      %380 = vmatpush1.msra.mxu0 0.0
      %381 = vmatprep.subr.mxu0 0.0
      %382 = vmatpush1.msra.mxu0 0.0
      %383 = vmatprep.subr.mxu0 0.0
      %384 = vmatpush1.msra.mxu0 0.0
      %385 = vmatprep.subr.mxu0 0.0
      %386 = vmatpush1.msra.mxu0 0.0
      %387 = vmatprep.subr.mxu0 0.0
      %388 = vmatpush1.msra.mxu0 0.0
      %389 = vmatprep.subr.mxu0 0.0
      %390 = vmatpush1.msra.mxu0 0.0
      %391 = vmatprep.subr.mxu0 0.0
      %392 = vmatpush1.msra.mxu0 0.0
      %393 = vmatprep.subr.mxu0 0.0
      %394 = vmatpush1.msra.mxu0 0.0
      %395 = vmatprep.subr.mxu0 0.0
      %396 = vmatpush1.msra.mxu0 0.0
      %397 = vmatprep.subr.mxu0 0.0
      %398 = vmatpush1.msra.mxu0 0.0
      %399 = vmatprep.subr.mxu0 0.0
      %400 = vmatpush1.msra.mxu0 0.0
      %401 = vmatprep.subr.mxu0 0.0
      %402 = vmatpush1.msra.mxu0 0.0
      %403 = vmatprep.subr.mxu0 0.0
      %404 = vmatpush1.msra.mxu0 0.0
      %405 = vmatprep.subr.mxu0 0.0
      %406 = vmatpush1.msra.mxu0 0.0
      %407 = vmatprep.subr.mxu0 0.0
      %408 = vmatpush1.msra.mxu0 0.0
      %409 = vmatprep.subr.mxu0 0.0
      %410 = vmatpush1.msra.mxu0 0.0
      %411 = vmatprep.mubr.f32.mxu0 0.0
      %412 = vmatmul.mubr.f32.gmra.mrb[0].mxu0 %v345
      %v413 = vpop.f32.mrb[0].mxu0
      %v414 = vadd.f32 0.0, %v413
      %v415 = vpop.f32.mrb[0].mxu0
      %416 = vdwg.mxu0
      %v417 = vmul.f32 %v414, 0.5
      %v418 = vtanh.pop %v417
      %v419 = vadd.f32 %v418, 1.0
      %v420 = vmul.f32 %v419, 0.5
      %v421 = vld [vmem:[%s4] sm:$0xff]
      %423 = vset.pattern.permute.xlu0 0
      %424 = vperm.xlu0 %423, %v420
      %v425 = vpop.permute.xlu0 %424
      %v427 = vmul.f32 %v336, %v425
      %v428 = vmul.f32 %v337, %v425
      %v429 = vld [vmem:[%s5] sm:$0xff]
      %431 = vset.pattern.permute.xlu0 0
      %432 = vperm.xlu0 %431, %v429
      %v433 = vpop.permute.xlu0 %432
      %v436 = vsel %vm261, %v421, 0
      %438 = vmatprep.subr.mxu0 %v428
      %439 = vmatpush1.msra.mxu0 %v427
      %440 = vmatprep.subr.mxu0 0.0
      %441 = vmatpush1.msra.mxu0 0.0
      %442 = vmatprep.subr.mxu0 0.0
      %443 = vmatpush1.msra.mxu0 0.0
      %444 = vmatprep.subr.mxu0 0.0
      %445 = vmatpush1.msra.mxu0 0.0
      %446 = vmatprep.subr.mxu0 0.0
      %447 = vmatpush1.msra.mxu0 0.0
      %448 = vmatprep.subr.mxu0 0.0
      %449 = vmatpush1.msra.mxu0 0.0
      %450 = vmatprep.subr.mxu0 0.0
      %451 = vmatpush1.msra.mxu0 0.0
      %452 = vmatprep.subr.mxu0 0.0
      %453 = vmatpush1.msra.mxu0 0.0
      %454 = vmatprep.subr.mxu0 0.0
      %455 = vmatpush1.msra.mxu0 0.0
      %456 = vmatprep.subr.mxu0 0.0
      %457 = vmatpush1.msra.mxu0 0.0
      %458 = vmatprep.subr.mxu0 0.0
      %459 = vmatpush1.msra.mxu0 0.0
      %460 = vmatprep.subr.mxu0 0.0
      %461 = vmatpush1.msra.mxu0 0.0
      %462 = vmatprep.subr.mxu0 0.0
      %463 = vmatpush1.msra.mxu0 0.0
      %464 = vmatprep.subr.mxu0 0.0
      %465 = vmatpush1.msra.mxu0 0.0
      %466 = vmatprep.subr.mxu0 0.0
      %467 = vmatpush1.msra.mxu0 0.0
      %468 = vmatprep.subr.mxu0 0.0
      %469 = vmatpush1.msra.mxu0 0.0
      %470 = vmatprep.subr.mxu0 0.0
      %471 = vmatpush1.msra.mxu0 0.0
      %472 = vmatprep.subr.mxu0 0.0
      %473 = vmatpush1.msra.mxu0 0.0
      %474 = vmatprep.subr.mxu0 0.0
      %475 = vmatpush1.msra.mxu0 0.0
      %476 = vmatprep.subr.mxu0 0.0
      %477 = vmatpush1.msra.mxu0 0.0
      %478 = vmatprep.subr.mxu0 0.0
      %479 = vmatpush1.msra.mxu0 0.0
      %480 = vmatprep.subr.mxu0 0.0
      %481 = vmatpush1.msra.mxu0 0.0
      %482 = vmatprep.subr.mxu0 0.0
      %483 = vmatpush1.msra.mxu0 0.0
      %484 = vmatprep.subr.mxu0 0.0
      %485 = vmatpush1.msra.mxu0 0.0
      %486 = vmatprep.subr.mxu0 0.0
      %487 = vmatpush1.msra.mxu0 0.0
      %488 = vmatprep.subr.mxu0 0.0
      %489 = vmatpush1.msra.mxu0 0.0
      %490 = vmatprep.subr.mxu0 0.0
      %491 = vmatpush1.msra.mxu0 0.0
      %492 = vmatprep.subr.mxu0 0.0
      %493 = vmatpush1.msra.mxu0 0.0
      %494 = vmatprep.subr.mxu0 0.0
      %495 = vmatpush1.msra.mxu0 0.0
      %496 = vmatprep.subr.mxu0 0.0
      %497 = vmatpush1.msra.mxu0 0.0
      %498 = vmatprep.subr.mxu0 0.0
      %499 = vmatpush1.msra.mxu0 0.0
      %500 = vmatprep.subr.mxu0 0.0
      %501 = vmatpush1.msra.mxu0 0.0
      %502 = vmatprep.mubr.f32.mxu0 0.0
      %503 = vmatmul.mubr.f32.gmra.mrb[0].mxu0 %v436
      %v504 = vpop.f32.mrb[0].mxu0
      %v505 = vadd.f32 %v433, %v504
      %v506 = vpop.f32.mrb[0].mxu0
      %v507 = vadd.f32 %v433, %v506
      %508 = vdwg.mxu0
      %v509 = vmax.f32 %v505, 0.0
      %v510 = vmax.f32 %v507, 0.0
      %511 = vst [vmem:[%s251] sm:$0xff] %v509
      %512 = vst [vmem:[%s251 + $0x8] sm:$0xff] %v510
      %p513 = scmp.lt.s32.totalorder %s17, 1
      %s514 = scalar_select %p513, %s17, 1
      %s515 = smul.addr %s514, 2
      %s516 = smul.addr %s515, 8
      %s517 = scalar_lea.vmem %s6, %s516
      // Predicated region
      $region45: #{forward.7} parent=43 // pred_check
        %p518 = pneg %p166
      $region46: #{forward.7} parent=43 // pred_check_branch
        %520 = sbr.rel (%p518) target = $region48
      $region47: #{forward.7} parent=43 // pred_region
        _
      $region48: #{forward.7} parent=43 // pred_fallthru
        _
    $region44: #{forward.7} parent=5 // pred_fallthru
      _
    %p521 = scmp.le.s32.totalorder 2, %s12
    // Predicated region
    $region49: #{forward.7} parent=5 // pred_check
      %p522 = pneg %p521
    $region50: #{forward.7} parent=5 // pred_check_branch
      %524 = sbr.rel (%p522) target = $region52
    $region51: #{forward.7} parent=5 // pred_region
      %s525 = ssub.s32 %s12, 2
      // Predicated region
      $region53: #{forward.7} parent=51 // pred_check
        %p526 = pneg %p172
      $region54: #{forward.7} parent=51 // pred_check_branch
        %528 = sbr.rel (%p526) target = $region56
      $region55: #{forward.7} parent=51 // pred_region
        %p529 = scmp.lt.s32.totalorder %s18, 1
        %s530 = scalar_select %p529, %s18, 1
        %s531 = smul.addr %s530, 2
        %s532 = smul.addr %s531, 8
        %s533 = scalar_lea.vmem %s6, %s532
      $region56: #{forward.7} parent=51 // pred_fallthru
        _
    $region52: #{forward.7} parent=5 // pred_fallthru
      _
  $region6: #{forward.7} parent=0 // loop_footer
    %s16 = sadd.s32 1, %s12
  $region7: #{forward.7} parent=0 // loop_footer_branch
    %11 = sbr.rel target = $region3
  $region8: #{forward.7} parent=0 // loop_exit
    _

// kernel: forward.8
$region0: #{forward.8}
  #allocation0 [shape = 'u32[]', space=smem, size = 0x4, offset = 0x4, fixed_abs, tag = 'smem constant byte address 0x4 - core index']
  #allocation1 [shape = 'u32[144,128]{1,0:T(1,128)}', space=vmem, size = 0x12000, scoped, tag = 'internal scratch']
  %s0 = inlined_call_operand.vmem [shape: bf16[2,72,256], index: 0, kind: input, shape index: {}]
  %s1 = inlined_call_operand.vmem [shape: bf16[16,72], index: 1, kind: input, shape index: {}]
  %s2 = inlined_call_operand.vmem [shape: f32[16,1], index: 2, kind: input, shape index: {}]
  %s3 = inlined_call_operand.vmem [shape: bf16[2,16,256], index: 3, kind: output, shape index: {}]
  %s4 = sld [smem:[#allocation0]]
  $region45: #{forward.8} parent=0
    _
  %s6 = ssub.s32 1, %s4
  %s7 = scalar_select 0, %s6, %s4
  loop: start=0, step=1, limit=4
  $region2: #{forward.8} parent=0 // loop_pre_header
    _
  $region3: #{forward.8} parent=0 // loop_header
    %s9 = sphi 0, %s13
    %p10 = scmp.ge.s32.totalorder %s9, 4
    %s16 = sphi 0, %s28
    %s17 = sphi 0, %s24
    %s18 = sphi 0, %s16
    %s19 = sphi 0, %s17
    %s20 = sphi 0, %s18
    %s21 = sphi 0, %s19
    %s33 = sphi 0, %s35
    %s36 = sphi 0, %s33
    %s37 = sphi 0, %s36
    %s53 = sphi 0, %s37
    %s57 = sphi 0, %s57
    %s59 = sphi 0, %s57
    %s60 = sphi 0, %s59
    %s74 = sphi 0, %s60
    %s78 = sphi 0, %s78
    %s80 = sphi 0, %s78
    %s81 = sphi 0, %s80
    %s95 = sphi 0, %s81
    %s103 = sphi 0, %s105
    %s106 = sphi 0, %s103
    %s107 = sphi 0, %s106
    %s123 = sphi 0, %s107
  $region4: #{forward.8} parent=0 // loop_header_branch
    %12 = sbr.rel (%p10) target = $region8
  $region5: #{forward.8} parent=0 // loop_body
    %s14 = ssub.s32 %s9, 1
    %s15 = ssub.s32 %s9, 2
    %s22 = sadd.s32 1, %s17
    %p23 = scmp.ge.s32.totalorder %s22, 1
    %s24 = scalar_select %p23, 0, %s22
    %s25 = sadd.s32 1, %s16
    %s26 = scalar_select %p23, %s25, %s16
    %p27 = scmp.ge.s32.totalorder %s26, 2
    %s28 = scalar_select %p27, 0, %s26
    %s29 = ssub.s32 %s16, %s28
    %s30 = ssub.s32 %s17, %s24
    %s31 = sor.u32 %s29, %s30
    %p32 = scmp.eq.s32.totalorder %s31, 0
    %s34 = sadd.s32 %s33, 1
    %s35 = scalar_select %p32, %s33, %s34
    %p38 = pneg %p32
    %p39 = scmp.eq.s32.totalorder %s9, 1
    %p40 = por %p38, %p39
    %p41 = scmp.ne.s32.totalorder %s33, %s36
    %p42 = scmp.eq.s32.totalorder %s9, 0
    %p43 = por %p41, %p42
    %p44 = scmp.ne.s32.totalorder %s33, %s36
    %p45 = scmp.eq.s32.totalorder %s14, 1
    %p46 = por %p44, %p45
    %p47 = scmp.ne.s32.totalorder %s36, %s37
    %p48 = scmp.eq.s32.totalorder %s14, 0
    %p49 = por %p47, %p48
    %p50 = scmp.ne.s32.totalorder %s36, %s37
    %p51 = scmp.eq.s32.totalorder %s15, 1
    %p52 = por %p50, %p51
    %p54 = scmp.ne.s32.totalorder %s37, %s53
    %p55 = scmp.eq.s32.totalorder %s15, 0
    %p56 = por %p54, %p55
    %s58 = sadd.s32 %s57, 1
    %p61 = scmp.eq.s32.totalorder %s9, 1
    %p62 = scmp.ne.s32.totalorder %s57, %s59
    %p63 = scmp.eq.s32.totalorder %s9, 0
    %p64 = por %p62, %p63
    %p65 = scmp.ne.s32.totalorder %s57, %s59
    %p66 = scmp.eq.s32.totalorder %s14, 1
    %p67 = por %p65, %p66
    %p68 = scmp.ne.s32.totalorder %s59, %s60
    %p69 = scmp.eq.s32.totalorder %s14, 0
    %p70 = por %p68, %p69
    %p71 = scmp.ne.s32.totalorder %s59, %s60
    %p72 = scmp.eq.s32.totalorder %s15, 1
    %p73 = por %p71, %p72
    %p75 = scmp.ne.s32.totalorder %s60, %s74
    %p76 = scmp.eq.s32.totalorder %s15, 0
    %p77 = por %p75, %p76
    %s79 = sadd.s32 %s78, 1
    %p82 = scmp.eq.s32.totalorder %s9, 1
    %p83 = scmp.ne.s32.totalorder %s78, %s80
    %p84 = scmp.eq.s32.totalorder %s9, 0
    %p85 = por %p83, %p84
    %p86 = scmp.ne.s32.totalorder %s78, %s80
    %p87 = scmp.eq.s32.totalorder %s14, 1
    %p88 = por %p86, %p87
    %p89 = scmp.ne.s32.totalorder %s80, %s81
    %p90 = scmp.eq.s32.totalorder %s14, 0
    %p91 = por %p89, %p90
    %p92 = scmp.ne.s32.totalorder %s80, %s81
    %p93 = scmp.eq.s32.totalorder %s15, 1
    %p94 = por %p92, %p93
    %p96 = scmp.ne.s32.totalorder %s81, %s95
    %p97 = scmp.eq.s32.totalorder %s15, 0
    %p98 = por %p96, %p97
    %s99 = ssub.s32 %s16, %s28
    %s100 = ssub.s32 %s17, %s24
    %s101 = sor.u32 %s99, %s100
    %p102 = scmp.eq.s32.totalorder %s101, 0
    %s104 = sadd.s32 %s103, 1
    %s105 = scalar_select %p102, %s103, %s104
    %p108 = pneg %p102
    %p109 = scmp.eq.s32.totalorder %s9, 1
    %p110 = por %p108, %p109
    %p111 = scmp.ne.s32.totalorder %s103, %s106
    %p112 = scmp.eq.s32.totalorder %s9, 0
    %p113 = por %p111, %p112
    %p114 = scmp.ne.s32.totalorder %s103, %s106
    %p115 = scmp.eq.s32.totalorder %s14, 1
    %p116 = por %p114, %p115
    %p117 = scmp.ne.s32.totalorder %s106, %s107
    %p118 = scmp.eq.s32.totalorder %s14, 0
    %p119 = por %p117, %p118
    %p120 = scmp.ne.s32.totalorder %s106, %s107
    %p121 = scmp.eq.s32.totalorder %s15, 1
    %p122 = por %p120, %p121
    %p124 = scmp.ne.s32.totalorder %s107, %s123
    %p125 = scmp.eq.s32.totalorder %s15, 0
    %p126 = por %p124, %p125
    %p127 = scmp.le.s32.totalorder 1, %s9
    %p128 = scmp.lt.s32.totalorder %s9, 3
    %p129 = pnand %p127, %p128
    %p130 = pneg %p129
    // Predicated region
    $region9: #{forward.8} parent=5 // pred_check
      _
    $region10: #{forward.8} parent=5 // pred_check_branch
      %132 = sbr.rel (%p129) target = $region12
    $region11: #{forward.8} parent=5 // pred_region
      %s133 = ssub.s32 %s9, 1
      // Predicated region
      $region13: #{forward.8} parent=11 // pred_check
        %p134 = pneg %p70
      $region14: #{forward.8} parent=11 // pred_check_branch
        %136 = sbr.rel (%p134) target = $region16
      $region15: #{forward.8} parent=11 // pred_region
        _
      $region16: #{forward.8} parent=11 // pred_fallthru
        _
      // Predicated region
      $region17: #{forward.8} parent=11 // pred_check
        %p137 = pneg %p91
      $region18: #{forward.8} parent=11 // pred_check_branch
        %139 = sbr.rel (%p137) target = $region20
      $region19: #{forward.8} parent=11 // pred_region
        _
      $region20: #{forward.8} parent=11 // pred_fallthru
        _
    $region12: #{forward.8} parent=5 // pred_fallthru
      _
    %p140 = scmp.lt.s32.totalorder %s9, 2
    // Predicated region
    $region21: #{forward.8} parent=5 // pred_check
      %p141 = pneg %p140
    $region22: #{forward.8} parent=5 // pred_check_branch
      %143 = sbr.rel (%p141) target = $region24
    $region23: #{forward.8} parent=5 // pred_region
      // Predicated region
      $region25: #{forward.8} parent=23 // pred_check
        %p144 = pneg %p43
      $region26: #{forward.8} parent=23 // pred_check_branch
        %146 = sbr.rel (%p144) target = $region28
      $region27: #{forward.8} parent=23 // pred_region
        %s147 = smul.u32 2, %s17
        %p148 = scmp.lt.s32.totalorder %s16, 1
        %s149 = scalar_select %p148, %s16, 1
        %p150 = scmp.lt.s32.totalorder %s147, 1
        %s151 = scalar_select %p150, %s147, 1
        %s152 = smul.addr %s149, 18
        %s153 = sadd.s32 %s151, %s152
        %s154 = smul.addr %s153, 4
        %s155 = scalar_lea.vmem %s0, %s154
        %s156 = smul.u32 2, %s17
      $region28: #{forward.8} parent=23 // pred_fallthru
        _
    $region24: #{forward.8} parent=5 // pred_fallthru
      _
    %p157 = scmp.le.s32.totalorder 1, %s9
    %p158 = scmp.lt.s32.totalorder %s9, 3
    %p159 = pnand %p157, %p158
    %p160 = pneg %p159
    // Predicated region
    $region29: #{forward.8} parent=5 // pred_check
      _
    $region30: #{forward.8} parent=5 // pred_check_branch
      %162 = sbr.rel (%p159) target = $region32
    $region31: #{forward.8} parent=5 // pred_region
      %s163 = ssub.s32 %s9, 1
      %s164 = smul.u32 2, %s19
      %p165 = scmp.lt.s32.totalorder %s18, 1
      %s166 = scalar_select %p165, %s18, 1
      %p167 = scmp.lt.s32.totalorder %s164, 1
      %s168 = scalar_select %p167, %s164, 1
      %s169 = smul.addr %s166, 18
      %s170 = sadd.s32 %s168, %s169
      %s171 = smul.addr %s170, 4
      %s172 = scalar_lea.vmem %s0, %s171
      %p173 = pneg %p49
      %p174 = pneg %p46
      %p175 = pneg %p70
      %p176 = pneg %p67
      %p177 = pneg %p91
      %p178 = pneg %p88
      %p179 = pneg %p119
      %p180 = pneg %p116
      %s181 = smul.u32 2, %s19
      %p182 = scmp.lt.s32.totalorder %s18, 1
      %s183 = scalar_select %p182, %s18, 1
      %p184 = scmp.lt.s32.totalorder %s181, 1
      %s185 = scalar_select %p184, %s181, 1
      %s186 = smul.addr %s183, 4
      %s187 = sadd.s32 %s185, %s186
      %s188 = smul.addr %s187, 4
      %s189 = scalar_lea.vmem %s3, %s188
      %s190 = smul.u32 2, %s19
      %p191 = scmp.lt.s32.totalorder %s18, 1
      %s192 = scalar_select %p191, %s18, 1
      %p193 = scmp.lt.s32.totalorder %s190, 1
      %s194 = scalar_select %p193, %s190, 1
      %s195 = smul.addr %s192, 18
      %s196 = sadd.s32 %s194, %s195
      %s197 = smul.addr %s196, 4
      %s198 = scalar_lea.vmem %s0, %s197
      %s199 = smul.u32 2, %s19
      %s200 = smul.u32 2, %s19
      %p201 = scmp.lt.s32.totalorder %s18, 1
      %s202 = scalar_select %p201, %s18, 1
      %p203 = scmp.lt.s32.totalorder %s200, 1
      %s204 = scalar_select %p203, %s200, 1
      %s205 = smul.addr %s202, 4
      %s206 = sadd.s32 %s204, %s205
      %s207 = smul.addr %s206, 4
      %s208 = scalar_lea.vmem %s3, %s207
      %s209 = smul.u32 2, %s19
      %v211 = vld [vmem:[%s1] sm:$0xf]
      %v212 = vld [vmem:[%s1 + $0x4] sm:$0xf]
      %v213 = vld [vmem:[%s198] sm:$0xff]
      %v214 = vld [vmem:[%s198 + $0x8] sm:$0xff]
      %v215 = vld [vmem:[%s198 + $0x10] sm:$0xff]
      %v216 = vld [vmem:[%s198 + $0x18] sm:$0xff]
      %v217 = vld [vmem:[%s198 + $0x20] sm:$0xff]
      %v218 = vld [vmem:[%s198 + $0x28] sm:$0xff]
      %v219 = vld [vmem:[%s198 + $0x30] sm:$0xff]
      %v220 = vld [vmem:[%s198 + $0x38] sm:$0xff]
      %v221 = vld [vmem:[%s198 + $0x40] sm:$0xff]
      %v222 = vld [vmem:[%s2] sm:$0xff]
      %v223 = vld [vmem:[%s2 + $0x8] sm:$0xff]
      %225 = vset.pattern.permute.xlu0 0
      %226 = vperm.xlu0 %225, %v222
      %v227 = vpop.permute.xlu0 %226
      %230 = vset.pattern.permute.xlu0 0
      %231 = vperm.xlu0 %230, %v223
      %v232 = vpop.permute.xlu0 %231
      %v236 = vunpack.c.l.b16 %v211
      %v237 = vunpack.c.l.b16 %v212
      %v238 = vpack.c.b16 %v237, %v236
      %v248 = vunpack.c.l.b16 %v213
      %v249 = vunpack.c.h.b16 %v213
      %v250 = vunpack.c.l.b16 %v214
      %v251 = vunpack.c.h.b16 %v214
      %v252 = vunpack.c.l.b16 %v215
      %v253 = vunpack.c.h.b16 %v215
      %v254 = vunpack.c.l.b16 %v216
      %v255 = vunpack.c.h.b16 %v216
      %v256 = vunpack.c.l.b16 %v217
      %v257 = vunpack.c.h.b16 %v217
      %v258 = vunpack.c.l.b16 %v218
      %v259 = vunpack.c.h.b16 %v218
      %v260 = vunpack.c.l.b16 %v219
      %v261 = vunpack.c.h.b16 %v219
      %v262 = vunpack.c.l.b16 %v220
      %v263 = vunpack.c.h.b16 %v220
      %v264 = vunpack.c.l.b16 %v221
      %v265 = vunpack.c.h.b16 %v221
      %v266 = vpack.c.b16 %v250, %v248
      %v267 = vpack.c.b16 %v251, %v249
      %v268 = vpack.c.b16 %v254, %v252
      %v269 = vpack.c.b16 %v255, %v253
      %v270 = vpack.c.b16 %v258, %v256
      %v271 = vpack.c.b16 %v259, %v257
      %v272 = vpack.c.b16 %v262, %v260
      %v273 = vpack.c.b16 %v263, %v261
      %v274 = vpack.c.b16 %v264, %v264
      %v275 = vpack.c.b16 %v265, %v265
      %vm284 = vcmask 588800
      %v286 = vsel %vm284, %v238, 0
      %vm288 = vcmask 1043456
      %v290 = vsel %vm288, %v274, 0
      %v293 = vsel %vm288, %v275, 0
      %295 = vmatprep.subr.bf16.mxu0 %v267
      %296 = vmatpush1.bf16.msra.mxu0 %v266
      %297 = vmatprep.subr.bf16.mxu0 %v269
      %298 = vmatpush1.bf16.msra.mxu0 %v268
      %299 = vmatprep.subr.bf16.mxu0 %v271
      %300 = vmatpush1.bf16.msra.mxu0 %v270
      %301 = vmatprep.subr.bf16.mxu0 %v273
      %302 = vmatpush1.bf16.msra.mxu0 %v272
      %303 = vmatprep.subr.bf16.mxu0 %v293
      %304 = vmatpush1.bf16.msra.mxu0 %v290
      %305 = vmatprep.subr.bf16.mxu0 0
      %306 = vmatpush1.bf16.msra.mxu0 0
      %307 = vmatprep.subr.bf16.mxu0 0
      %308 = vmatpush1.bf16.msra.mxu0 0
      %309 = vmatprep.subr.bf16.mxu0 0
      %310 = vmatpush1.bf16.msra.mxu0 0
      %311 = vmatprep.subr.bf16.mxu0 0
      %312 = vmatpush1.bf16.msra.mxu0 0
      %313 = vmatprep.subr.bf16.mxu0 0
      %314 = vmatpush1.bf16.msra.mxu0 0
      %315 = vmatprep.subr.bf16.mxu0 0
      %316 = vmatpush1.bf16.msra.mxu0 0
      %317 = vmatprep.subr.bf16.mxu0 0
      %318 = vmatpush1.bf16.msra.mxu0 0
      %319 = vmatprep.subr.bf16.mxu0 0
      %320 = vmatpush1.bf16.msra.mxu0 0
      %321 = vmatprep.subr.bf16.mxu0 0
      %322 = vmatpush1.bf16.msra.mxu0 0
      %323 = vmatprep.subr.bf16.mxu0 0
      %324 = vmatpush1.bf16.msra.mxu0 0
      %325 = vmatprep.subr.bf16.mxu0 0
      %326 = vmatpush1.bf16.msra.mxu0 0
      %327 = vmatprep.mubr.bf16.mxu0 0
      %328 = vmatmul.mubr.bf16.gmra.mrb[0].mxu0 %v286
      %v329 = vpop.f32.mrb[0].mxu0
      %v330 = vadd.f32 %v227, %v329
      %v331 = vpop.f32.mrb[0].mxu0
      %v332 = vadd.f32 %v227, %v331
      %v333 = vpop.f32.mrb[0].mxu0
      %v334 = vadd.f32 %v232, %v333
      %v335 = vpop.f32.mrb[0].mxu0
      %v336 = vadd.f32 %v232, %v335
      %337 = vdwg.mxu0
      %v338 = vmax.f32 %v330, 0.0
      %v339 = vmax.f32 %v332, 0.0
      %v340 = vmax.f32 %v334, 0.0
      %v341 = vmax.f32 %v336, 0.0
      %v342 = vpack.c.bf16 %v340, %v338
      %v343 = vpack.c.bf16 %v341, %v339
      %v346 = vunpack.c.l.b16 %v342
      %v347 = vunpack.c.l.b16 %v343
      %v348 = vunpack.c.h.b16 %v342
      %v349 = vunpack.c.h.b16 %v343
      %v350 = vpack.c.b16 %v347, %v346
      %v351 = vpack.c.b16 %v349, %v348
      %354 = vst [vmem:[%s208] sm:$0xff] %v350
      %355 = vst [vmem:[%s208 + $0x8] sm:$0xff] %v351
      %s356 = smul.u32 2, %s19
      %p357 = scmp.lt.s32.totalorder %s18, 1
      %s358 = scalar_select %p357, %s18, 1
      %p359 = scmp.lt.s32.totalorder %s356, 1
      %s360 = scalar_select %p359, %s356, 1
      %s361 = smul.addr %s358, 4
      %s362 = sadd.s32 %s360, %s361
      %s363 = smul.addr %s362, 4
      %s364 = scalar_lea.vmem %s3, %s363
      // Predicated region
      $region33: #{forward.8} parent=31 // pred_check
        %p365 = pneg %p116
      $region34: #{forward.8} parent=31 // pred_check_branch
        %367 = sbr.rel (%p365) target = $region36
      $region35: #{forward.8} parent=31 // pred_region
        %s368 = smul.u32 2, %s19
      $region36: #{forward.8} parent=31 // pred_fallthru
        _
    $region32: #{forward.8} parent=5 // pred_fallthru
      _
    %p369 = scmp.le.s32.totalorder 2, %s9
    // Predicated region
    $region37: #{forward.8} parent=5 // pred_check
      %p370 = pneg %p369
    $region38: #{forward.8} parent=5 // pred_check_branch
      %372 = sbr.rel (%p370) target = $region40
    $region39: #{forward.8} parent=5 // pred_region
      %s373 = ssub.s32 %s9, 2
      // Predicated region
      $region41: #{forward.8} parent=39 // pred_check
        %p374 = pneg %p122
      $region42: #{forward.8} parent=39 // pred_check_branch
        %376 = sbr.rel (%p374) target = $region44
      $region43: #{forward.8} parent=39 // pred_region
        %s377 = smul.u32 2, %s21
        %p378 = scmp.lt.s32.totalorder %s20, 1
        %s379 = scalar_select %p378, %s20, 1
        %p380 = scmp.lt.s32.totalorder %s377, 1
        %s381 = scalar_select %p380, %s377, 1
        %s382 = smul.addr %s379, 4
        %s383 = sadd.s32 %s381, %s382
        %s384 = smul.addr %s383, 4
        %s385 = scalar_lea.vmem %s3, %s384
      $region44: #{forward.8} parent=39 // pred_fallthru
        _
    $region40: #{forward.8} parent=5 // pred_fallthru
      _
  $region6: #{forward.8} parent=0 // loop_footer
    %s13 = sadd.s32 1, %s9
  $region7: #{forward.8} parent=0 // loop_footer_branch
    %8 = sbr.rel target = $region3
  $region8: #{forward.8} parent=0 // loop_exit
    _

// kernel: forward.9
$region0: #{forward.9}
  #allocation0 [shape = 'u32[]', space=smem, size = 0x4, offset = 0x4, fixed_abs, tag = 'smem constant byte address 0x4 - core index']
  #allocation1 [shape = 'u32[144,128]{1,0:T(1,128)}', space=vmem, size = 0x12000, scoped, tag = 'internal scratch']
  %s0 = inlined_call_operand.vmem [shape: bf16[2,144,256], index: 0, kind: input, shape index: {}]
  %s1 = inlined_call_operand.vmem [shape: bf16[16,144], index: 1, kind: input, shape index: {}]
  %s2 = inlined_call_operand.vmem [shape: f32[16,1], index: 2, kind: input, shape index: {}]
  %s3 = inlined_call_operand.vmem [shape: bf16[2,16,256], index: 3, kind: output, shape index: {}]
  %s4 = sld [smem:[#allocation0]]
  $region45: #{forward.9} parent=0
    _
  %s6 = ssub.s32 1, %s4
  %s7 = scalar_select 0, %s6, %s4
  loop: start=0, step=1, limit=4
  $region2: #{forward.9} parent=0 // loop_pre_header
    _
  $region3: #{forward.9} parent=0 // loop_header
    %s9 = sphi 0, %s13
    %p10 = scmp.ge.s32.totalorder %s9, 4
    %s16 = sphi 0, %s28
    %s17 = sphi 0, %s24
    %s18 = sphi 0, %s16
    %s19 = sphi 0, %s17
    %s20 = sphi 0, %s18
    %s21 = sphi 0, %s19
    %s33 = sphi 0, %s35
    %s36 = sphi 0, %s33
    %s37 = sphi 0, %s36
    %s53 = sphi 0, %s37
    %s57 = sphi 0, %s57
    %s59 = sphi 0, %s57
    %s60 = sphi 0, %s59
    %s74 = sphi 0, %s60
    %s78 = sphi 0, %s78
    %s80 = sphi 0, %s78
    %s81 = sphi 0, %s80
    %s95 = sphi 0, %s81
    %s103 = sphi 0, %s105
    %s106 = sphi 0, %s103
    %s107 = sphi 0, %s106
    %s123 = sphi 0, %s107
  $region4: #{forward.9} parent=0 // loop_header_branch
    %12 = sbr.rel (%p10) target = $region8
  $region5: #{forward.9} parent=0 // loop_body
    %s14 = ssub.s32 %s9, 1
    %s15 = ssub.s32 %s9, 2
    %s22 = sadd.s32 1, %s17
    %p23 = scmp.ge.s32.totalorder %s22, 1
    %s24 = scalar_select %p23, 0, %s22
    %s25 = sadd.s32 1, %s16
    %s26 = scalar_select %p23, %s25, %s16
    %p27 = scmp.ge.s32.totalorder %s26, 2
    %s28 = scalar_select %p27, 0, %s26
    %s29 = ssub.s32 %s16, %s28
    %s30 = ssub.s32 %s17, %s24
    %s31 = sor.u32 %s29, %s30
    %p32 = scmp.eq.s32.totalorder %s31, 0
    %s34 = sadd.s32 %s33, 1
    %s35 = scalar_select %p32, %s33, %s34
    %p38 = pneg %p32
    %p39 = scmp.eq.s32.totalorder %s9, 1
    %p40 = por %p38, %p39
    %p41 = scmp.ne.s32.totalorder %s33, %s36
    %p42 = scmp.eq.s32.totalorder %s9, 0
    %p43 = por %p41, %p42
    %p44 = scmp.ne.s32.totalorder %s33, %s36
    %p45 = scmp.eq.s32.totalorder %s14, 1
    %p46 = por %p44, %p45
    %p47 = scmp.ne.s32.totalorder %s36, %s37
    %p48 = scmp.eq.s32.totalorder %s14, 0
    %p49 = por %p47, %p48
    %p50 = scmp.ne.s32.totalorder %s36, %s37
    %p51 = scmp.eq.s32.totalorder %s15, 1
    %p52 = por %p50, %p51
    %p54 = scmp.ne.s32.totalorder %s37, %s53
    %p55 = scmp.eq.s32.totalorder %s15, 0
    %p56 = por %p54, %p55
    %s58 = sadd.s32 %s57, 1
    %p61 = scmp.eq.s32.totalorder %s9, 1
    %p62 = scmp.ne.s32.totalorder %s57, %s59
    %p63 = scmp.eq.s32.totalorder %s9, 0
    %p64 = por %p62, %p63
    %p65 = scmp.ne.s32.totalorder %s57, %s59
    %p66 = scmp.eq.s32.totalorder %s14, 1
    %p67 = por %p65, %p66
    %p68 = scmp.ne.s32.totalorder %s59, %s60
    %p69 = scmp.eq.s32.totalorder %s14, 0
    %p70 = por %p68, %p69
    %p71 = scmp.ne.s32.totalorder %s59, %s60
    %p72 = scmp.eq.s32.totalorder %s15, 1
    %p73 = por %p71, %p72
    %p75 = scmp.ne.s32.totalorder %s60, %s74
    %p76 = scmp.eq.s32.totalorder %s15, 0
    %p77 = por %p75, %p76
    %s79 = sadd.s32 %s78, 1
    %p82 = scmp.eq.s32.totalorder %s9, 1
    %p83 = scmp.ne.s32.totalorder %s78, %s80
    %p84 = scmp.eq.s32.totalorder %s9, 0
    %p85 = por %p83, %p84
    %p86 = scmp.ne.s32.totalorder %s78, %s80
    %p87 = scmp.eq.s32.totalorder %s14, 1
    %p88 = por %p86, %p87
    %p89 = scmp.ne.s32.totalorder %s80, %s81
    %p90 = scmp.eq.s32.totalorder %s14, 0
    %p91 = por %p89, %p90
    %p92 = scmp.ne.s32.totalorder %s80, %s81
    %p93 = scmp.eq.s32.totalorder %s15, 1
    %p94 = por %p92, %p93
    %p96 = scmp.ne.s32.totalorder %s81, %s95
    %p97 = scmp.eq.s32.totalorder %s15, 0
    %p98 = por %p96, %p97
    %s99 = ssub.s32 %s16, %s28
    %s100 = ssub.s32 %s17, %s24
    %s101 = sor.u32 %s99, %s100
    %p102 = scmp.eq.s32.totalorder %s101, 0
    %s104 = sadd.s32 %s103, 1
    %s105 = scalar_select %p102, %s103, %s104
    %p108 = pneg %p102
    %p109 = scmp.eq.s32.totalorder %s9, 1
    %p110 = por %p108, %p109
    %p111 = scmp.ne.s32.totalorder %s103, %s106
    %p112 = scmp.eq.s32.totalorder %s9, 0
    %p113 = por %p111, %p112
    %p114 = scmp.ne.s32.totalorder %s103, %s106
    %p115 = scmp.eq.s32.totalorder %s14, 1
    %p116 = por %p114, %p115
    %p117 = scmp.ne.s32.totalorder %s106, %s107
    %p118 = scmp.eq.s32.totalorder %s14, 0
    %p119 = por %p117, %p118
    %p120 = scmp.ne.s32.totalorder %s106, %s107
    %p121 = scmp.eq.s32.totalorder %s15, 1
    %p122 = por %p120, %p121
    %p124 = scmp.ne.s32.totalorder %s107, %s123
    %p125 = scmp.eq.s32.totalorder %s15, 0
    %p126 = por %p124, %p125
    %p127 = scmp.le.s32.totalorder 1, %s9
    %p128 = scmp.lt.s32.totalorder %s9, 3
    %p129 = pnand %p127, %p128
    %p130 = pneg %p129
    // Predicated region
    $region9: #{forward.9} parent=5 // pred_check
      _
    $region10: #{forward.9} parent=5 // pred_check_branch
      %132 = sbr.rel (%p129) target = $region12
    $region11: #{forward.9} parent=5 // pred_region
      %s133 = ssub.s32 %s9, 1
      // Predicated region
      $region13: #{forward.9} parent=11 // pred_check
        %p134 = pneg %p70
      $region14: #{forward.9} parent=11 // pred_check_branch
        %136 = sbr.rel (%p134) target = $region16
      $region15: #{forward.9} parent=11 // pred_region
        _
      $region16: #{forward.9} parent=11 // pred_fallthru
        _
      // Predicated region
      $region17: #{forward.9} parent=11 // pred_check
        %p137 = pneg %p91
      $region18: #{forward.9} parent=11 // pred_check_branch
        %139 = sbr.rel (%p137) target = $region20
      $region19: #{forward.9} parent=11 // pred_region
        _
      $region20: #{forward.9} parent=11 // pred_fallthru
        _
    $region12: #{forward.9} parent=5 // pred_fallthru
      _
    %p140 = scmp.lt.s32.totalorder %s9, 2
    // Predicated region
    $region21: #{forward.9} parent=5 // pred_check
      %p141 = pneg %p140
    $region22: #{forward.9} parent=5 // pred_check_branch
      %143 = sbr.rel (%p141) target = $region24
    $region23: #{forward.9} parent=5 // pred_region
      // Predicated region
      $region25: #{forward.9} parent=23 // pred_check
        %p144 = pneg %p43
      $region26: #{forward.9} parent=23 // pred_check_branch
        %146 = sbr.rel (%p144) target = $region28
      $region27: #{forward.9} parent=23 // pred_region
        %s147 = smul.u32 2, %s17
        %p148 = scmp.lt.s32.totalorder %s16, 1
        %s149 = scalar_select %p148, %s16, 1
        %p150 = scmp.lt.s32.totalorder %s147, 1
        %s151 = scalar_select %p150, %s147, 1
        %s152 = smul.addr %s149, 36
        %s153 = sadd.s32 %s151, %s152
        %s154 = smul.addr %s153, 4
        %s155 = scalar_lea.vmem %s0, %s154
        %s156 = smul.u32 2, %s17
      $region28: #{forward.9} parent=23 // pred_fallthru
        _
    $region24: #{forward.9} parent=5 // pred_fallthru
      _
    %p157 = scmp.le.s32.totalorder 1, %s9
    %p158 = scmp.lt.s32.totalorder %s9, 3
    %p159 = pnand %p157, %p158
    %p160 = pneg %p159
    // Predicated region
    $region29: #{forward.9} parent=5 // pred_check
      _
    $region30: #{forward.9} parent=5 // pred_check_branch
      %162 = sbr.rel (%p159) target = $region32
    $region31: #{forward.9} parent=5 // pred_region
      %s163 = ssub.s32 %s9, 1
      %s164 = smul.u32 2, %s19
      %p165 = scmp.lt.s32.totalorder %s18, 1
      %s166 = scalar_select %p165, %s18, 1
      %p167 = scmp.lt.s32.totalorder %s164, 1
      %s168 = scalar_select %p167, %s164, 1
      %s169 = smul.addr %s166, 36
      %s170 = sadd.s32 %s168, %s169
      %s171 = smul.addr %s170, 4
      %s172 = scalar_lea.vmem %s0, %s171
      %p173 = pneg %p49
      %p174 = pneg %p46
      %p175 = pneg %p70
      %p176 = pneg %p67
      %p177 = pneg %p91
      %p178 = pneg %p88
      %p179 = pneg %p119
      %p180 = pneg %p116
      %s181 = smul.u32 2, %s19
      %p182 = scmp.lt.s32.totalorder %s18, 1
      %s183 = scalar_select %p182, %s18, 1
      %p184 = scmp.lt.s32.totalorder %s181, 1
      %s185 = scalar_select %p184, %s181, 1
      %s186 = smul.addr %s183, 4
      %s187 = sadd.s32 %s185, %s186
      %s188 = smul.addr %s187, 4
      %s189 = scalar_lea.vmem %s3, %s188
      %s190 = smul.u32 2, %s19
      %p191 = scmp.lt.s32.totalorder %s18, 1
      %s192 = scalar_select %p191, %s18, 1
      %p193 = scmp.lt.s32.totalorder %s190, 1
      %s194 = scalar_select %p193, %s190, 1
      %s195 = smul.addr %s192, 36
      %s196 = sadd.s32 %s194, %s195
      %s197 = smul.addr %s196, 4
      %s198 = scalar_lea.vmem %s0, %s197
      %s199 = smul.u32 2, %s19
      %s200 = smul.u32 2, %s19
      %p201 = scmp.lt.s32.totalorder %s18, 1
      %s202 = scalar_select %p201, %s18, 1
      %p203 = scmp.lt.s32.totalorder %s200, 1
      %s204 = scalar_select %p203, %s200, 1
      %s205 = smul.addr %s202, 4
      %s206 = sadd.s32 %s204, %s205
      %s207 = smul.addr %s206, 4
      %s208 = scalar_lea.vmem %s3, %s207
      %s209 = smul.u32 2, %s19
      %v211 = vld [vmem:[%s1] sm:$0xff]
      %v212 = vld [vmem:[%s1 + $0x8] sm:$0xff]
      %v213 = vld [vmem:[%s198] sm:$0xff]
      %v214 = vld [vmem:[%s198 + $0x8] sm:$0xff]
      %v215 = vld [vmem:[%s198 + $0x10] sm:$0xff]
      %v216 = vld [vmem:[%s198 + $0x18] sm:$0xff]
      %v217 = vld [vmem:[%s198 + $0x20] sm:$0xff]
      %v218 = vld [vmem:[%s198 + $0x28] sm:$0xff]
      %v219 = vld [vmem:[%s198 + $0x30] sm:$0xff]
      %v220 = vld [vmem:[%s198 + $0x38] sm:$0xff]
      %v221 = vld [vmem:[%s198 + $0x40] sm:$0xff]
      %v222 = vld [vmem:[%s198 + $0x48] sm:$0xff]
      %v223 = vld [vmem:[%s198 + $0x50] sm:$0xff]
      %v224 = vld [vmem:[%s198 + $0x58] sm:$0xff]
      %v225 = vld [vmem:[%s198 + $0x60] sm:$0xff]
      %v226 = vld [vmem:[%s198 + $0x68] sm:$0xff]
      %v227 = vld [vmem:[%s198 + $0x70] sm:$0xff]
      %v228 = vld [vmem:[%s198 + $0x78] sm:$0xff]
      %v229 = vld [vmem:[%s198 + $0x80] sm:$0xff]
      %v230 = vld [vmem:[%s198 + $0x88] sm:$0xff]
      %v231 = vld [vmem:[%s2] sm:$0xff]
      %v232 = vld [vmem:[%s2 + $0x8] sm:$0xff]
      %234 = vset.pattern.permute.xlu0 0
      %235 = vperm.xlu0 %234, %v231
      %v236 = vpop.permute.xlu0 %235
      %239 = vset.pattern.permute.xlu0 0
      %240 = vperm.xlu0 %239, %v232
      %v241 = vpop.permute.xlu0 %240
      %v245 = vunpack.c.l.b16 %v211
      %v246 = vunpack.c.h.b16 %v211
      %v247 = vunpack.c.l.b16 %v212
      %v248 = vunpack.c.h.b16 %v212
      %v249 = vpack.c.b16 %v247, %v245
      %v250 = vpack.c.b16 %v248, %v246
      %v270 = vunpack.c.l.b16 %v213
      %v271 = vunpack.c.h.b16 %v213
      %v272 = vunpack.c.l.b16 %v214
      %v273 = vunpack.c.h.b16 %v214
      %v274 = vunpack.c.l.b16 %v215
      %v275 = vunpack.c.h.b16 %v215
      %v276 = vunpack.c.l.b16 %v216
      %v277 = vunpack.c.h.b16 %v216
      %v278 = vunpack.c.l.b16 %v217
      %v279 = vunpack.c.h.b16 %v217
      %v280 = vunpack.c.l.b16 %v218
      %v281 = vunpack.c.h.b16 %v218
      %v282 = vunpack.c.l.b16 %v219
      %v283 = vunpack.c.h.b16 %v219
      %v284 = vunpack.c.l.b16 %v220
      %v285 = vunpack.c.h.b16 %v220
      %v286 = vunpack.c.l.b16 %v221
      %v287 = vunpack.c.h.b16 %v221
      %v288 = vunpack.c.l.b16 %v222
      %v289 = vunpack.c.h.b16 %v222
      %v290 = vunpack.c.l.b16 %v223
      %v291 = vunpack.c.h.b16 %v223
      %v292 = vunpack.c.l.b16 %v224
      %v293 = vunpack.c.h.b16 %v224
      %v294 = vunpack.c.l.b16 %v225
      %v295 = vunpack.c.h.b16 %v225
      %v296 = vunpack.c.l.b16 %v226
      %v297 = vunpack.c.h.b16 %v226
      %v298 = vunpack.c.l.b16 %v227
      %v299 = vunpack.c.h.b16 %v227
      %v300 = vunpack.c.l.b16 %v228
      %v301 = vunpack.c.h.b16 %v228
      %v302 = vunpack.c.l.b16 %v229
      %v303 = vunpack.c.h.b16 %v229
      %v304 = vunpack.c.l.b16 %v230
      %v305 = vunpack.c.h.b16 %v230
      %v306 = vpack.c.b16 %v272, %v270
      %v307 = vpack.c.b16 %v273, %v271
      %v308 = vpack.c.b16 %v276, %v274
      %v309 = vpack.c.b16 %v277, %v275
      %v310 = vpack.c.b16 %v280, %v278
      %v311 = vpack.c.b16 %v281, %v279
      %v312 = vpack.c.b16 %v284, %v282
      %v313 = vpack.c.b16 %v285, %v283
      %v314 = vpack.c.b16 %v288, %v286
      %v315 = vpack.c.b16 %v289, %v287
      %v316 = vpack.c.b16 %v292, %v290
      %v317 = vpack.c.b16 %v293, %v291
      %v318 = vpack.c.b16 %v296, %v294
      %v319 = vpack.c.b16 %v297, %v295
      %v320 = vpack.c.b16 %v300, %v298
      %v321 = vpack.c.b16 %v301, %v299
      %v322 = vpack.c.b16 %v304, %v302
      %v323 = vpack.c.b16 %v305, %v303
      %vm342 = vcmask 130048
      %v344 = vsel %vm342, %v250, 0
      %346 = vmatprep.subr.bf16.mxu0 %v307
      %347 = vmatpush1.bf16.msra.mxu0 %v306
      %348 = vmatprep.subr.bf16.mxu0 %v309
      %349 = vmatpush1.bf16.msra.mxu0 %v308
      %350 = vmatprep.subr.bf16.mxu0 %v311
      %351 = vmatpush1.bf16.msra.mxu0 %v310
      %352 = vmatprep.subr.bf16.mxu0 %v313
      %353 = vmatpush1.bf16.msra.mxu0 %v312
      %354 = vmatprep.subr.bf16.mxu0 %v315
      %355 = vmatpush1.bf16.msra.mxu0 %v314
      %356 = vmatprep.subr.bf16.mxu0 %v317
      %357 = vmatpush1.bf16.msra.mxu0 %v316
      %358 = vmatprep.subr.bf16.mxu0 %v319
      %359 = vmatpush1.bf16.msra.mxu0 %v318
      %360 = vmatprep.subr.bf16.mxu0 %v321
      %361 = vmatpush1.bf16.msra.mxu0 %v320
      %362 = vmatprep.subr.bf16.mxu0 %v323
      %363 = vmatpush1.bf16.msra.mxu0 %v322
      %364 = vmatprep.subr.bf16.mxu0 0
      %365 = vmatpush1.bf16.msra.mxu0 0
      %366 = vmatprep.subr.bf16.mxu0 0
      %367 = vmatpush1.bf16.msra.mxu0 0
      %368 = vmatprep.subr.bf16.mxu0 0
      %369 = vmatpush1.bf16.msra.mxu0 0
      %370 = vmatprep.subr.bf16.mxu0 0
      %371 = vmatpush1.bf16.msra.mxu0 0
      %372 = vmatprep.subr.bf16.mxu0 0
      %373 = vmatpush1.bf16.msra.mxu0 0
      %374 = vmatprep.subr.bf16.mxu0 0
      %375 = vmatpush1.bf16.msra.mxu0 0
      %376 = vmatprep.subr.bf16.mxu0 0
      %377 = vmatpush1.bf16.msra.mxu0 0
      %378 = vmatprep.mubr.bf16.mxu0 %v344
      %379 = vmatmul.mubr.bf16.gmra.mrb[0].mxu0 %v249
      %v380 = vpop.f32.mrb[0].mxu0
      %v381 = vadd.f32 %v236, %v380
      %v382 = vpop.f32.mrb[0].mxu0
      %v383 = vadd.f32 %v236, %v382
      %v384 = vpop.f32.mrb[0].mxu0
      %v385 = vadd.f32 %v241, %v384
      %v386 = vpop.f32.mrb[0].mxu0
      %v387 = vadd.f32 %v241, %v386
      %388 = vdwg.mxu0
      %v389 = vmax.f32 %v381, 0.0
      %v390 = vmax.f32 %v383, 0.0
      %v391 = vmax.f32 %v385, 0.0
      %v392 = vmax.f32 %v387, 0.0
      %v393 = vpack.c.bf16 %v391, %v389
      %v394 = vpack.c.bf16 %v392, %v390
      %v397 = vunpack.c.l.b16 %v393
      %v398 = vunpack.c.l.b16 %v394
      %v399 = vunpack.c.h.b16 %v393
      %v400 = vunpack.c.h.b16 %v394
      %v401 = vpack.c.b16 %v398, %v397
      %v402 = vpack.c.b16 %v400, %v399
      %405 = vst [vmem:[%s208] sm:$0xff] %v401
      %406 = vst [vmem:[%s208 + $0x8] sm:$0xff] %v402
      %s407 = smul.u32 2, %s19
      %p408 = scmp.lt.s32.totalorder %s18, 1
      %s409 = scalar_select %p408, %s18, 1
      %p410 = scmp.lt.s32.totalorder %s407, 1
      %s411 = scalar_select %p410, %s407, 1
      %s412 = smul.addr %s409, 4
      %s413 = sadd.s32 %s411, %s412
      %s414 = smul.addr %s413, 4
      %s415 = scalar_lea.vmem %s3, %s414
      // Predicated region
      $region33: #{forward.9} parent=31 // pred_check
        %p416 = pneg %p116
      $region34: #{forward.9} parent=31 // pred_check_branch
        %418 = sbr.rel (%p416) target = $region36
      $region35: #{forward.9} parent=31 // pred_region
        %s419 = smul.u32 2, %s19
      $region36: #{forward.9} parent=31 // pred_fallthru
        _
    $region32: #{forward.9} parent=5 // pred_fallthru
      _
    %p420 = scmp.le.s32.totalorder 2, %s9
    // Predicated region
    $region37: #{forward.9} parent=5 // pred_check
      %p421 = pneg %p420
    $region38: #{forward.9} parent=5 // pred_check_branch
      %423 = sbr.rel (%p421) target = $region40
    $region39: #{forward.9} parent=5 // pred_region
      %s424 = ssub.s32 %s9, 2
      // Predicated region
      $region41: #{forward.9} parent=39 // pred_check
        %p425 = pneg %p122
      $region42: #{forward.9} parent=39 // pred_check_branch
        %427 = sbr.rel (%p425) target = $region44
      $region43: #{forward.9} parent=39 // pred_region
        %s428 = smul.u32 2, %s21
        %p429 = scmp.lt.s32.totalorder %s20, 1
        %s430 = scalar_select %p429, %s20, 1
        %p431 = scmp.lt.s32.totalorder %s428, 1
        %s432 = scalar_select %p431, %s428, 1
        %s433 = smul.addr %s430, 4
        %s434 = sadd.s32 %s432, %s433
        %s435 = smul.addr %s434, 4
        %s436 = scalar_lea.vmem %s3, %s435
      $region44: #{forward.9} parent=39 // pred_fallthru
        _
    $region40: #{forward.9} parent=5 // pred_fallthru
      _
  $region6: #{forward.9} parent=0 // loop_footer
    %s13 = sadd.s32 1, %s9
  $region7: #{forward.9} parent=0 // loop_footer_branch
    %8 = sbr.rel target = $region3
  $region8: #{forward.9} parent=0 // loop_exit
    _

// kernel: forward.10
$region0: #{forward.10}
  #allocation0 [shape = 'u32[]', space=smem, size = 0x4, offset = 0x4, fixed_abs, tag = 'smem constant byte address 0x4 - core index']
  #allocation1 [shape = 'u32[144,128]{1,0:T(1,128)}', space=vmem, size = 0x12000, scoped, tag = 'internal scratch']
  #allocation2 [shape = 'f32[1,1]{1,0:T(1,128)S(1)}', space=vmem, size = 0x200, scoped, tag = 'scoped memory for forward.10']
  %s0 = inlined_call_operand.vmem [shape: bf16[2,16,256], index: 0, kind: input, shape index: {}]
  %s1 = inlined_call_operand.vmem [shape: bf16[2,144,256], index: 1, kind: input, shape index: {}]
  %s2 = inlined_call_operand.vmem [shape: bf16[2,144,256], index: 2, kind: input, shape index: {}]
  %s3 = inlined_call_operand.vmem [shape: bf16[8,16], index: 3, kind: input, shape index: {}]
  %s4 = inlined_call_operand.vmem [shape: bf16[8,144], index: 4, kind: input, shape index: {}]
  %s5 = inlined_call_operand.vmem [shape: bf16[8,16], index: 5, kind: input, shape index: {}]
  %s6 = inlined_call_operand.vmem [shape: bf16[8,16], index: 6, kind: input, shape index: {}]
  %s7 = inlined_call_operand.vmem [shape: f32[4,8,1], index: 7, kind: input, shape index: {}]
  %s8 = inlined_call_operand.vmem [shape: bf16[8,32], index: 8, kind: input, shape index: {}]
  %s9 = inlined_call_operand.vmem [shape: f32[2,8,1], index: 9, kind: input, shape index: {}]
  %s10 = inlined_call_operand.vmem [shape: bf16[1,144], index: 10, kind: input, shape index: {}]
  %s11 = inlined_call_operand.<no memory space> [shape: f32[1,1], index: 11, kind: input, shape index: {}]
  %s12 = inlined_call_operand.vmem [shape: f32[2,8,256], index: 12, kind: output, shape index: {}]
  %s13 = sld [smem:[#allocation0]]
  $region81: #{forward.10} parent=0
    _
  %s15 = ssub.s32 1, %s13
  %s16 = scalar_select 0, %s15, %s13
  %v17 = vstv %s11
  %18 = vst [vmem:[#allocation2] sm:$0x1] %v17
  loop: start=0, step=1, limit=4
  $region2: #{forward.10} parent=0 // loop_pre_header
    _
  $region3: #{forward.10} parent=0 // loop_header
    %s20 = sphi 0, %s24
    %p21 = scmp.ge.s32.totalorder %s20, 4
    %s27 = sphi 0, %s39
    %s28 = sphi 0, %s35
    %s29 = sphi 0, %s27
    %s30 = sphi 0, %s28
    %s31 = sphi 0, %s29
    %s32 = sphi 0, %s30
    %s44 = sphi 0, %s46
    %s47 = sphi 0, %s44
    %s48 = sphi 0, %s47
    %s64 = sphi 0, %s48
    %s72 = sphi 0, %s74
    %s75 = sphi 0, %s72
    %s76 = sphi 0, %s75
    %s92 = sphi 0, %s76
    %s100 = sphi 0, %s102
    %s103 = sphi 0, %s100
    %s104 = sphi 0, %s103
    %s120 = sphi 0, %s104
    %s124 = sphi 0, %s124
    %s126 = sphi 0, %s124
    %s127 = sphi 0, %s126
    %s141 = sphi 0, %s127
    %s145 = sphi 0, %s145
    %s147 = sphi 0, %s145
    %s148 = sphi 0, %s147
    %s162 = sphi 0, %s148
    %s166 = sphi 0, %s166
    %s168 = sphi 0, %s166
    %s169 = sphi 0, %s168
    %s183 = sphi 0, %s169
    %s187 = sphi 0, %s187
    %s189 = sphi 0, %s187
    %s190 = sphi 0, %s189
    %s204 = sphi 0, %s190
    %s208 = sphi 0, %s208
    %s210 = sphi 0, %s208
    %s211 = sphi 0, %s210
    %s225 = sphi 0, %s211
    %s229 = sphi 0, %s229
    %s231 = sphi 0, %s229
    %s232 = sphi 0, %s231
    %s246 = sphi 0, %s232
    %s252 = sphi 0, %s254
    %s255 = sphi 0, %s252
    %s256 = sphi 0, %s255
    %s272 = sphi 0, %s256
    %s276 = sphi 0, %s276
    %s278 = sphi 0, %s276
    %s279 = sphi 0, %s278
    %s293 = sphi 0, %s279
    %s297 = sphi 0, %s297
    %s299 = sphi 0, %s297
    %s300 = sphi 0, %s299
    %s314 = sphi 0, %s300
    %s322 = sphi 0, %s324
    %s325 = sphi 0, %s322
    %s326 = sphi 0, %s325
    %s342 = sphi 0, %s326
  $region4: #{forward.10} parent=0 // loop_header_branch
    %23 = sbr.rel (%p21) target = $region8
  $region5: #{forward.10} parent=0 // loop_body
    %s25 = ssub.s32 %s20, 1
    %s26 = ssub.s32 %s20, 2
    %s33 = sadd.s32 1, %s28
    %p34 = scmp.ge.s32.totalorder %s33, 1
    %s35 = scalar_select %p34, 0, %s33
    %s36 = sadd.s32 1, %s27
    %s37 = scalar_select %p34, %s36, %s27
    %p38 = scmp.ge.s32.totalorder %s37, 2
    %s39 = scalar_select %p38, 0, %s37
    %s40 = ssub.s32 %s27, %s39
    %s41 = ssub.s32 %s28, %s35
    %s42 = sor.u32 %s40, %s41
    %p43 = scmp.eq.s32.totalorder %s42, 0
    %s45 = sadd.s32 %s44, 1
    %s46 = scalar_select %p43, %s44, %s45
    %p49 = pneg %p43
    %p50 = scmp.eq.s32.totalorder %s20, 1
    %p51 = por %p49, %p50
    %p52 = scmp.ne.s32.totalorder %s44, %s47
    %p53 = scmp.eq.s32.totalorder %s20, 0
    %p54 = por %p52, %p53
    %p55 = scmp.ne.s32.totalorder %s44, %s47
    %p56 = scmp.eq.s32.totalorder %s25, 1
    %p57 = por %p55, %p56
    %p58 = scmp.ne.s32.totalorder %s47, %s48
    %p59 = scmp.eq.s32.totalorder %s25, 0
    %p60 = por %p58, %p59
    %p61 = scmp.ne.s32.totalorder %s47, %s48
    %p62 = scmp.eq.s32.totalorder %s26, 1
    %p63 = por %p61, %p62
    %p65 = scmp.ne.s32.totalorder %s48, %s64
    %p66 = scmp.eq.s32.totalorder %s26, 0
    %p67 = por %p65, %p66
    %s68 = ssub.s32 %s27, %s39
    %s69 = ssub.s32 %s28, %s35
    %s70 = sor.u32 %s68, %s69
    %p71 = scmp.eq.s32.totalorder %s70, 0
    %s73 = sadd.s32 %s72, 1
    %s74 = scalar_select %p71, %s72, %s73
    %p77 = pneg %p71
    %p78 = scmp.eq.s32.totalorder %s20, 1
    %p79 = por %p77, %p78
    %p80 = scmp.ne.s32.totalorder %s72, %s75
    %p81 = scmp.eq.s32.totalorder %s20, 0
    %p82 = por %p80, %p81
    %p83 = scmp.ne.s32.totalorder %s72, %s75
    %p84 = scmp.eq.s32.totalorder %s25, 1
    %p85 = por %p83, %p84
    %p86 = scmp.ne.s32.totalorder %s75, %s76
    %p87 = scmp.eq.s32.totalorder %s25, 0
    %p88 = por %p86, %p87
    %p89 = scmp.ne.s32.totalorder %s75, %s76
    %p90 = scmp.eq.s32.totalorder %s26, 1
    %p91 = por %p89, %p90
    %p93 = scmp.ne.s32.totalorder %s76, %s92
    %p94 = scmp.eq.s32.totalorder %s26, 0
    %p95 = por %p93, %p94
    %s96 = ssub.s32 %s27, %s39
    %s97 = ssub.s32 %s28, %s35
    %s98 = sor.u32 %s96, %s97
    %p99 = scmp.eq.s32.totalorder %s98, 0
    %s101 = sadd.s32 %s100, 1
    %s102 = scalar_select %p99, %s100, %s101
    %p105 = pneg %p99
    %p106 = scmp.eq.s32.totalorder %s20, 1
    %p107 = por %p105, %p106
    %p108 = scmp.ne.s32.totalorder %s100, %s103
    %p109 = scmp.eq.s32.totalorder %s20, 0
    %p110 = por %p108, %p109
    %p111 = scmp.ne.s32.totalorder %s100, %s103
    %p112 = scmp.eq.s32.totalorder %s25, 1
    %p113 = por %p111, %p112
    %p114 = scmp.ne.s32.totalorder %s103, %s104
    %p115 = scmp.eq.s32.totalorder %s25, 0
    %p116 = por %p114, %p115
    %p117 = scmp.ne.s32.totalorder %s103, %s104
    %p118 = scmp.eq.s32.totalorder %s26, 1
    %p119 = por %p117, %p118
    %p121 = scmp.ne.s32.totalorder %s104, %s120
    %p122 = scmp.eq.s32.totalorder %s26, 0
    %p123 = por %p121, %p122
    %s125 = sadd.s32 %s124, 1
    %p128 = scmp.eq.s32.totalorder %s20, 1
    %p129 = scmp.ne.s32.totalorder %s124, %s126
    %p130 = scmp.eq.s32.totalorder %s20, 0
    %p131 = por %p129, %p130
    %p132 = scmp.ne.s32.totalorder %s124, %s126
    %p133 = scmp.eq.s32.totalorder %s25, 1
    %p134 = por %p132, %p133
    %p135 = scmp.ne.s32.totalorder %s126, %s127
    %p136 = scmp.eq.s32.totalorder %s25, 0
    %p137 = por %p135, %p136
    %p138 = scmp.ne.s32.totalorder %s126, %s127
    %p139 = scmp.eq.s32.totalorder %s26, 1
    %p140 = por %p138, %p139
    %p142 = scmp.ne.s32.totalorder %s127, %s141
    %p143 = scmp.eq.s32.totalorder %s26, 0
    %p144 = por %p142, %p143
    %s146 = sadd.s32 %s145, 1
    %p149 = scmp.eq.s32.totalorder %s20, 1
    %p150 = scmp.ne.s32.totalorder %s145, %s147
    %p151 = scmp.eq.s32.totalorder %s20, 0
    %p152 = por %p150, %p151
    %p153 = scmp.ne.s32.totalorder %s145, %s147
    %p154 = scmp.eq.s32.totalorder %s25, 1
    %p155 = por %p153, %p154
    %p156 = scmp.ne.s32.totalorder %s147, %s148
    %p157 = scmp.eq.s32.totalorder %s25, 0
    %p158 = por %p156, %p157
    %p159 = scmp.ne.s32.totalorder %s147, %s148
    %p160 = scmp.eq.s32.totalorder %s26, 1
    %p161 = por %p159, %p160
    %p163 = scmp.ne.s32.totalorder %s148, %s162
    %p164 = scmp.eq.s32.totalorder %s26, 0
    %p165 = por %p163, %p164
    %s167 = sadd.s32 %s166, 1
    %p170 = scmp.eq.s32.totalorder %s20, 1
    %p171 = scmp.ne.s32.totalorder %s166, %s168
    %p172 = scmp.eq.s32.totalorder %s20, 0
    %p173 = por %p171, %p172
    %p174 = scmp.ne.s32.totalorder %s166, %s168
    %p175 = scmp.eq.s32.totalorder %s25, 1
    %p176 = por %p174, %p175
    %p177 = scmp.ne.s32.totalorder %s168, %s169
    %p178 = scmp.eq.s32.totalorder %s25, 0
    %p179 = por %p177, %p178
    %p180 = scmp.ne.s32.totalorder %s168, %s169
    %p181 = scmp.eq.s32.totalorder %s26, 1
    %p182 = por %p180, %p181
    %p184 = scmp.ne.s32.totalorder %s169, %s183
    %p185 = scmp.eq.s32.totalorder %s26, 0
    %p186 = por %p184, %p185
    %s188 = sadd.s32 %s187, 1
    %p191 = scmp.eq.s32.totalorder %s20, 1
    %p192 = scmp.ne.s32.totalorder %s187, %s189
    %p193 = scmp.eq.s32.totalorder %s20, 0
    %p194 = por %p192, %p193
    %p195 = scmp.ne.s32.totalorder %s187, %s189
    %p196 = scmp.eq.s32.totalorder %s25, 1
    %p197 = por %p195, %p196
    %p198 = scmp.ne.s32.totalorder %s189, %s190
    %p199 = scmp.eq.s32.totalorder %s25, 0
    %p200 = por %p198, %p199
    %p201 = scmp.ne.s32.totalorder %s189, %s190
    %p202 = scmp.eq.s32.totalorder %s26, 1
    %p203 = por %p201, %p202
    %p205 = scmp.ne.s32.totalorder %s190, %s204
    %p206 = scmp.eq.s32.totalorder %s26, 0
    %p207 = por %p205, %p206
    %s209 = sadd.s32 %s208, 1
    %p212 = scmp.eq.s32.totalorder %s20, 1
    %p213 = scmp.ne.s32.totalorder %s208, %s210
    %p214 = scmp.eq.s32.totalorder %s20, 0
    %p215 = por %p213, %p214
    %p216 = scmp.ne.s32.totalorder %s208, %s210
    %p217 = scmp.eq.s32.totalorder %s25, 1
    %p218 = por %p216, %p217
    %p219 = scmp.ne.s32.totalorder %s210, %s211
    %p220 = scmp.eq.s32.totalorder %s25, 0
    %p221 = por %p219, %p220
    %p222 = scmp.ne.s32.totalorder %s210, %s211
    %p223 = scmp.eq.s32.totalorder %s26, 1
    %p224 = por %p222, %p223
    %p226 = scmp.ne.s32.totalorder %s211, %s225
    %p227 = scmp.eq.s32.totalorder %s26, 0
    %p228 = por %p226, %p227
    %s230 = sadd.s32 %s229, 1
    %p233 = scmp.eq.s32.totalorder %s20, 1
    %p234 = scmp.ne.s32.totalorder %s229, %s231
    %p235 = scmp.eq.s32.totalorder %s20, 0
    %p236 = por %p234, %p235
    %p237 = scmp.ne.s32.totalorder %s229, %s231
    %p238 = scmp.eq.s32.totalorder %s25, 1
    %p239 = por %p237, %p238
    %p240 = scmp.ne.s32.totalorder %s231, %s232
    %p241 = scmp.eq.s32.totalorder %s25, 0
    %p242 = por %p240, %p241
    %p243 = scmp.ne.s32.totalorder %s231, %s232
    %p244 = scmp.eq.s32.totalorder %s26, 1
    %p245 = por %p243, %p244
    %p247 = scmp.ne.s32.totalorder %s232, %s246
    %p248 = scmp.eq.s32.totalorder %s26, 0
    %p249 = por %p247, %p248
    %s250 = ssub.s32 %s27, %s39
    %p251 = scmp.eq.s32.totalorder %s250, 0
    %s253 = sadd.s32 %s252, 1
    %s254 = scalar_select %p251, %s252, %s253
    %p257 = pneg %p251
    %p258 = scmp.eq.s32.totalorder %s20, 1
    %p259 = por %p257, %p258
    %p260 = scmp.ne.s32.totalorder %s252, %s255
    %p261 = scmp.eq.s32.totalorder %s20, 0
    %p262 = por %p260, %p261
    %p263 = scmp.ne.s32.totalorder %s252, %s255
    %p264 = scmp.eq.s32.totalorder %s25, 1
    %p265 = por %p263, %p264
    %p266 = scmp.ne.s32.totalorder %s255, %s256
    %p267 = scmp.eq.s32.totalorder %s25, 0
    %p268 = por %p266, %p267
    %p269 = scmp.ne.s32.totalorder %s255, %s256
    %p270 = scmp.eq.s32.totalorder %s26, 1
    %p271 = por %p269, %p270
    %p273 = scmp.ne.s32.totalorder %s256, %s272
    %p274 = scmp.eq.s32.totalorder %s26, 0
    %p275 = por %p273, %p274
    %s277 = sadd.s32 %s276, 1
    %p280 = scmp.eq.s32.totalorder %s20, 1
    %p281 = scmp.ne.s32.totalorder %s276, %s278
    %p282 = scmp.eq.s32.totalorder %s20, 0
    %p283 = por %p281, %p282
    %p284 = scmp.ne.s32.totalorder %s276, %s278
    %p285 = scmp.eq.s32.totalorder %s25, 1
    %p286 = por %p284, %p285
    %p287 = scmp.ne.s32.totalorder %s278, %s279
    %p288 = scmp.eq.s32.totalorder %s25, 0
    %p289 = por %p287, %p288
    %p290 = scmp.ne.s32.totalorder %s278, %s279
    %p291 = scmp.eq.s32.totalorder %s26, 1
    %p292 = por %p290, %p291
    %p294 = scmp.ne.s32.totalorder %s279, %s293
    %p295 = scmp.eq.s32.totalorder %s26, 0
    %p296 = por %p294, %p295
    %s298 = sadd.s32 %s297, 1
    %p301 = scmp.eq.s32.totalorder %s20, 1
    %p302 = scmp.ne.s32.totalorder %s297, %s299
    %p303 = scmp.eq.s32.totalorder %s20, 0
    %p304 = por %p302, %p303
    %p305 = scmp.ne.s32.totalorder %s297, %s299
    %p306 = scmp.eq.s32.totalorder %s25, 1
    %p307 = por %p305, %p306
    %p308 = scmp.ne.s32.totalorder %s299, %s300
    %p309 = scmp.eq.s32.totalorder %s25, 0
    %p310 = por %p308, %p309
    %p311 = scmp.ne.s32.totalorder %s299, %s300
    %p312 = scmp.eq.s32.totalorder %s26, 1
    %p313 = por %p311, %p312
    %p315 = scmp.ne.s32.totalorder %s300, %s314
    %p316 = scmp.eq.s32.totalorder %s26, 0
    %p317 = por %p315, %p316
    %s318 = ssub.s32 %s27, %s39
    %s319 = ssub.s32 %s28, %s35
    %s320 = sor.u32 %s318, %s319
    %p321 = scmp.eq.s32.totalorder %s320, 0
    %s323 = sadd.s32 %s322, 1
    %s324 = scalar_select %p321, %s322, %s323
    %p327 = pneg %p321
    %p328 = scmp.eq.s32.totalorder %s20, 1
    %p329 = por %p327, %p328
    %p330 = scmp.ne.s32.totalorder %s322, %s325
    %p331 = scmp.eq.s32.totalorder %s20, 0
    %p332 = por %p330, %p331
    %p333 = scmp.ne.s32.totalorder %s322, %s325
    %p334 = scmp.eq.s32.totalorder %s25, 1
    %p335 = por %p333, %p334
    %p336 = scmp.ne.s32.totalorder %s325, %s326
    %p337 = scmp.eq.s32.totalorder %s25, 0
    %p338 = por %p336, %p337
    %p339 = scmp.ne.s32.totalorder %s325, %s326
    %p340 = scmp.eq.s32.totalorder %s26, 1
    %p341 = por %p339, %p340
    %p343 = scmp.ne.s32.totalorder %s326, %s342
    %p344 = scmp.eq.s32.totalorder %s26, 0
    %p345 = por %p343, %p344
    %p346 = scmp.le.s32.totalorder 1, %s20
    %p347 = scmp.lt.s32.totalorder %s20, 3
    %p348 = pnand %p346, %p347
    %p349 = pneg %p348
    // Predicated region
    $region9: #{forward.10} parent=5 // pred_check
      _
    $region10: #{forward.10} parent=5 // pred_check_branch
      %351 = sbr.rel (%p348) target = $region12
    $region11: #{forward.10} parent=5 // pred_region
      %s352 = ssub.s32 %s20, 1
      // Predicated region
      $region13: #{forward.10} parent=11 // pred_check
        %p353 = pneg %p137
      $region14: #{forward.10} parent=11 // pred_check_branch
        %355 = sbr.rel (%p353) target = $region16
      $region15: #{forward.10} parent=11 // pred_region
        _
      $region16: #{forward.10} parent=11 // pred_fallthru
        _
      // Predicated region
      $region17: #{forward.10} parent=11 // pred_check
        %p356 = pneg %p158
      $region18: #{forward.10} parent=11 // pred_check_branch
        %358 = sbr.rel (%p356) target = $region20
      $region19: #{forward.10} parent=11 // pred_region
        _
      $region20: #{forward.10} parent=11 // pred_fallthru
        _
      // Predicated region
      $region21: #{forward.10} parent=11 // pred_check
        %p359 = pneg %p179
      $region22: #{forward.10} parent=11 // pred_check_branch
        %361 = sbr.rel (%p359) target = $region24
      $region23: #{forward.10} parent=11 // pred_region
        _
      $region24: #{forward.10} parent=11 // pred_fallthru
        _
      // Predicated region
      $region25: #{forward.10} parent=11 // pred_check
        %p362 = pneg %p200
      $region26: #{forward.10} parent=11 // pred_check_branch
        %364 = sbr.rel (%p362) target = $region28
      $region27: #{forward.10} parent=11 // pred_region
        _
      $region28: #{forward.10} parent=11 // pred_fallthru
        _
      // Predicated region
      $region29: #{forward.10} parent=11 // pred_check
        %p365 = pneg %p221
      $region30: #{forward.10} parent=11 // pred_check_branch
        %367 = sbr.rel (%p365) target = $region32
      $region31: #{forward.10} parent=11 // pred_region
        _
      $region32: #{forward.10} parent=11 // pred_fallthru
        _
      // Predicated region
      $region33: #{forward.10} parent=11 // pred_check
        %p368 = pneg %p242
      $region34: #{forward.10} parent=11 // pred_check_branch
        %370 = sbr.rel (%p368) target = $region36
      $region35: #{forward.10} parent=11 // pred_region
        _
      $region36: #{forward.10} parent=11 // pred_fallthru
        _
      // Predicated region
      $region37: #{forward.10} parent=11 // pred_check
        %p371 = pneg %p289
      $region38: #{forward.10} parent=11 // pred_check_branch
        %373 = sbr.rel (%p371) target = $region40
      $region39: #{forward.10} parent=11 // pred_region
        _
      $region40: #{forward.10} parent=11 // pred_fallthru
        _
      // Predicated region
      $region41: #{forward.10} parent=11 // pred_check
        %p374 = pneg %p310
      $region42: #{forward.10} parent=11 // pred_check_branch
        %376 = sbr.rel (%p374) target = $region44
      $region43: #{forward.10} parent=11 // pred_region
        _
      $region44: #{forward.10} parent=11 // pred_fallthru
        _
    $region12: #{forward.10} parent=5 // pred_fallthru
      _
    %p377 = scmp.lt.s32.totalorder %s20, 2
    // Predicated region
    $region45: #{forward.10} parent=5 // pred_check
      %p378 = pneg %p377
    $region46: #{forward.10} parent=5 // pred_check_branch
      %380 = sbr.rel (%p378) target = $region48
    $region47: #{forward.10} parent=5 // pred_region
      // Predicated region
      $region49: #{forward.10} parent=47 // pred_check
        %p381 = pneg %p54
      $region50: #{forward.10} parent=47 // pred_check_branch
        %383 = sbr.rel (%p381) target = $region52
      $region51: #{forward.10} parent=47 // pred_region
        %s384 = smul.u32 2, %s28
        %p385 = scmp.lt.s32.totalorder %s27, 1
        %s386 = scalar_select %p385, %s27, 1
        %p387 = scmp.lt.s32.totalorder %s384, 1
        %s388 = scalar_select %p387, %s384, 1
        %s389 = smul.addr %s386, 4
        %s390 = sadd.s32 %s388, %s389
        %s391 = smul.addr %s390, 4
        %s392 = scalar_lea.vmem %s0, %s391
        %s393 = smul.u32 2, %s28
      $region52: #{forward.10} parent=47 // pred_fallthru
        _
      // Predicated region
      $region53: #{forward.10} parent=47 // pred_check
        %p394 = pneg %p82
      $region54: #{forward.10} parent=47 // pred_check_branch
        %396 = sbr.rel (%p394) target = $region56
      $region55: #{forward.10} parent=47 // pred_region
        %s397 = smul.u32 2, %s28
        %p398 = scmp.lt.s32.totalorder %s27, 1
        %s399 = scalar_select %p398, %s27, 1
        %p400 = scmp.lt.s32.totalorder %s397, 1
        %s401 = scalar_select %p400, %s397, 1
        %s402 = smul.addr %s399, 36
        %s403 = sadd.s32 %s401, %s402
        %s404 = smul.addr %s403, 4
        %s405 = scalar_lea.vmem %s1, %s404
        %s406 = smul.u32 2, %s28
      $region56: #{forward.10} parent=47 // pred_fallthru
        _
      // Predicated region
      $region57: #{forward.10} parent=47 // pred_check
        %p407 = pneg %p110
      $region58: #{forward.10} parent=47 // pred_check_branch
        %409 = sbr.rel (%p407) target = $region60
      $region59: #{forward.10} parent=47 // pred_region
        %s410 = smul.u32 2, %s28
        %p411 = scmp.lt.s32.totalorder %s27, 1
        %s412 = scalar_select %p411, %s27, 1
        %p413 = scmp.lt.s32.totalorder %s410, 1
        %s414 = scalar_select %p413, %s410, 1
        %s415 = smul.addr %s412, 36
        %s416 = sadd.s32 %s414, %s415
        %s417 = smul.addr %s416, 4
        %s418 = scalar_lea.vmem %s2, %s417
        %s419 = smul.u32 2, %s28
      $region60: #{forward.10} parent=47 // pred_fallthru
        _
      // Predicated region
      $region61: #{forward.10} parent=47 // pred_check
        %p420 = pneg %p262
      $region62: #{forward.10} parent=47 // pred_check_branch
        %422 = sbr.rel (%p420) target = $region64
      $region63: #{forward.10} parent=47 // pred_region
        %p423 = scmp.lt.s32.totalorder %s27, 1
        %s424 = scalar_select %p423, %s27, 1
        %s425 = smul.addr %s424, 8
        %s426 = scalar_lea.vmem %s9, %s425
      $region64: #{forward.10} parent=47 // pred_fallthru
        _
    $region48: #{forward.10} parent=5 // pred_fallthru
      _
    %p427 = scmp.le.s32.totalorder 1, %s20
    %p428 = scmp.lt.s32.totalorder %s20, 3
    %p429 = pnand %p427, %p428
    %p430 = pneg %p429
    // Predicated region
    $region65: #{forward.10} parent=5 // pred_check
      _
    $region66: #{forward.10} parent=5 // pred_check_branch
      %432 = sbr.rel (%p429) target = $region68
    $region67: #{forward.10} parent=5 // pred_region
      %s433 = ssub.s32 %s20, 1
      %s434 = smul.u32 2, %s30
      %p435 = scmp.lt.s32.totalorder %s29, 1
      %s436 = scalar_select %p435, %s29, 1
      %p437 = scmp.lt.s32.totalorder %s434, 1
      %s438 = scalar_select %p437, %s434, 1
      %s439 = smul.addr %s436, 4
      %s440 = sadd.s32 %s438, %s439
      %s441 = smul.addr %s440, 4
      %s442 = scalar_lea.vmem %s0, %s441
      %p443 = pneg %p60
      %p444 = pneg %p57
      %s445 = smul.u32 2, %s30
      %p446 = scmp.lt.s32.totalorder %s29, 1
      %s447 = scalar_select %p446, %s29, 1
      %p448 = scmp.lt.s32.totalorder %s445, 1
      %s449 = scalar_select %p448, %s445, 1
      %s450 = smul.addr %s447, 36
      %s451 = sadd.s32 %s449, %s450
      %s452 = smul.addr %s451, 4
      %s453 = scalar_lea.vmem %s1, %s452
      %p454 = pneg %p88
      %p455 = pneg %p85
      %s456 = smul.u32 2, %s30
      %p457 = scmp.lt.s32.totalorder %s29, 1
      %s458 = scalar_select %p457, %s29, 1
      %p459 = scmp.lt.s32.totalorder %s456, 1
      %s460 = scalar_select %p459, %s456, 1
      %s461 = smul.addr %s458, 36
      %s462 = sadd.s32 %s460, %s461
      %s463 = smul.addr %s462, 4
      %s464 = scalar_lea.vmem %s2, %s463
      %p465 = pneg %p116
      %p466 = pneg %p113
      %p467 = pneg %p137
      %p468 = pneg %p134
      %p469 = pneg %p158
      %p470 = pneg %p155
      %p471 = pneg %p179
      %p472 = pneg %p176
      %p473 = pneg %p200
      %p474 = pneg %p197
      %p475 = pneg %p221
      %p476 = pneg %p218
      %p477 = pneg %p242
      %p478 = pneg %p239
      %p479 = scmp.lt.s32.totalorder %s29, 1
      %s480 = scalar_select %p479, %s29, 1
      %s481 = smul.addr %s480, 8
      %s482 = scalar_lea.vmem %s9, %s481
      %p483 = pneg %p268
      %p484 = pneg %p265
      %p485 = pneg %p289
      %p486 = pneg %p286
      %p487 = pneg %p310
      %p488 = pneg %p307
      %p489 = pneg %p338
      %p490 = pneg %p335
      %s491 = smul.u32 2, %s30
      %p492 = scmp.lt.s32.totalorder %s29, 1
      %s493 = scalar_select %p492, %s29, 1
      %p494 = scmp.lt.s32.totalorder %s491, 1
      %s495 = scalar_select %p494, %s491, 1
      %s496 = smul.addr %s493, 2
      %s497 = sadd.s32 %s495, %s496
      %s498 = smul.addr %s497, 8
      %s499 = scalar_lea.vmem %s12, %s498
      %s500 = smul.u32 2, %s30
      %p501 = scmp.lt.s32.totalorder %s29, 1
      %s502 = scalar_select %p501, %s29, 1
      %p503 = scmp.lt.s32.totalorder %s500, 1
      %s504 = scalar_select %p503, %s500, 1
      %s505 = smul.addr %s502, 4
      %s506 = sadd.s32 %s504, %s505
      %s507 = smul.addr %s506, 4
      %s508 = scalar_lea.vmem %s0, %s507
      %s509 = smul.u32 2, %s30
      %s510 = smul.u32 2, %s30
      %p511 = scmp.lt.s32.totalorder %s29, 1
      %s512 = scalar_select %p511, %s29, 1
      %p513 = scmp.lt.s32.totalorder %s510, 1
      %s514 = scalar_select %p513, %s510, 1
      %s515 = smul.addr %s512, 36
      %s516 = sadd.s32 %s514, %s515
      %s517 = smul.addr %s516, 4
      %s518 = scalar_lea.vmem %s1, %s517
      %s519 = smul.u32 2, %s30
      %s520 = smul.u32 2, %s30
      %p521 = scmp.lt.s32.totalorder %s29, 1
      %s522 = scalar_select %p521, %s29, 1
      %p523 = scmp.lt.s32.totalorder %s520, 1
      %s524 = scalar_select %p523, %s520, 1
      %s525 = smul.addr %s522, 36
      %s526 = sadd.s32 %s524, %s525
      %s527 = smul.addr %s526, 4
      %s528 = scalar_lea.vmem %s2, %s527
      %s529 = smul.u32 2, %s30
      %p530 = scmp.lt.s32.totalorder %s29, 1
      %s531 = scalar_select %p530, %s29, 1
      %s532 = smul.addr %s531, 8
      %s533 = scalar_lea.vmem %s9, %s532
      %s534 = smul.u32 2, %s30
      %p535 = scmp.lt.s32.totalorder %s29, 1
      %s536 = scalar_select %p535, %s29, 1
      %p537 = scmp.lt.s32.totalorder %s534, 1
      %s538 = scalar_select %p537, %s534, 1
      %s539 = smul.addr %s536, 2
      %s540 = sadd.s32 %s538, %s539
      %s541 = smul.addr %s540, 8
      %s542 = scalar_lea.vmem %s12, %s541
      %s543 = smul.u32 2, %s30
      %v545 = vld [vmem:[%s508] sm:$0xff]
      %v546 = vld [vmem:[%s508 + $0x8] sm:$0xff]
      %v547 = vld [vmem:[%s518] sm:$0xff]
      %v548 = vld [vmem:[%s518 + $0x8] sm:$0xff]
      %v549 = vld [vmem:[%s518 + $0x10] sm:$0xff]
      %v550 = vld [vmem:[%s518 + $0x18] sm:$0xff]
      %v551 = vld [vmem:[%s518 + $0x20] sm:$0xff]
      %v552 = vld [vmem:[%s518 + $0x28] sm:$0xff]
      %v553 = vld [vmem:[%s518 + $0x30] sm:$0xff]
      %v554 = vld [vmem:[%s518 + $0x38] sm:$0xff]
      %v555 = vld [vmem:[%s518 + $0x40] sm:$0xff]
      %v556 = vld [vmem:[%s518 + $0x48] sm:$0xff]
      %v557 = vld [vmem:[%s518 + $0x50] sm:$0xff]
      %v558 = vld [vmem:[%s518 + $0x58] sm:$0xff]
      %v559 = vld [vmem:[%s518 + $0x60] sm:$0xff]
      %v560 = vld [vmem:[%s518 + $0x68] sm:$0xff]
      %v561 = vld [vmem:[%s518 + $0x70] sm:$0xff]
      %v562 = vld [vmem:[%s518 + $0x78] sm:$0xff]
      %v563 = vld [vmem:[%s518 + $0x80] sm:$0xff]
      %v564 = vld [vmem:[%s518 + $0x88] sm:$0xff]
      %v565 = vld [vmem:[%s3] sm:$0xf]
      %v566 = vld [vmem:[%s7] sm:$0xff]
      %568 = vset.pattern.permute.xlu0 0
      %569 = vperm.xlu0 %568, %v566
      %v570 = vpop.permute.xlu0 %569
      %v574 = vunpack.c.l.b16 %v545
      %v575 = vunpack.c.h.b16 %v545
      %v576 = vunpack.c.l.b16 %v546
      %v577 = vunpack.c.h.b16 %v546
      %v578 = vpack.c.b16 %v576, %v574
      %v579 = vpack.c.b16 %v577, %v575
      %vm582 = vcmask 130048
      %v584 = vsel %vm582, %v565, 0
      %586 = vmatprep.subr.bf16.mxu0 %v579
      %587 = vmatpush1.bf16.msra.mxu0 %v578
      %588 = vmatprep.subr.bf16.mxu0 0
      %589 = vmatpush1.bf16.msra.mxu0 0
      %590 = vmatprep.subr.bf16.mxu0 0
      %591 = vmatpush1.bf16.msra.mxu0 0
      %592 = vmatprep.subr.bf16.mxu0 0
      %593 = vmatpush1.bf16.msra.mxu0 0
      %594 = vmatprep.subr.bf16.mxu0 0
      %595 = vmatpush1.bf16.msra.mxu0 0
      %596 = vmatprep.subr.bf16.mxu0 0
      %597 = vmatpush1.bf16.msra.mxu0 0
      %598 = vmatprep.subr.bf16.mxu0 0
      %599 = vmatpush1.bf16.msra.mxu0 0
      %600 = vmatprep.subr.bf16.mxu0 0
      %601 = vmatpush1.bf16.msra.mxu0 0
      %602 = vmatprep.subr.bf16.mxu0 0
      %603 = vmatpush1.bf16.msra.mxu0 0
      %604 = vmatprep.subr.bf16.mxu0 0
      %605 = vmatpush1.bf16.msra.mxu0 0
      %606 = vmatprep.subr.bf16.mxu0 0
      %607 = vmatpush1.bf16.msra.mxu0 0
      %608 = vmatprep.subr.bf16.mxu0 0
      %609 = vmatpush1.bf16.msra.mxu0 0
      %610 = vmatprep.subr.bf16.mxu0 0
      %611 = vmatpush1.bf16.msra.mxu0 0
      %612 = vmatprep.subr.bf16.mxu0 0
      %613 = vmatpush1.bf16.msra.mxu0 0
      %614 = vmatprep.subr.bf16.mxu0 0
      %615 = vmatpush1.bf16.msra.mxu0 0
      %616 = vmatprep.subr.bf16.mxu0 0
      %617 = vmatpush1.bf16.msra.mxu0 0
      %618 = vmatprep.mubr.bf16.mxu0 0
      %619 = vmatmul.mubr.bf16.gmra.mrb[0].mxu0 %v584
      %v620 = vpop.f32.mrb[0].mxu0
      %v621 = vadd.f32 %v570, %v620
      %v622 = vpop.f32.mrb[0].mxu0
      %v623 = vadd.f32 %v570, %v622
      %v624 = vpop.f32.mrb[0].mxu0
      %v625 = vpop.f32.mrb[0].mxu0
      %626 = vdwg.mxu0
      %v627 = vmax.f32 %v621, 0.0
      %v628 = vmax.f32 %v623, 0.0
      %v629 = vld [vmem:[%s4] sm:$0xff]
      %s630 = scalar_lea.vmem %s7, 8
      %v631 = vld [vmem:[%s630] sm:$0xff]
      %633 = vset.pattern.permute.xlu0 0
      %634 = vperm.xlu0 %633, %v631
      %v635 = vpop.permute.xlu0 %634
      %v638 = vunpack.c.l.b16 %v629
      %v639 = vunpack.c.h.b16 %v629
      %v640 = vpack.c.b16 %v638, %v638
      %v641 = vpack.c.b16 %v639, %v639
      %v661 = vunpack.c.l.b16 %v547
      %v662 = vunpack.c.h.b16 %v547
      %v663 = vunpack.c.l.b16 %v548
      %v664 = vunpack.c.h.b16 %v548
      %v665 = vunpack.c.l.b16 %v549
      %v666 = vunpack.c.h.b16 %v549
      %v667 = vunpack.c.l.b16 %v550
      %v668 = vunpack.c.h.b16 %v550
      %v669 = vunpack.c.l.b16 %v551
      %v670 = vunpack.c.h.b16 %v551
      %v671 = vunpack.c.l.b16 %v552
      %v672 = vunpack.c.h.b16 %v552
      %v673 = vunpack.c.l.b16 %v553
      %v674 = vunpack.c.h.b16 %v553
      %v675 = vunpack.c.l.b16 %v554
      %v676 = vunpack.c.h.b16 %v554
      %v677 = vunpack.c.l.b16 %v555
      %v678 = vunpack.c.h.b16 %v555
      %v679 = vunpack.c.l.b16 %v556
      %v680 = vunpack.c.h.b16 %v556
      %v681 = vunpack.c.l.b16 %v557
      %v682 = vunpack.c.h.b16 %v557
      %v683 = vunpack.c.l.b16 %v558
      %v684 = vunpack.c.h.b16 %v558
      %v685 = vunpack.c.l.b16 %v559
      %v686 = vunpack.c.h.b16 %v559
      %v687 = vunpack.c.l.b16 %v560
      %v688 = vunpack.c.h.b16 %v560
      %v689 = vunpack.c.l.b16 %v561
      %v690 = vunpack.c.h.b16 %v561
      %v691 = vunpack.c.l.b16 %v562
      %v692 = vunpack.c.h.b16 %v562
      %v693 = vunpack.c.l.b16 %v563
      %v694 = vunpack.c.h.b16 %v563
      %v695 = vunpack.c.l.b16 %v564
      %v696 = vunpack.c.h.b16 %v564
      %v697 = vpack.c.b16 %v663, %v661
      %v698 = vpack.c.b16 %v664, %v662
      %v699 = vpack.c.b16 %v667, %v665
      %v700 = vpack.c.b16 %v668, %v666
      %v701 = vpack.c.b16 %v671, %v669
      %v702 = vpack.c.b16 %v672, %v670
      %v703 = vpack.c.b16 %v675, %v673
      %v704 = vpack.c.b16 %v676, %v674
      %v705 = vpack.c.b16 %v679, %v677
      %v706 = vpack.c.b16 %v680, %v678
      %v707 = vpack.c.b16 %v683, %v681
      %v708 = vpack.c.b16 %v684, %v682
      %v709 = vpack.c.b16 %v687, %v685
      %v710 = vpack.c.b16 %v688, %v686
      %v711 = vpack.c.b16 %v691, %v689
      %v712 = vpack.c.b16 %v692, %v690
      %v713 = vpack.c.b16 %v695, %v693
      %v714 = vpack.c.b16 %v696, %v694
      %v734 = vsel %vm582, %v641, 0
      %736 = vmatprep.subr.bf16.mxu0 %v698
      %737 = vmatpush1.bf16.msra.mxu0 %v697
      %738 = vmatprep.subr.bf16.mxu0 %v700
      %739 = vmatpush1.bf16.msra.mxu0 %v699
      %740 = vmatprep.subr.bf16.mxu0 %v702
      %741 = vmatpush1.bf16.msra.mxu0 %v701
      %742 = vmatprep.subr.bf16.mxu0 %v704
      %743 = vmatpush1.bf16.msra.mxu0 %v703
      %744 = vmatprep.subr.bf16.mxu0 %v706
      %745 = vmatpush1.bf16.msra.mxu0 %v705
      %746 = vmatprep.subr.bf16.mxu0 %v708
      %747 = vmatpush1.bf16.msra.mxu0 %v707
      %748 = vmatprep.subr.bf16.mxu0 %v710
      %749 = vmatpush1.bf16.msra.mxu0 %v709
      %750 = vmatprep.subr.bf16.mxu0 %v712
      %751 = vmatpush1.bf16.msra.mxu0 %v711
      %752 = vmatprep.subr.bf16.mxu0 %v714
      %753 = vmatpush1.bf16.msra.mxu0 %v713
      %754 = vmatprep.subr.bf16.mxu0 0
      %755 = vmatpush1.bf16.msra.mxu0 0
      %756 = vmatprep.subr.bf16.mxu0 0
      %757 = vmatpush1.bf16.msra.mxu0 0
      %758 = vmatprep.subr.bf16.mxu0 0
      %759 = vmatpush1.bf16.msra.mxu0 0
      %760 = vmatprep.subr.bf16.mxu0 0
      %761 = vmatpush1.bf16.msra.mxu0 0
      %762 = vmatprep.subr.bf16.mxu0 0
      %763 = vmatpush1.bf16.msra.mxu0 0
      %764 = vmatprep.subr.bf16.mxu0 0
      %765 = vmatpush1.bf16.msra.mxu0 0
      %766 = vmatprep.subr.bf16.mxu0 0
      %767 = vmatpush1.bf16.msra.mxu0 0
      %768 = vmatprep.mubr.bf16.mxu0 %v734
      %769 = vmatmul.mubr.bf16.gmra.mrb[0].mxu0 %v640
      %v770 = vpop.f32.mrb[0].mxu0
      %v771 = vadd.f32 %v635, %v770
      %v772 = vpop.f32.mrb[0].mxu0
      %v773 = vadd.f32 %v635, %v772
      %v774 = vpop.f32.mrb[0].mxu0
      %v775 = vpop.f32.mrb[0].mxu0
      %776 = vdwg.mxu0
      %v777 = vmax.f32 %v771, 0.0
      %v778 = vmax.f32 %v773, 0.0
      %v779 = vld [vmem:[%s5] sm:$0xf]
      %s780 = scalar_lea.vmem %s7, 16
      %v781 = vld [vmem:[%s780] sm:$0xff]
      %783 = vset.pattern.permute.xlu0 0
      %784 = vperm.xlu0 %783, %v781
      %v785 = vpop.permute.xlu0 %784
      %v788 = vsel %vm582, %v779, 0
      %790 = vmatprep.subr.bf16.mxu0 %v579
      %791 = vmatpush1.bf16.msra.mxu0 %v578
      %792 = vmatprep.subr.bf16.mxu0 0
      %793 = vmatpush1.bf16.msra.mxu0 0
      %794 = vmatprep.subr.bf16.mxu0 0
      %795 = vmatpush1.bf16.msra.mxu0 0
      %796 = vmatprep.subr.bf16.mxu0 0
      %797 = vmatpush1.bf16.msra.mxu0 0
      %798 = vmatprep.subr.bf16.mxu0 0
      %799 = vmatpush1.bf16.msra.mxu0 0
      %800 = vmatprep.subr.bf16.mxu0 0
      %801 = vmatpush1.bf16.msra.mxu0 0
      %802 = vmatprep.subr.bf16.mxu0 0
      %803 = vmatpush1.bf16.msra.mxu0 0
      %804 = vmatprep.subr.bf16.mxu0 0
      %805 = vmatpush1.bf16.msra.mxu0 0
      %806 = vmatprep.subr.bf16.mxu0 0
      %807 = vmatpush1.bf16.msra.mxu0 0
      %808 = vmatprep.subr.bf16.mxu0 0
      %809 = vmatpush1.bf16.msra.mxu0 0
      %810 = vmatprep.subr.bf16.mxu0 0
      %811 = vmatpush1.bf16.msra.mxu0 0
      %812 = vmatprep.subr.bf16.mxu0 0
      %813 = vmatpush1.bf16.msra.mxu0 0
      %814 = vmatprep.subr.bf16.mxu0 0
      %815 = vmatpush1.bf16.msra.mxu0 0
      %816 = vmatprep.subr.bf16.mxu0 0
      %817 = vmatpush1.bf16.msra.mxu0 0
      %818 = vmatprep.subr.bf16.mxu0 0
      %819 = vmatpush1.bf16.msra.mxu0 0
      %820 = vmatprep.subr.bf16.mxu0 0
      %821 = vmatpush1.bf16.msra.mxu0 0
      %822 = vmatprep.mubr.bf16.mxu0 0
      %823 = vmatmul.mubr.bf16.gmra.mrb[0].mxu0 %v788
      %v824 = vpop.f32.mrb[0].mxu0
      %v825 = vadd.f32 %v785, %v824
      %v826 = vpop.f32.mrb[0].mxu0
      %v827 = vadd.f32 %v785, %v826
      %v828 = vpop.f32.mrb[0].mxu0
      %v829 = vpop.f32.mrb[0].mxu0
      %830 = vdwg.mxu0
      %v831 = vmax.f32 %v825, 0.0
      %v832 = vmax.f32 %v827, 0.0
      %v833 = vld [vmem:[%s6] sm:$0xf]
      %s834 = scalar_lea.vmem %s7, 24
      %v835 = vld [vmem:[%s834] sm:$0xff]
      %837 = vset.pattern.permute.xlu0 0
      %838 = vperm.xlu0 %837, %v835
      %v839 = vpop.permute.xlu0 %838
      %v842 = vsel %vm582, %v833, 0
      %844 = vmatprep.subr.bf16.mxu0 %v579
      %845 = vmatpush1.bf16.msra.mxu0 %v578
      %846 = vmatprep.subr.bf16.mxu0 0
      %847 = vmatpush1.bf16.msra.mxu0 0
      %848 = vmatprep.subr.bf16.mxu0 0
      %849 = vmatpush1.bf16.msra.mxu0 0
      %850 = vmatprep.subr.bf16.mxu0 0
      %851 = vmatpush1.bf16.msra.mxu0 0
      %852 = vmatprep.subr.bf16.mxu0 0
      %853 = vmatpush1.bf16.msra.mxu0 0
      %854 = vmatprep.subr.bf16.mxu0 0
      %855 = vmatpush1.bf16.msra.mxu0 0
      %856 = vmatprep.subr.bf16.mxu0 0
      %857 = vmatpush1.bf16.msra.mxu0 0
      %858 = vmatprep.subr.bf16.mxu0 0
      %859 = vmatpush1.bf16.msra.mxu0 0
      %860 = vmatprep.subr.bf16.mxu0 0
      %861 = vmatpush1.bf16.msra.mxu0 0
      %862 = vmatprep.subr.bf16.mxu0 0
      %863 = vmatpush1.bf16.msra.mxu0 0
      %864 = vmatprep.subr.bf16.mxu0 0
      %865 = vmatpush1.bf16.msra.mxu0 0
      %866 = vmatprep.subr.bf16.mxu0 0
      %867 = vmatpush1.bf16.msra.mxu0 0
      %868 = vmatprep.subr.bf16.mxu0 0
      %869 = vmatpush1.bf16.msra.mxu0 0
      %870 = vmatprep.subr.bf16.mxu0 0
      %871 = vmatpush1.bf16.msra.mxu0 0
      %872 = vmatprep.subr.bf16.mxu0 0
      %873 = vmatpush1.bf16.msra.mxu0 0
      %874 = vmatprep.subr.bf16.mxu0 0
      %875 = vmatpush1.bf16.msra.mxu0 0
      %876 = vmatprep.mubr.bf16.mxu0 0
      %877 = vmatmul.mubr.bf16.gmra.mrb[0].mxu0 %v842
      %v878 = vpop.f32.mrb[0].mxu0
      %v879 = vadd.f32 %v839, %v878
      %v880 = vpop.f32.mrb[0].mxu0
      %v881 = vadd.f32 %v839, %v880
      %v882 = vpop.f32.mrb[0].mxu0
      %v883 = vpop.f32.mrb[0].mxu0
      %884 = vdwg.mxu0
      %v885 = vmax.f32 %v879, 0.0
      %v886 = vmax.f32 %v881, 0.0
      %v887 = vpack.c.bf16 %v777, %v627
      %v888 = vpack.c.bf16 %v778, %v628
      %v889 = vpack.c.bf16 %v885, %v831
      %v890 = vpack.c.bf16 %v886, %v832
      %v891 = vld [vmem:[%s8] sm:$0xf]
      %v892 = vld [vmem:[%s533] sm:$0xff]
      %894 = vset.pattern.permute.xlu0 0
      %895 = vperm.xlu0 %894, %v892
      %v896 = vpop.permute.xlu0 %895
      %vm898 = vcmask 261120
      %v900 = vsel %vm898, %v891, 0
      %902 = vmatprep.subr.bf16.mxu0 %v888
      %903 = vmatpush1.bf16.msra.mxu0 %v887
      %904 = vmatprep.subr.bf16.mxu0 %v890
      %905 = vmatpush1.bf16.msra.mxu0 %v889
      %906 = vmatprep.subr.bf16.mxu0 0
      %907 = vmatpush1.bf16.msra.mxu0 0
      %908 = vmatprep.subr.bf16.mxu0 0
      %909 = vmatpush1.bf16.msra.mxu0 0
      %910 = vmatprep.subr.bf16.mxu0 0
      %911 = vmatpush1.bf16.msra.mxu0 0
      %912 = vmatprep.subr.bf16.mxu0 0
      %913 = vmatpush1.bf16.msra.mxu0 0
      %914 = vmatprep.subr.bf16.mxu0 0
      %915 = vmatpush1.bf16.msra.mxu0 0
      %916 = vmatprep.subr.bf16.mxu0 0
      %917 = vmatpush1.bf16.msra.mxu0 0
      %918 = vmatprep.subr.bf16.mxu0 0
      %919 = vmatpush1.bf16.msra.mxu0 0
      %920 = vmatprep.subr.bf16.mxu0 0
      %921 = vmatpush1.bf16.msra.mxu0 0
      %922 = vmatprep.subr.bf16.mxu0 0
      %923 = vmatpush1.bf16.msra.mxu0 0
      %924 = vmatprep.subr.bf16.mxu0 0
      %925 = vmatpush1.bf16.msra.mxu0 0
      %926 = vmatprep.subr.bf16.mxu0 0
      %927 = vmatpush1.bf16.msra.mxu0 0
      %928 = vmatprep.subr.bf16.mxu0 0
      %929 = vmatpush1.bf16.msra.mxu0 0
      %930 = vmatprep.subr.bf16.mxu0 0
      %931 = vmatpush1.bf16.msra.mxu0 0
      %932 = vmatprep.subr.bf16.mxu0 0
      %933 = vmatpush1.bf16.msra.mxu0 0
      %934 = vmatprep.mubr.bf16.mxu0 0
      %935 = vmatmul.mubr.bf16.gmra.mrb[0].mxu0 %v900
      %v936 = vpop.f32.mrb[0].mxu0
      %v937 = vadd.f32 %v896, %v936
      %v938 = vpop.f32.mrb[0].mxu0
      %v939 = vadd.f32 %v896, %v938
      %v940 = vpop.f32.mrb[0].mxu0
      %v941 = vpop.f32.mrb[0].mxu0
      %942 = vdwg.mxu0
      %v943 = vmax.f32 %v937, 0.0
      %v944 = vmax.f32 %v939, 0.0
      %v945 = vld [vmem:[%s10] sm:$0x3]
      %v946 = vld [vmem:[%s528] sm:$0xff]
      %v947 = vld [vmem:[%s528 + $0x8] sm:$0xff]
      %v948 = vld [vmem:[%s528 + $0x10] sm:$0xff]
      %v949 = vld [vmem:[%s528 + $0x18] sm:$0xff]
      %v950 = vld [vmem:[%s528 + $0x20] sm:$0xff]
      %v951 = vld [vmem:[%s528 + $0x28] sm:$0xff]
      %v952 = vld [vmem:[%s528 + $0x30] sm:$0xff]
      %v953 = vld [vmem:[%s528 + $0x38] sm:$0xff]
      %v954 = vld [vmem:[%s528 + $0x40] sm:$0xff]
      %v955 = vld [vmem:[%s528 + $0x48] sm:$0xff]
      %v956 = vld [vmem:[%s528 + $0x50] sm:$0xff]
      %v957 = vld [vmem:[%s528 + $0x58] sm:$0xff]
      %v958 = vld [vmem:[%s528 + $0x60] sm:$0xff]
      %v959 = vld [vmem:[%s528 + $0x68] sm:$0xff]
      %v960 = vld [vmem:[%s528 + $0x70] sm:$0xff]
      %v961 = vld [vmem:[%s528 + $0x78] sm:$0xff]
      %v962 = vld [vmem:[%s528 + $0x80] sm:$0xff]
      %v963 = vld [vmem:[%s528 + $0x88] sm:$0xff]
      %v964 = vld [vmem:[#allocation2] sm:$0x1]
      %966 = vset.pattern.permute.xlu0 0
      %967 = vperm.xlu0 %966, %v964
      %v968 = vpop.permute.xlu0 %967
      %v970 = vlaneseq
      %v971 = vshrl.u32 %v970, 7
      %v972 = vsub.s32 0, %v971
      %v973 = vrot.slane %v968, %v972
      %v976 = vunpack.c.l.s4 1966171168
      %v977 = vunpack.c.0.s8 %v976
      %v978 = vlaneseq
      %v979 = vshrl.u32 %v978, 7
      %v980 = vsub.s32 %v977, %v979
      %v981 = vrot.slane %v945, %v980
      %v982 = vcombine.high %v981, %v981
      %v984 = vunpack.c.l.s4 1966171168
      %v985 = vunpack.c.0.s8 %v984
      %v986 = vlaneseq
      %v987 = vshrl.u32 %v986, 7
      %v988 = vsub.s32 %v985, %v987
      %v989 = vrot.slane %v981, %v988
      %v991 = vunpack.c.l.s4 1966171168
      %v992 = vunpack.c.0.s8 %v991
      %v993 = vlaneseq
      %v994 = vshrl.u32 %v993, 7
      %v995 = vsub.s32 %v992, %v994
      %v996 = vrot.slane %v982, %v995
      %v1016 = vunpack.c.l.b16 %v946
      %v1017 = vunpack.c.h.b16 %v946
      %v1018 = vunpack.c.l.b16 %v947
      %v1019 = vunpack.c.h.b16 %v947
      %v1020 = vunpack.c.l.b16 %v948
      %v1021 = vunpack.c.h.b16 %v948
      %v1022 = vunpack.c.l.b16 %v949
      %v1023 = vunpack.c.h.b16 %v949
      %v1024 = vunpack.c.l.b16 %v950
      %v1025 = vunpack.c.h.b16 %v950
      %v1026 = vunpack.c.l.b16 %v951
      %v1027 = vunpack.c.h.b16 %v951
      %v1028 = vunpack.c.l.b16 %v952
      %v1029 = vunpack.c.h.b16 %v952
      %v1030 = vunpack.c.l.b16 %v953
      %v1031 = vunpack.c.h.b16 %v953
      %v1032 = vunpack.c.l.b16 %v954
      %v1033 = vunpack.c.h.b16 %v954
      %v1034 = vunpack.c.l.b16 %v955
      %v1035 = vunpack.c.h.b16 %v955
      %v1036 = vunpack.c.l.b16 %v956
      %v1037 = vunpack.c.h.b16 %v956
      %v1038 = vunpack.c.l.b16 %v957
      %v1039 = vunpack.c.h.b16 %v957
      %v1040 = vunpack.c.l.b16 %v958
      %v1041 = vunpack.c.h.b16 %v958
      %v1042 = vunpack.c.l.b16 %v959
      %v1043 = vunpack.c.h.b16 %v959
      %v1044 = vunpack.c.l.b16 %v960
      %v1045 = vunpack.c.h.b16 %v960
      %v1046 = vunpack.c.l.b16 %v961
      %v1047 = vunpack.c.h.b16 %v961
      %v1048 = vunpack.c.l.b16 %v962
      %v1049 = vunpack.c.h.b16 %v962
      %v1050 = vunpack.c.l.b16 %v963
      %v1051 = vunpack.c.h.b16 %v963
      %v1052 = vpack.c.b16 %v1018, %v1016
      %v1053 = vpack.c.b16 %v1019, %v1017
      %v1054 = vpack.c.b16 %v1022, %v1020
      %v1055 = vpack.c.b16 %v1023, %v1021
      %v1056 = vpack.c.b16 %v1026, %v1024
      %v1057 = vpack.c.b16 %v1027, %v1025
      %v1058 = vpack.c.b16 %v1030, %v1028
      %v1059 = vpack.c.b16 %v1031, %v1029
      %v1060 = vpack.c.b16 %v1034, %v1032
      %v1061 = vpack.c.b16 %v1035, %v1033
      %v1062 = vpack.c.b16 %v1038, %v1036
      %v1063 = vpack.c.b16 %v1039, %v1037
      %v1064 = vpack.c.b16 %v1042, %v1040
      %v1065 = vpack.c.b16 %v1043, %v1041
      %v1066 = vpack.c.b16 %v1046, %v1044
      %v1067 = vpack.c.b16 %v1047, %v1045
      %v1068 = vpack.c.b16 %v1050, %v1048
      %v1069 = vpack.c.b16 %v1051, %v1049
      %v1089 = vsel %vm582, %v996, 0
      %1091 = vmatprep.subr.bf16.mxu0 %v1053
      %1092 = vmatpush1.bf16.msra.mxu0 %v1052
      %1093 = vmatprep.subr.bf16.mxu0 %v1055
      %1094 = vmatpush1.bf16.msra.mxu0 %v1054
      %1095 = vmatprep.subr.bf16.mxu0 %v1057
      %1096 = vmatpush1.bf16.msra.mxu0 %v1056
      %1097 = vmatprep.subr.bf16.mxu0 %v1059
      %1098 = vmatpush1.bf16.msra.mxu0 %v1058
      %1099 = vmatprep.subr.bf16.mxu0 %v1061
      %1100 = vmatpush1.bf16.msra.mxu0 %v1060
      %1101 = vmatprep.subr.bf16.mxu0 %v1063
      %1102 = vmatpush1.bf16.msra.mxu0 %v1062
      %1103 = vmatprep.subr.bf16.mxu0 %v1065
      %1104 = vmatpush1.bf16.msra.mxu0 %v1064
      %1105 = vmatprep.subr.bf16.mxu0 %v1067
      %1106 = vmatpush1.bf16.msra.mxu0 %v1066
      %1107 = vmatprep.subr.bf16.mxu0 %v1069
      %1108 = vmatpush1.bf16.msra.mxu0 %v1068
      %1109 = vmatprep.subr.bf16.mxu0 0
      %1110 = vmatpush1.bf16.msra.mxu0 0
      %1111 = vmatprep.subr.bf16.mxu0 0
      %1112 = vmatpush1.bf16.msra.mxu0 0
      %1113 = vmatprep.subr.bf16.mxu0 0
      %1114 = vmatpush1.bf16.msra.mxu0 0
      %1115 = vmatprep.subr.bf16.mxu0 0
      %1116 = vmatpush1.bf16.msra.mxu0 0
      %1117 = vmatprep.subr.bf16.mxu0 0
      %1118 = vmatpush1.bf16.msra.mxu0 0
      %1119 = vmatprep.subr.bf16.mxu0 0
      %1120 = vmatpush1.bf16.msra.mxu0 0
      %1121 = vmatprep.subr.bf16.mxu0 0
      %1122 = vmatpush1.bf16.msra.mxu0 0
      %1123 = vmatprep.mubr.bf16.mxu0 %v1089
      %1124 = vmatmul.mubr.bf16.gmra.mrb[0].mxu0 %v989
      %v1125 = vpop.f32.mrb[0].mxu0
      %v1126 = vadd.f32 %v973, %v1125
      %v1127 = vpop.f32.mrb[0].mxu0
      %v1128 = vadd.f32 %v973, %v1127
      %v1129 = vpop.f32.mrb[0].mxu0
      %v1130 = vpop.f32.mrb[0].mxu0
      %1131 = vdwg.mxu0
      %v1132 = vmul.f32 %v1126, 0.5
      %v1133 = vmul.f32 %v1128, 0.5
      %v1134 = vtanh.pop %v1132
      %v1135 = vtanh.pop %v1133
      %v1136 = vadd.f32 %v1134, 1.0
      %v1137 = vadd.f32 %v1135, 1.0
      %v1138 = vmul.f32 %v1136, 0.5
      %v1139 = vmul.f32 %v1137, 0.5
      %v1140 = vlaneseq
      %v1141 = vshrl.u32 %v1140, 7
      %v1142 = vsub.s32 0, %v1141
      %v1143 = vrot.slane %v1138, %v1142
      %v1144 = vlaneseq
      %v1145 = vshrl.u32 %v1144, 7
      %v1146 = vsub.s32 0, %v1145
      %v1147 = vrot.slane %v1139, %v1146
      %v1148 = vmul.f32 %v943, %v1143
      %v1149 = vmul.f32 %v944, %v1147
      %1150 = vst [vmem:[%s542] sm:$0xff] %v1148
      %1151 = vst [vmem:[%s542 + $0x8] sm:$0xff] %v1149
      %s1152 = smul.u32 2, %s30
      %p1153 = scmp.lt.s32.totalorder %s29, 1
      %s1154 = scalar_select %p1153, %s29, 1
      %p1155 = scmp.lt.s32.totalorder %s1152, 1
      %s1156 = scalar_select %p1155, %s1152, 1
      %s1157 = smul.addr %s1154, 2
      %s1158 = sadd.s32 %s1156, %s1157
      %s1159 = smul.addr %s1158, 8
      %s1160 = scalar_lea.vmem %s12, %s1159
      // Predicated region
      $region69: #{forward.10} parent=67 // pred_check
        %p1161 = pneg %p335
      $region70: #{forward.10} parent=67 // pred_check_branch
        %1163 = sbr.rel (%p1161) target = $region72
      $region71: #{forward.10} parent=67 // pred_region
        %s1164 = smul.u32 2, %s30
      $region72: #{forward.10} parent=67 // pred_fallthru
        _
    $region68: #{forward.10} parent=5 // pred_fallthru
      _
    %p1165 = scmp.le.s32.totalorder 2, %s20
    // Predicated region
    $region73: #{forward.10} parent=5 // pred_check
      %p1166 = pneg %p1165
    $region74: #{forward.10} parent=5 // pred_check_branch
      %1168 = sbr.rel (%p1166) target = $region76
    $region75: #{forward.10} parent=5 // pred_region
      %s1169 = ssub.s32 %s20, 2
      // Predicated region
      $region77: #{forward.10} parent=75 // pred_check
        %p1170 = pneg %p341
      $region78: #{forward.10} parent=75 // pred_check_branch
        %1172 = sbr.rel (%p1170) target = $region80
      $region79: #{forward.10} parent=75 // pred_region
        %s1173 = smul.u32 2, %s32
        %p1174 = scmp.lt.s32.totalorder %s31, 1
        %s1175 = scalar_select %p1174, %s31, 1
        %p1176 = scmp.lt.s32.totalorder %s1173, 1
        %s1177 = scalar_select %p1176, %s1173, 1
        %s1178 = smul.addr %s1175, 2
        %s1179 = sadd.s32 %s1177, %s1178
        %s1180 = smul.addr %s1179, 8
        %s1181 = scalar_lea.vmem %s12, %s1180
      $region80: #{forward.10} parent=75 // pred_fallthru
        _
    $region76: #{forward.10} parent=5 // pred_fallthru
      _
  $region6: #{forward.10} parent=0 // loop_footer
    %s24 = sadd.s32 1, %s20
  $region7: #{forward.10} parent=0 // loop_footer_branch
    %19 = sbr.rel target = $region3
  $region8: #{forward.10} parent=0 // loop_exit
    _

// kernel: forward.11
$region0: #{forward.11}
  #allocation0 [shape = 'u32[]', space=smem, size = 0x4, offset = 0x4, fixed_abs, tag = 'smem constant byte address 0x4 - core index']
  #allocation1 [shape = 'u32[144,128]{1,0:T(1,128)}', space=vmem, size = 0x12000, scoped, tag = 'internal scratch']
  %s0 = inlined_call_operand.vmem [shape: f32[2,8,256], index: 0, kind: input, shape index: {}]
  %s1 = inlined_call_operand.vmem [shape: bf16[2,256,256], index: 1, kind: input, shape index: {}]
  %s2 = inlined_call_operand.vmem [shape: f32[2,8,256], index: 2, kind: output, shape index: {}]
  %s3 = sld [smem:[#allocation0]]
  $region41: #{forward.11} parent=0
    _
  %s5 = ssub.s32 1, %s3
  %s6 = scalar_select 0, %s5, %s3
  loop: start=0, step=1, limit=4
  $region2: #{forward.11} parent=0 // loop_pre_header
    _
  $region3: #{forward.11} parent=0 // loop_header
    %s8 = sphi 0, %s12
    %p9 = scmp.ge.s32.totalorder %s8, 4
    %s18 = sphi 0, %s20
    %s21 = sphi 0, %s18
    %s22 = sphi 0, %s21
    %s38 = sphi 0, %s22
    %s44 = sphi 0, %s46
    %s47 = sphi 0, %s44
    %s48 = sphi 0, %s47
    %s64 = sphi 0, %s48
    %s70 = sphi 0, %s72
    %s73 = sphi 0, %s70
    %s74 = sphi 0, %s73
    %s90 = sphi 0, %s74
  $region4: #{forward.11} parent=0 // loop_header_branch
    %11 = sbr.rel (%p9) target = $region8
  $region5: #{forward.11} parent=0 // loop_body
    %s13 = ssub.s32 %s8, 1
    %s14 = ssub.s32 %s8, 2
    %s15 = sadd.s32 %s8, 1
    %s16 = ssub.s32 %s8, %s15
    %p17 = scmp.eq.s32.totalorder %s16, 0
    %s19 = sadd.s32 %s18, 1
    %s20 = scalar_select %p17, %s18, %s19
    %p23 = pneg %p17
    %p24 = scmp.eq.s32.totalorder %s8, 1
    %p25 = por %p23, %p24
    %p26 = scmp.ne.s32.totalorder %s18, %s21
    %p27 = scmp.eq.s32.totalorder %s8, 0
    %p28 = por %p26, %p27
    %p29 = scmp.ne.s32.totalorder %s18, %s21
    %p30 = scmp.eq.s32.totalorder %s13, 1
    %p31 = por %p29, %p30
    %p32 = scmp.ne.s32.totalorder %s21, %s22
    %p33 = scmp.eq.s32.totalorder %s13, 0
    %p34 = por %p32, %p33
    %p35 = scmp.ne.s32.totalorder %s21, %s22
    %p36 = scmp.eq.s32.totalorder %s14, 1
    %p37 = por %p35, %p36
    %p39 = scmp.ne.s32.totalorder %s22, %s38
    %p40 = scmp.eq.s32.totalorder %s14, 0
    %p41 = por %p39, %p40
    %s42 = ssub.s32 %s8, %s15
    %p43 = scmp.eq.s32.totalorder %s42, 0
    %s45 = sadd.s32 %s44, 1
    %s46 = scalar_select %p43, %s44, %s45
    %p49 = pneg %p43
    %p50 = scmp.eq.s32.totalorder %s8, 1
    %p51 = por %p49, %p50
    %p52 = scmp.ne.s32.totalorder %s44, %s47
    %p53 = scmp.eq.s32.totalorder %s8, 0
    %p54 = por %p52, %p53
    %p55 = scmp.ne.s32.totalorder %s44, %s47
    %p56 = scmp.eq.s32.totalorder %s13, 1
    %p57 = por %p55, %p56
    %p58 = scmp.ne.s32.totalorder %s47, %s48
    %p59 = scmp.eq.s32.totalorder %s13, 0
    %p60 = por %p58, %p59
    %p61 = scmp.ne.s32.totalorder %s47, %s48
    %p62 = scmp.eq.s32.totalorder %s14, 1
    %p63 = por %p61, %p62
    %p65 = scmp.ne.s32.totalorder %s48, %s64
    %p66 = scmp.eq.s32.totalorder %s14, 0
    %p67 = por %p65, %p66
    %s68 = ssub.s32 %s8, %s15
    %p69 = scmp.eq.s32.totalorder %s68, 0
    %s71 = sadd.s32 %s70, 1
    %s72 = scalar_select %p69, %s70, %s71
    %p75 = pneg %p69
    %p76 = scmp.eq.s32.totalorder %s8, 1
    %p77 = por %p75, %p76
    %p78 = scmp.ne.s32.totalorder %s70, %s73
    %p79 = scmp.eq.s32.totalorder %s8, 0
    %p80 = por %p78, %p79
    %p81 = scmp.ne.s32.totalorder %s70, %s73
    %p82 = scmp.eq.s32.totalorder %s13, 1
    %p83 = por %p81, %p82
    %p84 = scmp.ne.s32.totalorder %s73, %s74
    %p85 = scmp.eq.s32.totalorder %s13, 0
    %p86 = por %p84, %p85
    %p87 = scmp.ne.s32.totalorder %s73, %s74
    %p88 = scmp.eq.s32.totalorder %s14, 1
    %p89 = por %p87, %p88
    %p91 = scmp.ne.s32.totalorder %s74, %s90
    %p92 = scmp.eq.s32.totalorder %s14, 0
    %p93 = por %p91, %p92
    %p94 = scmp.le.s32.totalorder 1, %s8
    %p95 = scmp.lt.s32.totalorder %s8, 3
    %p96 = pnand %p94, %p95
    %p97 = pneg %p96
    // Predicated region
    $region9: #{forward.11} parent=5 // pred_check
      _
    $region10: #{forward.11} parent=5 // pred_check_branch
      %99 = sbr.rel (%p96) target = $region12
    $region11: #{forward.11} parent=5 // pred_region
      %s100 = ssub.s32 %s8, 1
    $region12: #{forward.11} parent=5 // pred_fallthru
      _
    %p101 = scmp.lt.s32.totalorder %s8, 2
    // Predicated region
    $region13: #{forward.11} parent=5 // pred_check
      %p102 = pneg %p101
    $region14: #{forward.11} parent=5 // pred_check_branch
      %104 = sbr.rel (%p102) target = $region16
    $region15: #{forward.11} parent=5 // pred_region
      // Predicated region
      $region17: #{forward.11} parent=15 // pred_check
        %p105 = pneg %p28
      $region18: #{forward.11} parent=15 // pred_check_branch
        %107 = sbr.rel (%p105) target = $region20
      $region19: #{forward.11} parent=15 // pred_region
        %p108 = scmp.lt.s32.totalorder %s8, 1
        %s109 = scalar_select %p108, %s8, 1
        %s110 = smul.addr %s109, 2
        %s111 = smul.addr %s110, 8
        %s112 = scalar_lea.vmem %s0, %s111
      $region20: #{forward.11} parent=15 // pred_fallthru
        _
      // Predicated region
      $region21: #{forward.11} parent=15 // pred_check
        %p113 = pneg %p54
      $region22: #{forward.11} parent=15 // pred_check_branch
        %115 = sbr.rel (%p113) target = $region24
      $region23: #{forward.11} parent=15 // pred_region
        %p116 = scmp.lt.s32.totalorder %s8, 1
        %s117 = scalar_select %p116, %s8, 1
        %s118 = smul.addr %s117, 64
        %s119 = smul.addr %s118, 4
        %s120 = scalar_lea.vmem %s1, %s119
      $region24: #{forward.11} parent=15 // pred_fallthru
        _
    $region16: #{forward.11} parent=5 // pred_fallthru
      _
    %p121 = scmp.le.s32.totalorder 1, %s8
    %p122 = scmp.lt.s32.totalorder %s8, 3
    %p123 = pnand %p121, %p122
    %p124 = pneg %p123
    // Predicated region
    $region25: #{forward.11} parent=5 // pred_check
      _
    $region26: #{forward.11} parent=5 // pred_check_branch
      %126 = sbr.rel (%p123) target = $region28
    $region27: #{forward.11} parent=5 // pred_region
      %s127 = ssub.s32 %s8, 1
      %p128 = scmp.lt.s32.totalorder %s13, 1
      %s129 = scalar_select %p128, %s13, 1
      %s130 = smul.addr %s129, 2
      %s131 = smul.addr %s130, 8
      %s132 = scalar_lea.vmem %s0, %s131
      %p133 = pneg %p34
      %p134 = pneg %p31
      %p135 = scmp.lt.s32.totalorder %s13, 1
      %s136 = scalar_select %p135, %s13, 1
      %s137 = smul.addr %s136, 64
      %s138 = smul.addr %s137, 4
      %s139 = scalar_lea.vmem %s1, %s138
      %p140 = pneg %p60
      %p141 = pneg %p57
      %p142 = pneg %p86
      %p143 = pneg %p83
      %p144 = scmp.lt.s32.totalorder %s13, 1
      %s145 = scalar_select %p144, %s13, 1
      %s146 = smul.addr %s145, 2
      %s147 = smul.addr %s146, 8
      %s148 = scalar_lea.vmem %s2, %s147
      %p149 = scmp.lt.s32.totalorder %s13, 1
      %s150 = scalar_select %p149, %s13, 1
      %s151 = smul.addr %s150, 2
      %s152 = smul.addr %s151, 8
      %s153 = scalar_lea.vmem %s0, %s152
      %p154 = scmp.lt.s32.totalorder %s13, 1
      %s155 = scalar_select %p154, %s13, 1
      %s156 = smul.addr %s155, 64
      %s157 = smul.addr %s156, 4
      %s158 = scalar_lea.vmem %s1, %s157
      %p159 = scmp.lt.s32.totalorder %s13, 1
      %s160 = scalar_select %p159, %s13, 1
      %s161 = smul.addr %s160, 2
      %s162 = smul.addr %s161, 8
      %s163 = scalar_lea.vmem %s2, %s162
      %v164 = vld [vmem:[%s158] sm:$0xff]
      %v165 = vld [vmem:[%s158 + $0x8] sm:$0xff]
      %v166 = vld [vmem:[%s158 + $0x10] sm:$0xff]
      %v167 = vld [vmem:[%s158 + $0x18] sm:$0xff]
      %v168 = vld [vmem:[%s158 + $0x20] sm:$0xff]
      %v169 = vld [vmem:[%s158 + $0x28] sm:$0xff]
      %v170 = vld [vmem:[%s158 + $0x30] sm:$0xff]
      %v171 = vld [vmem:[%s158 + $0x38] sm:$0xff]
      %v172 = vld [vmem:[%s158 + $0x40] sm:$0xff]
      %v173 = vld [vmem:[%s158 + $0x48] sm:$0xff]
      %v174 = vld [vmem:[%s158 + $0x50] sm:$0xff]
      %v175 = vld [vmem:[%s158 + $0x58] sm:$0xff]
      %v176 = vld [vmem:[%s158 + $0x60] sm:$0xff]
      %v177 = vld [vmem:[%s158 + $0x68] sm:$0xff]
      %v178 = vld [vmem:[%s158 + $0x70] sm:$0xff]
      %v179 = vld [vmem:[%s158 + $0x78] sm:$0xff]
      %v180 = vld [vmem:[%s158 + $0x80] sm:$0xff]
      %v181 = vld [vmem:[%s158 + $0x88] sm:$0xff]
      %v182 = vld [vmem:[%s158 + $0x90] sm:$0xff]
      %v183 = vld [vmem:[%s158 + $0x98] sm:$0xff]
      %v184 = vld [vmem:[%s158 + $0xa0] sm:$0xff]
      %v185 = vld [vmem:[%s158 + $0xa8] sm:$0xff]
      %v186 = vld [vmem:[%s158 + $0xb0] sm:$0xff]
      %v187 = vld [vmem:[%s158 + $0xb8] sm:$0xff]
      %v188 = vld [vmem:[%s158 + $0xc0] sm:$0xff]
      %v189 = vld [vmem:[%s158 + $0xc8] sm:$0xff]
      %v190 = vld [vmem:[%s158 + $0xd0] sm:$0xff]
      %v191 = vld [vmem:[%s158 + $0xd8] sm:$0xff]
      %v192 = vld [vmem:[%s158 + $0xe0] sm:$0xff]
      %v193 = vld [vmem:[%s158 + $0xe8] sm:$0xff]
      %v194 = vld [vmem:[%s158 + $0xf0] sm:$0xff]
      %v195 = vld [vmem:[%s158 + $0xf8] sm:$0xff]
      %v196 = vunpack.c.l.bf16 %v164
      %v197 = vunpack.c.h.bf16 %v164
      %v198 = vunpack.c.l.bf16 %v165
      %v199 = vunpack.c.h.bf16 %v165
      %v200 = vunpack.c.l.bf16 %v166
      %v201 = vunpack.c.h.bf16 %v166
      %v202 = vunpack.c.l.bf16 %v167
      %v203 = vunpack.c.h.bf16 %v167
      %v204 = vunpack.c.l.bf16 %v168
      %v205 = vunpack.c.h.bf16 %v168
      %v206 = vunpack.c.l.bf16 %v169
      %v207 = vunpack.c.h.bf16 %v169
      %v208 = vunpack.c.l.bf16 %v170
      %v209 = vunpack.c.h.bf16 %v170
      %v210 = vunpack.c.l.bf16 %v171
      %v211 = vunpack.c.h.bf16 %v171
      %v212 = vunpack.c.l.bf16 %v172
      %v213 = vunpack.c.h.bf16 %v172
      %v214 = vunpack.c.l.bf16 %v173
      %v215 = vunpack.c.h.bf16 %v173
      %v216 = vunpack.c.l.bf16 %v174
      %v217 = vunpack.c.h.bf16 %v174
      %v218 = vunpack.c.l.bf16 %v175
      %v219 = vunpack.c.h.bf16 %v175
      %v220 = vunpack.c.l.bf16 %v176
      %v221 = vunpack.c.h.bf16 %v176
      %v222 = vunpack.c.l.bf16 %v177
      %v223 = vunpack.c.h.bf16 %v177
      %v224 = vunpack.c.l.bf16 %v178
      %v225 = vunpack.c.h.bf16 %v178
      %v226 = vunpack.c.l.bf16 %v179
      %v227 = vunpack.c.h.bf16 %v179
      %v228 = vunpack.c.l.bf16 %v180
      %v229 = vunpack.c.h.bf16 %v180
      %v230 = vunpack.c.l.bf16 %v181
      %v231 = vunpack.c.h.bf16 %v181
      %v232 = vunpack.c.l.bf16 %v182
      %v233 = vunpack.c.h.bf16 %v182
      %v234 = vunpack.c.l.bf16 %v183
      %v235 = vunpack.c.h.bf16 %v183
      %v236 = vunpack.c.l.bf16 %v184
      %v237 = vunpack.c.h.bf16 %v184
      %v238 = vunpack.c.l.bf16 %v185
      %v239 = vunpack.c.h.bf16 %v185
      %v240 = vunpack.c.l.bf16 %v186
      %v241 = vunpack.c.h.bf16 %v186
      %v242 = vunpack.c.l.bf16 %v187
      %v243 = vunpack.c.h.bf16 %v187
      %v244 = vunpack.c.l.bf16 %v188
      %v245 = vunpack.c.h.bf16 %v188
      %v246 = vunpack.c.l.bf16 %v189
      %v247 = vunpack.c.h.bf16 %v189
      %v248 = vunpack.c.l.bf16 %v190
      %v249 = vunpack.c.h.bf16 %v190
      %v250 = vunpack.c.l.bf16 %v191
      %v251 = vunpack.c.h.bf16 %v191
      %v252 = vunpack.c.l.bf16 %v192
      %v253 = vunpack.c.h.bf16 %v192
      %v254 = vunpack.c.l.bf16 %v193
      %v255 = vunpack.c.h.bf16 %v193
      %v256 = vunpack.c.l.bf16 %v194
      %v257 = vunpack.c.h.bf16 %v194
      %v258 = vunpack.c.l.bf16 %v195
      %v259 = vunpack.c.h.bf16 %v195
      %v260 = vadd.f32 %v196, %v198
      %v261 = vadd.f32 %v260, %v200
      %v262 = vadd.f32 %v261, %v202
      %v263 = vadd.f32 %v262, %v204
      %v264 = vadd.f32 %v263, %v206
      %v265 = vadd.f32 %v264, %v208
      %v266 = vadd.f32 %v265, %v210
      %v267 = vadd.f32 %v266, %v212
      %v268 = vadd.f32 %v267, %v214
      %v269 = vadd.f32 %v268, %v216
      %v270 = vadd.f32 %v269, %v218
      %v271 = vadd.f32 %v270, %v220
      %v272 = vadd.f32 %v271, %v222
      %v273 = vadd.f32 %v272, %v224
      %v274 = vadd.f32 %v273, %v226
      %v275 = vadd.f32 %v274, %v228
      %v276 = vadd.f32 %v275, %v230
      %v277 = vadd.f32 %v276, %v232
      %v278 = vadd.f32 %v277, %v234
      %v279 = vadd.f32 %v278, %v236
      %v280 = vadd.f32 %v279, %v238
      %v281 = vadd.f32 %v280, %v240
      %v282 = vadd.f32 %v281, %v242
      %v283 = vadd.f32 %v282, %v244
      %v284 = vadd.f32 %v283, %v246
      %v285 = vadd.f32 %v284, %v248
      %v286 = vadd.f32 %v285, %v250
      %v287 = vadd.f32 %v286, %v252
      %v288 = vadd.f32 %v287, %v254
      %v289 = vadd.f32 %v288, %v256
      %v290 = vadd.f32 %v289, %v258
      %v291 = vrot.slane %v290, 4
      %v292 = vadd.f32 %v290, %v291
      %v293 = vrot.slane %v292, 2
      %v294 = vadd.f32 %v292, %v293
      %v295 = vrot.slane %v294, 1
      %v296 = vadd.f32 %v294, %v295
      %v297 = vadd.f32 %v197, %v199
      %v298 = vadd.f32 %v297, %v201
      %v299 = vadd.f32 %v298, %v203
      %v300 = vadd.f32 %v299, %v205
      %v301 = vadd.f32 %v300, %v207
      %v302 = vadd.f32 %v301, %v209
      %v303 = vadd.f32 %v302, %v211
      %v304 = vadd.f32 %v303, %v213
      %v305 = vadd.f32 %v304, %v215
      %v306 = vadd.f32 %v305, %v217
      %v307 = vadd.f32 %v306, %v219
      %v308 = vadd.f32 %v307, %v221
      %v309 = vadd.f32 %v308, %v223
      %v310 = vadd.f32 %v309, %v225
      %v311 = vadd.f32 %v310, %v227
      %v312 = vadd.f32 %v311, %v229
      %v313 = vadd.f32 %v312, %v231
      %v314 = vadd.f32 %v313, %v233
      %v315 = vadd.f32 %v314, %v235
      %v316 = vadd.f32 %v315, %v237
      %v317 = vadd.f32 %v316, %v239
      %v318 = vadd.f32 %v317, %v241
      %v319 = vadd.f32 %v318, %v243
      %v320 = vadd.f32 %v319, %v245
      %v321 = vadd.f32 %v320, %v247
      %v322 = vadd.f32 %v321, %v249
      %v323 = vadd.f32 %v322, %v251
      %v324 = vadd.f32 %v323, %v253
      %v325 = vadd.f32 %v324, %v255
      %v326 = vadd.f32 %v325, %v257
      %v327 = vadd.f32 %v326, %v259
      %v328 = vrot.slane %v327, 4
      %v329 = vadd.f32 %v327, %v328
      %v330 = vrot.slane %v329, 2
      %v331 = vadd.f32 %v329, %v330
      %v332 = vrot.slane %v331, 1
      %v333 = vadd.f32 %v331, %v332
      %v334 = vadd.f32 %v296, 1e-08
      %v335 = vadd.f32 %v333, 1e-08
      %v336 = vrcp.pop %v334
      %v337 = vrcp.pop %v335
      %v338 = vmul.f32 %v196, %v336
      %v339 = vmul.f32 %v197, %v337
      %v340 = vmul.f32 %v198, %v336
      %v341 = vmul.f32 %v199, %v337
      %v342 = vmul.f32 %v200, %v336
      %v343 = vmul.f32 %v201, %v337
      %v344 = vmul.f32 %v202, %v336
      %v345 = vmul.f32 %v203, %v337
      %v346 = vmul.f32 %v204, %v336
      %v347 = vmul.f32 %v205, %v337
      %v348 = vmul.f32 %v206, %v336
      %v349 = vmul.f32 %v207, %v337
      %v350 = vmul.f32 %v208, %v336
      %v351 = vmul.f32 %v209, %v337
      %v352 = vmul.f32 %v210, %v336
      %v353 = vmul.f32 %v211, %v337
      %v354 = vmul.f32 %v212, %v336
      %v355 = vmul.f32 %v213, %v337
      %v356 = vmul.f32 %v214, %v336
      %v357 = vmul.f32 %v215, %v337
      %v358 = vmul.f32 %v216, %v336
      %v359 = vmul.f32 %v217, %v337
      %v360 = vmul.f32 %v218, %v336
      %v361 = vmul.f32 %v219, %v337
      %v362 = vmul.f32 %v220, %v336
      %v363 = vmul.f32 %v221, %v337
      %v364 = vmul.f32 %v222, %v336
      %v365 = vmul.f32 %v223, %v337
      %v366 = vmul.f32 %v224, %v336
      %v367 = vmul.f32 %v225, %v337
      %v368 = vmul.f32 %v226, %v336
      %v369 = vmul.f32 %v227, %v337
      %v370 = vmul.f32 %v228, %v336
      %v371 = vmul.f32 %v229, %v337
      %v372 = vmul.f32 %v230, %v336
      %v373 = vmul.f32 %v231, %v337
      %v374 = vmul.f32 %v232, %v336
      %v375 = vmul.f32 %v233, %v337
      %v376 = vmul.f32 %v234, %v336
      %v377 = vmul.f32 %v235, %v337
      %v378 = vmul.f32 %v236, %v336
      %v379 = vmul.f32 %v237, %v337
      %v380 = vmul.f32 %v238, %v336
      %v381 = vmul.f32 %v239, %v337
      %v382 = vmul.f32 %v240, %v336
      %v383 = vmul.f32 %v241, %v337
      %v384 = vmul.f32 %v242, %v336
      %v385 = vmul.f32 %v243, %v337
      %v386 = vmul.f32 %v244, %v336
      %v387 = vmul.f32 %v245, %v337
      %v388 = vmul.f32 %v246, %v336
      %v389 = vmul.f32 %v247, %v337
      %v390 = vmul.f32 %v248, %v336
      %v391 = vmul.f32 %v249, %v337
      %v392 = vmul.f32 %v250, %v336
      %v393 = vmul.f32 %v251, %v337
      %v394 = vmul.f32 %v252, %v336
      %v395 = vmul.f32 %v253, %v337
      %v396 = vmul.f32 %v254, %v336
      %v397 = vmul.f32 %v255, %v337
      %v398 = vmul.f32 %v256, %v336
      %v399 = vmul.f32 %v257, %v337
      %v400 = vmul.f32 %v258, %v336
      %v401 = vmul.f32 %v259, %v337
      %v402 = vpack.c.bf16 %v340, %v338
      %v403 = vpack.c.bf16 %v341, %v339
      %v404 = vpack.c.bf16 %v344, %v342
      %v405 = vpack.c.bf16 %v345, %v343
      %v406 = vpack.c.bf16 %v348, %v346
      %v407 = vpack.c.bf16 %v349, %v347
      %v408 = vpack.c.bf16 %v352, %v350
      %v409 = vpack.c.bf16 %v353, %v351
      %v410 = vpack.c.bf16 %v356, %v354
      %v411 = vpack.c.bf16 %v357, %v355
      %v412 = vpack.c.bf16 %v360, %v358
      %v413 = vpack.c.bf16 %v361, %v359
      %v414 = vpack.c.bf16 %v364, %v362
      %v415 = vpack.c.bf16 %v365, %v363
      %v416 = vpack.c.bf16 %v368, %v366
      %v417 = vpack.c.bf16 %v369, %v367
      %v418 = vpack.c.bf16 %v372, %v370
      %v419 = vpack.c.bf16 %v373, %v371
      %v420 = vpack.c.bf16 %v376, %v374
      %v421 = vpack.c.bf16 %v377, %v375
      %v422 = vpack.c.bf16 %v380, %v378
      %v423 = vpack.c.bf16 %v381, %v379
      %v424 = vpack.c.bf16 %v384, %v382
      %v425 = vpack.c.bf16 %v385, %v383
      %v426 = vpack.c.bf16 %v388, %v386
      %v427 = vpack.c.bf16 %v389, %v387
      %v428 = vpack.c.bf16 %v392, %v390
      %v429 = vpack.c.bf16 %v393, %v391
      %v430 = vpack.c.bf16 %v396, %v394
      %v431 = vpack.c.bf16 %v397, %v395
      %v432 = vpack.c.bf16 %v400, %v398
      %v433 = vpack.c.bf16 %v401, %v399
      %v434 = vld [vmem:[%s153] sm:$0xff]
      %v435 = vld [vmem:[%s153 + $0x8] sm:$0xff]
      %v436 = vpack.c.bf16 %v434, %v434
      %v437 = vpack.c.bf16 %v435, %v435
      %438 = vmatprep.subr.bf16.mxu0 %v403
      %439 = vmatpush1.bf16.msra.mxu0 %v402
      %440 = vmatprep.subr.bf16.mxu0 %v405
      %441 = vmatpush1.bf16.msra.mxu0 %v404
      %442 = vmatprep.subr.bf16.mxu0 %v407
      %443 = vmatpush1.bf16.msra.mxu0 %v406
      %444 = vmatprep.subr.bf16.mxu0 %v409
      %445 = vmatpush1.bf16.msra.mxu0 %v408
      %446 = vmatprep.subr.bf16.mxu0 %v411
      %447 = vmatpush1.bf16.msra.mxu0 %v410
      %448 = vmatprep.subr.bf16.mxu0 %v413
      %449 = vmatpush1.bf16.msra.mxu0 %v412
      %450 = vmatprep.subr.bf16.mxu0 %v415
      %451 = vmatpush1.bf16.msra.mxu0 %v414
      %452 = vmatprep.subr.bf16.mxu0 %v417
      %453 = vmatpush1.bf16.msra.mxu0 %v416
      %454 = vmatprep.subr.bf16.mxu0 %v419
      %455 = vmatpush1.bf16.msra.mxu0 %v418
      %456 = vmatprep.subr.bf16.mxu0 %v421
      %457 = vmatpush1.bf16.msra.mxu0 %v420
      %458 = vmatprep.subr.bf16.mxu0 %v423
      %459 = vmatpush1.bf16.msra.mxu0 %v422
      %460 = vmatprep.subr.bf16.mxu0 %v425
      %461 = vmatpush1.bf16.msra.mxu0 %v424
      %462 = vmatprep.subr.bf16.mxu0 %v427
      %463 = vmatpush1.bf16.msra.mxu0 %v426
      %464 = vmatprep.subr.bf16.mxu0 %v429
      %465 = vmatpush1.bf16.msra.mxu0 %v428
      %466 = vmatprep.subr.bf16.mxu0 %v431
      %467 = vmatpush1.bf16.msra.mxu0 %v430
      %468 = vmatprep.subr.bf16.mxu0 %v433
      %469 = vmatpush1.bf16.msra.mxu0 %v432
      %470 = vmatprep.mubr.bf16.mxu0 %v437
      %471 = vmatmul.mubr.bf16.gmra.mrb[0].mxu0 %v436
      %v472 = vpop.f32.mrb[0].mxu0
      %v473 = vadd.f32 0.0, %v472
      %v474 = vpop.f32.mrb[0].mxu0
      %v475 = vadd.f32 0.0, %v474
      %v476 = vpop.f32.mrb[0].mxu0
      %v477 = vpop.f32.mrb[0].mxu0
      %478 = vdwg.mxu0
      %479 = vst [vmem:[%s163] sm:$0xff] %v473
      %480 = vst [vmem:[%s163 + $0x8] sm:$0xff] %v475
      %p481 = scmp.lt.s32.totalorder %s13, 1
      %s482 = scalar_select %p481, %s13, 1
      %s483 = smul.addr %s482, 2
      %s484 = smul.addr %s483, 8
      %s485 = scalar_lea.vmem %s2, %s484
      // Predicated region
      $region29: #{forward.11} parent=27 // pred_check
        %p486 = pneg %p83
      $region30: #{forward.11} parent=27 // pred_check_branch
        %488 = sbr.rel (%p486) target = $region32
      $region31: #{forward.11} parent=27 // pred_region
        _
      $region32: #{forward.11} parent=27 // pred_fallthru
        _
    $region28: #{forward.11} parent=5 // pred_fallthru
      _
    %p489 = scmp.le.s32.totalorder 2, %s8
    // Predicated region
    $region33: #{forward.11} parent=5 // pred_check
      %p490 = pneg %p489
    $region34: #{forward.11} parent=5 // pred_check_branch
      %492 = sbr.rel (%p490) target = $region36
    $region35: #{forward.11} parent=5 // pred_region
      %s493 = ssub.s32 %s8, 2
      // Predicated region
      $region37: #{forward.11} parent=35 // pred_check
        %p494 = pneg %p89
      $region38: #{forward.11} parent=35 // pred_check_branch
        %496 = sbr.rel (%p494) target = $region40
      $region39: #{forward.11} parent=35 // pred_region
        %p497 = scmp.lt.s32.totalorder %s14, 1
        %s498 = scalar_select %p497, %s14, 1
        %s499 = smul.addr %s498, 2
        %s500 = smul.addr %s499, 8
        %s501 = scalar_lea.vmem %s2, %s500
      $region40: #{forward.11} parent=35 // pred_fallthru
        _
    $region36: #{forward.11} parent=5 // pred_fallthru
      _
  $region6: #{forward.11} parent=0 // loop_footer
    %s12 = sadd.s32 1, %s8
  $region7: #{forward.11} parent=0 // loop_footer_branch
    %7 = sbr.rel target = $region3
  $region8: #{forward.11} parent=0 // loop_exit
    _

</llo_original>
